<compile_context>
chip_gen: v7x
topology: tpu7x:2x2x1
jax: 0.10.0
libtpu: 0.0.40
codegen_flags: <defaults>
</compile_context>

<pallas_src>
import numpy as np
import jax
import jax.numpy as jnp
from jax.experimental import pallas as pl
from jax.experimental.pallas import tpu as pltpu

NUM_SAMPLES = 16       # S  (cfg.num_samples)
RAYS_PER_BLOCK = 256   # G  rays per grid step (lane dim, multiple of 128)
HIDDEN = 32            # field MLP hidden width


def _make_nerf_kernel(mids, deltas):
    """Build the kernel with per-sample midpoints / deltas baked in as constants."""
    S = NUM_SAMPLES

    def kernel(o_ref, d_ref, w1t_ref, b1_ref, w2t_ref, b2_ref, out_ref):
        G = o_ref.shape[1]

        # Fused ray->sample expansion: push per-ray origin / direction through
        # the first MLP layer once (lane-dense N = G, tiny K = 3).
        oW1 = jnp.dot(w1t_ref[...], o_ref[...],
                      preferred_element_type=jnp.float32)          # (H, G)
        dW1 = jnp.dot(w1t_ref[...], d_ref[...],
                      preferred_element_type=jnp.float32)          # (H, G)
        oW1 = oW1 + b1_ref[...]            # fold bias once (hoisted out of the loop)
        w2t = w2t_ref[...]                 # (4, H)
        b2 = jnp.broadcast_to(b2_ref[...], (4, G))                 # hoisted broadcast

        T = jnp.ones((1, G), jnp.float32)      # running transmittance per ray
        acc = jnp.zeros((3, G), jnp.float32)   # composited color accumulator

        # Direct exclusive running product over samples (statically unrolled):
        # weight_s = T * alpha_s ; T *= (1 - alpha_s).
        for s in range(S):
            h = jnp.maximum(oW1 + mids[s] * dW1, 0.0)                        # (H, G)
            f = jnp.dot(w2t, h, preferred_element_type=jnp.float32) + b2     # (4, G)
            rgb = 1.0 / (1.0 + jnp.exp(-f[0:3, :]))                          # sigmoid
            sigma = jnp.maximum(f[3:4, :], 0.0)                              # relu
            alpha = 1.0 - jnp.exp(-sigma * deltas[s])                        # (1, G)
            acc = acc + (T * alpha) * rgb
            T = T * (1.0 - alpha)

        out_ref[...] = acc                                                   # (3, G) lane-dense

    return kernel


def nerf_render(origins, directions, near, far, params):
    """Pallas-backed NeRF.forward. origins/directions: (B, 3) float32."""
    B = origins.shape[0]
    S, G, H = NUM_SAMPLES, RAYS_PER_BLOCK, HIDDEN
    w1, b1, w2, b2 = params

    # generate_samples constants (static scalars -> baked into the kernel body).
    boundaries = np.linspace(near, far, S + 1, dtype=np.float32)
    # NOTE: reproduces the reference expression exactly:
    #       midpoints = boundaries[:-1] + boundaries[1:] / 2
    mids = tuple(float(v) for v in (boundaries[:-1] + boundaries[1:] / np.float32(2.0)))
    deltas = tuple(float(v) for v in np.diff(boundaries))

    # Rays-in-lanes layout: (feature, rays); pad ray count to a multiple of G.
    Bp = ((B + G - 1) // G) * G
    o_t = jnp.pad(origins.T, ((0, 0), (0, Bp - B)))   # (3, Bp)
    d_t = jnp.pad(directions.T, ((0, 0), (0, Bp - B)))

    # Transposed weights so the MLP matmuls are (H,3)@(3,N) and (4,H)@(H,N).
    w1t = w1.T     # (H, 3)
    b1c = b1.T     # (H, 1)
    w2t = w2.T     # (4, H)
    b2c = b2.T     # (4, 1)

    out_t = pl.pallas_call(
        _make_nerf_kernel(mids, deltas),
        out_shape=jax.ShapeDtypeStruct((3, Bp), jnp.float32),
        grid_spec=pltpu.PrefetchScalarGridSpec(
            num_scalar_prefetch=0,
            grid=(Bp // G,),
            in_specs=[
                pl.BlockSpec((3, G), lambda i: (0, i)),   # origins^T
                pl.BlockSpec((3, G), lambda i: (0, i)),   # directions^T
                pl.BlockSpec((H, 3), lambda i: (0, 0)),   # field W1^T (resident)
                pl.BlockSpec((H, 1), lambda i: (0, 0)),   # field b1^T (resident)
                pl.BlockSpec((4, H), lambda i: (0, 0)),   # field W2^T (resident)
                pl.BlockSpec((4, 1), lambda i: (0, 0)),   # field b2^T (resident)
            ],
            out_specs=pl.BlockSpec((3, G), lambda i: (0, i)),
        ),
        compiler_params=pltpu.CompilerParams(
            dimension_semantics=("parallel",)),
    )(o_t, d_t, w1t, b1c, w2t, b2c)

    return out_t[:, :B].T   # (B, 3)


def nerf_reference(origins, directions, near, far, params):
    """Plain-JAX reference mirroring the PyTorch module semantics."""
    w1, b1, w2, b2 = params
    B = origins.shape[0]
    S = NUM_SAMPLES
    boundaries = jnp.linspace(near, far, S + 1).astype(jnp.float32)
    midpoints = boundaries[:-1] + boundaries[1:] / 2.0
    locs = origins[:, None, :] + midpoints[None, :, None] * directions[:, None, :]
    h = jnp.maximum(locs @ w1 + b1[0], 0.0)
    f = h @ w2 + b2[0]
    rgb = jax.nn.sigmoid(f[..., :3])
    sigma = jnp.maximum(f[..., 3], 0.0)                      # (B, S)
    deltas = jnp.diff(boundaries)[None, :]                   # (1, S)
    alpha = 1.0 - jnp.exp(-sigma * deltas)
    T = jnp.concatenate(
        [jnp.ones((B, 1), jnp.float32),
         jnp.cumprod(1.0 - alpha, axis=1)[:, :-1]], axis=1)
    weights = T * alpha
    return jnp.sum(weights[..., None] * rgb, axis=1)


if __name__ == "__main__":
    key = jax.random.PRNGKey(0)
    k_o, k_d, k_w1, k_b1, k_w2, k_b2 = jax.random.split(key, 6)

    B = 512   # 2 grid steps of 256 lane-dense rays (shards across v7x's 2 TCs)
    origins = jax.random.normal(k_o, (B, 3), jnp.float32)
    directions = jax.random.normal(k_d, (B, 3), jnp.float32)
    directions = directions / jnp.linalg.norm(directions, axis=-1, keepdims=True)

    # Deterministic synthetic field parameters (3 -> HIDDEN -> 4).
    w1 = 0.5 * jax.random.normal(k_w1, (3, HIDDEN), jnp.float32)
    b1 = 0.1 * jax.random.normal(k_b1, (1, HIDDEN), jnp.float32)
    w2 = 0.5 * jax.random.normal(k_w2, (HIDDEN, 4), jnp.float32)
    b2 = 0.1 * jax.random.normal(k_b2, (1, 4), jnp.float32)
    params = (w1, b1, w2, b2)

    near, far = 1.0, 5.0

    out = nerf_render(origins, directions, near, far, params)
    jax.block_until_ready(out)

    ref = nerf_reference(origins, directions, near, far, params)
    assert out.shape == (B, 3)
    assert jnp.allclose(out, ref, rtol=1e-4, atol=2e-5), (out, ref)
    print("KERNEL_OK")
</pallas_src>

<mosaic_0001>
module attributes {stable_mosaic.version = 11 : i64} {
  func.func @kernel(%arg0: i32, %arg1: memref<3x256xf32, #tpu.memory_space<vmem>>, %arg2: memref<3x256xf32, #tpu.memory_space<vmem>>, %arg3: memref<32x3xf32, #tpu.memory_space<vmem>>, %arg4: memref<32x1xf32, #tpu.memory_space<vmem>>, %arg5: memref<4x32xf32, #tpu.memory_space<vmem>>, %arg6: memref<4x1xf32, #tpu.memory_space<vmem>>, %arg7: memref<3x256xf32, #tpu.memory_space<vmem>>) attributes {dimension_semantics = [#tpu.dimension_semantics<parallel>], iteration_bounds = array<i64: 2>, scalar_prefetch = 0 : i64, scratch_operands = 0 : i64, tpu.core_type = #tpu.core_type<tc>, window_params = [{transform_indices = @transform_0, window_bounds = array<i64: 3, 256>}, {transform_indices = @transform_1, window_bounds = array<i64: 3, 256>}, {pipeline_mode = #tpu.pipeline_mode<synchronous>, transform_indices = @transform_2, window_bounds = array<i64: 32, 3>}, {pipeline_mode = #tpu.pipeline_mode<synchronous>, transform_indices = @transform_3, window_bounds = array<i64: 32, 1>}, {pipeline_mode = #tpu.pipeline_mode<synchronous>, transform_indices = @transform_4, window_bounds = array<i64: 4, 32>}, {pipeline_mode = #tpu.pipeline_mode<synchronous>, transform_indices = @transform_5, window_bounds = array<i64: 4, 1>}, {transform_indices = @transform_6, window_bounds = array<i64: 3, 256>}]} {
    %c0 = arith.constant 0 : index
    %c0_0 = arith.constant 0 : index
    %0 = vector.load %arg3[%c0, %c0_0] : memref<32x3xf32, #tpu.memory_space<vmem>>, vector<32x3xf32>
    %c0_1 = arith.constant 0 : index
    %c0_2 = arith.constant 0 : index
    %1 = vector.load %arg1[%c0_1, %c0_2] : memref<3x256xf32, #tpu.memory_space<vmem>>, vector<3x256xf32>
    %cst = arith.constant dense<0.000000e+00> : vector<32x256xf32>
    %2 = tpu.matmul %0, %1, %cst {dimension_numbers = #tpu.dot_dimension_numbers<[1], [0], [0], [1], [0, 0, 1, 1], [], []>} : vector<32x3xf32>, vector<3x256xf32>, vector<32x256xf32> -> vector<32x256xf32>
    %c0_3 = arith.constant 0 : index
    %c0_4 = arith.constant 0 : index
    %3 = vector.load %arg3[%c0_3, %c0_4] : memref<32x3xf32, #tpu.memory_space<vmem>>, vector<32x3xf32>
    %c0_5 = arith.constant 0 : index
    %c0_6 = arith.constant 0 : index
    %4 = vector.load %arg2[%c0_5, %c0_6] : memref<3x256xf32, #tpu.memory_space<vmem>>, vector<3x256xf32>
    %cst_7 = arith.constant dense<0.000000e+00> : vector<32x256xf32>
    %5 = tpu.matmul %3, %4, %cst_7 {dimension_numbers = #tpu.dot_dimension_numbers<[1], [0], [0], [1], [0, 0, 1, 1], [], []>} : vector<32x3xf32>, vector<3x256xf32>, vector<32x256xf32> -> vector<32x256xf32>
    %c0_8 = arith.constant 0 : index
    %c0_9 = arith.constant 0 : index
    %6 = vector.load %arg4[%c0_8, %c0_9] : memref<32x1xf32, #tpu.memory_space<vmem>>, vector<32x1xf32>
    %7 = vector.broadcast %6 : vector<32x1xf32> to vector<32x256xf32>
    %8 = arith.addf %2, %7 : vector<32x256xf32>
    %c0_10 = arith.constant 0 : index
    %c0_11 = arith.constant 0 : index
    %9 = vector.load %arg5[%c0_10, %c0_11] : memref<4x32xf32, #tpu.memory_space<vmem>>, vector<4x32xf32>
    %c0_12 = arith.constant 0 : index
    %c0_13 = arith.constant 0 : index
    %10 = vector.load %arg6[%c0_12, %c0_13] : memref<4x1xf32, #tpu.memory_space<vmem>>, vector<4x1xf32>
    %11 = vector.shape_cast %10 : vector<4x1xf32> to vector<4x1xf32>
    %12 = vector.broadcast %11 : vector<4x1xf32> to vector<4x256xf32>
    %cst_14 = arith.constant 1.000000e+00 : f32
    %13 = vector.broadcast %cst_14 : f32 to vector<1x256xf32>
    %cst_15 = arith.constant 0.000000e+00 : f32
    %14 = vector.broadcast %cst_15 : f32 to vector<3x256xf32>
    %cst_16 = arith.constant 1.625000e+00 : f32
    %15 = vector.broadcast %cst_16 : f32 to vector<32x256xf32>
    %16 = arith.mulf %15, %5 : vector<32x256xf32>
    %17 = arith.addf %8, %16 : vector<32x256xf32>
    %cst_17 = arith.constant 0.000000e+00 : f32
    %18 = vector.broadcast %cst_17 : f32 to vector<32x256xf32>
    %19 = arith.maximumf %17, %18 : vector<32x256xf32>
    %cst_18 = arith.constant dense<0.000000e+00> : vector<4x256xf32>
    %20 = tpu.matmul %9, %19, %cst_18 {dimension_numbers = #tpu.dot_dimension_numbers<[1], [0], [0], [1], [0, 0, 1, 1], [], []>} : vector<4x32xf32>, vector<32x256xf32>, vector<4x256xf32> -> vector<4x256xf32>
    %21 = arith.addf %20, %12 : vector<4x256xf32>
    %22 = vector.extract_strided_slice %21 {offsets = [0, 0], sizes = [3, 256], strides = [1, 1]} : vector<4x256xf32> to vector<3x256xf32>
    %cst_19 = arith.constant 0.000000e+00 : f32
    %23 = vector.broadcast %cst_19 : f32 to vector<3x256xf32>
    %24 = arith.subf %23, %22 : vector<3x256xf32>
    %25 = math.exp %24 : vector<3x256xf32>
    %cst_20 = arith.constant 1.000000e+00 : f32
    %26 = vector.broadcast %cst_20 : f32 to vector<3x256xf32>
    %27 = arith.addf %26, %25 : vector<3x256xf32>
    %cst_21 = arith.constant 1.000000e+00 : f32
    %28 = vector.broadcast %cst_21 : f32 to vector<3x256xf32>
    %29 = arith.divf %28, %27 : vector<3x256xf32>
    %30 = vector.extract_strided_slice %21 {offsets = [3, 0], sizes = [1, 256], strides = [1, 1]} : vector<4x256xf32> to vector<1x256xf32>
    %cst_22 = arith.constant 0.000000e+00 : f32
    %31 = vector.broadcast %cst_22 : f32 to vector<1x256xf32>
    %32 = arith.maximumf %30, %31 : vector<1x256xf32>
    %cst_23 = arith.constant 0.000000e+00 : f32
    %33 = vector.broadcast %cst_23 : f32 to vector<1x256xf32>
    %34 = arith.subf %33, %32 : vector<1x256xf32>
    %cst_24 = arith.constant 2.500000e-01 : f32
    %35 = vector.broadcast %cst_24 : f32 to vector<1x256xf32>
    %36 = arith.mulf %34, %35 : vector<1x256xf32>
    %37 = math.exp %36 : vector<1x256xf32>
    %cst_25 = arith.constant 1.000000e+00 : f32
    %38 = vector.broadcast %cst_25 : f32 to vector<1x256xf32>
    %39 = arith.subf %38, %37 : vector<1x256xf32>
    %40 = arith.mulf %13, %39 : vector<1x256xf32>
    %41 = vector.broadcast %40 : vector<1x256xf32> to vector<3x256xf32>
    %42 = arith.mulf %41, %29 : vector<3x256xf32>
    %43 = arith.addf %14, %42 : vector<3x256xf32>
    %cst_26 = arith.constant 1.000000e+00 : f32
    %44 = vector.broadcast %cst_26 : f32 to vector<1x256xf32>
    %45 = arith.subf %44, %39 : vector<1x256xf32>
    %46 = arith.mulf %13, %45 : vector<1x256xf32>
    %cst_27 = arith.constant 2.000000e+00 : f32
    %47 = vector.broadcast %cst_27 : f32 to vector<32x256xf32>
    %48 = arith.mulf %47, %5 : vector<32x256xf32>
    %49 = arith.addf %8, %48 : vector<32x256xf32>
    %cst_28 = arith.constant 0.000000e+00 : f32
    %50 = vector.broadcast %cst_28 : f32 to vector<32x256xf32>
    %51 = arith.maximumf %49, %50 : vector<32x256xf32>
    %cst_29 = arith.constant dense<0.000000e+00> : vector<4x256xf32>
    %52 = tpu.matmul %9, %51, %cst_29 {dimension_numbers = #tpu.dot_dimension_numbers<[1], [0], [0], [1], [0, 0, 1, 1], [], []>} : vector<4x32xf32>, vector<32x256xf32>, vector<4x256xf32> -> vector<4x256xf32>
    %53 = arith.addf %52, %12 : vector<4x256xf32>
    %54 = vector.extract_strided_slice %53 {offsets = [0, 0], sizes = [3, 256], strides = [1, 1]} : vector<4x256xf32> to vector<3x256xf32>
    %cst_30 = arith.constant 0.000000e+00 : f32
    %55 = vector.broadcast %cst_30 : f32 to vector<3x256xf32>
    %56 = arith.subf %55, %54 : vector<3x256xf32>
    %57 = math.exp %56 : vector<3x256xf32>
    %cst_31 = arith.constant 1.000000e+00 : f32
    %58 = vector.broadcast %cst_31 : f32 to vector<3x256xf32>
    %59 = arith.addf %58, %57 : vector<3x256xf32>
    %cst_32 = arith.constant 1.000000e+00 : f32
    %60 = vector.broadcast %cst_32 : f32 to vector<3x256xf32>
    %61 = arith.divf %60, %59 : vector<3x256xf32>
    %62 = vector.extract_strided_slice %53 {offsets = [3, 0], sizes = [1, 256], strides = [1, 1]} : vector<4x256xf32> to vector<1x256xf32>
    %cst_33 = arith.constant 0.000000e+00 : f32
    %63 = vector.broadcast %cst_33 : f32 to vector<1x256xf32>
    %64 = arith.maximumf %62, %63 : vector<1x256xf32>
    %cst_34 = arith.constant 0.000000e+00 : f32
    %65 = vector.broadcast %cst_34 : f32 to vector<1x256xf32>
    %66 = arith.subf %65, %64 : vector<1x256xf32>
    %cst_35 = arith.constant 2.500000e-01 : f32
    %67 = vector.broadcast %cst_35 : f32 to vector<1x256xf32>
    %68 = arith.mulf %66, %67 : vector<1x256xf32>
    %69 = math.exp %68 : vector<1x256xf32>
    %cst_36 = arith.constant 1.000000e+00 : f32
    %70 = vector.broadcast %cst_36 : f32 to vector<1x256xf32>
    %71 = arith.subf %70, %69 : vector<1x256xf32>
    %72 = arith.mulf %46, %71 : vector<1x256xf32>
    %73 = vector.broadcast %72 : vector<1x256xf32> to vector<3x256xf32>
    %74 = arith.mulf %73, %61 : vector<3x256xf32>
    %75 = arith.addf %43, %74 : vector<3x256xf32>
    %cst_37 = arith.constant 1.000000e+00 : f32
    %76 = vector.broadcast %cst_37 : f32 to vector<1x256xf32>
    %77 = arith.subf %76, %71 : vector<1x256xf32>
    %78 = arith.mulf %46, %77 : vector<1x256xf32>
    %cst_38 = arith.constant 2.375000e+00 : f32
    %79 = vector.broadcast %cst_38 : f32 to vector<32x256xf32>
    %80 = arith.mulf %79, %5 : vector<32x256xf32>
    %81 = arith.addf %8, %80 : vector<32x256xf32>
    %cst_39 = arith.constant 0.000000e+00 : f32
    %82 = vector.broadcast %cst_39 : f32 to vector<32x256xf32>
    %83 = arith.maximumf %81, %82 : vector<32x256xf32>
    %cst_40 = arith.constant dense<0.000000e+00> : vector<4x256xf32>
    %84 = tpu.matmul %9, %83, %cst_40 {dimension_numbers = #tpu.dot_dimension_numbers<[1], [0], [0], [1], [0, 0, 1, 1], [], []>} : vector<4x32xf32>, vector<32x256xf32>, vector<4x256xf32> -> vector<4x256xf32>
    %85 = arith.addf %84, %12 : vector<4x256xf32>
    %86 = vector.extract_strided_slice %85 {offsets = [0, 0], sizes = [3, 256], strides = [1, 1]} : vector<4x256xf32> to vector<3x256xf32>
    %cst_41 = arith.constant 0.000000e+00 : f32
    %87 = vector.broadcast %cst_41 : f32 to vector<3x256xf32>
    %88 = arith.subf %87, %86 : vector<3x256xf32>
    %89 = math.exp %88 : vector<3x256xf32>
    %cst_42 = arith.constant 1.000000e+00 : f32
    %90 = vector.broadcast %cst_42 : f32 to vector<3x256xf32>
    %91 = arith.addf %90, %89 : vector<3x256xf32>
    %cst_43 = arith.constant 1.000000e+00 : f32
    %92 = vector.broadcast %cst_43 : f32 to vector<3x256xf32>
    %93 = arith.divf %92, %91 : vector<3x256xf32>
    %94 = vector.extract_strided_slice %85 {offsets = [3, 0], sizes = [1, 256], strides = [1, 1]} : vector<4x256xf32> to vector<1x256xf32>
    %cst_44 = arith.constant 0.000000e+00 : f32
    %95 = vector.broadcast %cst_44 : f32 to vector<1x256xf32>
    %96 = arith.maximumf %94, %95 : vector<1x256xf32>
    %cst_45 = arith.constant 0.000000e+00 : f32
    %97 = vector.broadcast %cst_45 : f32 to vector<1x256xf32>
    %98 = arith.subf %97, %96 : vector<1x256xf32>
    %cst_46 = arith.constant 2.500000e-01 : f32
    %99 = vector.broadcast %cst_46 : f32 to vector<1x256xf32>
    %100 = arith.mulf %98, %99 : vector<1x256xf32>
    %101 = math.exp %100 : vector<1x256xf32>
    %cst_47 = arith.constant 1.000000e+00 : f32
    %102 = vector.broadcast %cst_47 : f32 to vector<1x256xf32>
    %103 = arith.subf %102, %101 : vector<1x256xf32>
    %104 = arith.mulf %78, %103 : vector<1x256xf32>
    %105 = vector.broadcast %104 : vector<1x256xf32> to vector<3x256xf32>
    %106 = arith.mulf %105, %93 : vector<3x256xf32>
    %107 = arith.addf %75, %106 : vector<3x256xf32>
    %cst_48 = arith.constant 1.000000e+00 : f32
    %108 = vector.broadcast %cst_48 : f32 to vector<1x256xf32>
    %109 = arith.subf %108, %103 : vector<1x256xf32>
    %110 = arith.mulf %78, %109 : vector<1x256xf32>
    %cst_49 = arith.constant 2.750000e+00 : f32
    %111 = vector.broadcast %cst_49 : f32 to vector<32x256xf32>
    %112 = arith.mulf %111, %5 : vector<32x256xf32>
    %113 = arith.addf %8, %112 : vector<32x256xf32>
    %cst_50 = arith.constant 0.000000e+00 : f32
    %114 = vector.broadcast %cst_50 : f32 to vector<32x256xf32>
    %115 = arith.maximumf %113, %114 : vector<32x256xf32>
    %cst_51 = arith.constant dense<0.000000e+00> : vector<4x256xf32>
    %116 = tpu.matmul %9, %115, %cst_51 {dimension_numbers = #tpu.dot_dimension_numbers<[1], [0], [0], [1], [0, 0, 1, 1], [], []>} : vector<4x32xf32>, vector<32x256xf32>, vector<4x256xf32> -> vector<4x256xf32>
    %117 = arith.addf %116, %12 : vector<4x256xf32>
    %118 = vector.extract_strided_slice %117 {offsets = [0, 0], sizes = [3, 256], strides = [1, 1]} : vector<4x256xf32> to vector<3x256xf32>
    %cst_52 = arith.constant 0.000000e+00 : f32
    %119 = vector.broadcast %cst_52 : f32 to vector<3x256xf32>
    %120 = arith.subf %119, %118 : vector<3x256xf32>
    %121 = math.exp %120 : vector<3x256xf32>
    %cst_53 = arith.constant 1.000000e+00 : f32
    %122 = vector.broadcast %cst_53 : f32 to vector<3x256xf32>
    %123 = arith.addf %122, %121 : vector<3x256xf32>
    %cst_54 = arith.constant 1.000000e+00 : f32
    %124 = vector.broadcast %cst_54 : f32 to vector<3x256xf32>
    %125 = arith.divf %124, %123 : vector<3x256xf32>
    %126 = vector.extract_strided_slice %117 {offsets = [3, 0], sizes = [1, 256], strides = [1, 1]} : vector<4x256xf32> to vector<1x256xf32>
    %cst_55 = arith.constant 0.000000e+00 : f32
    %127 = vector.broadcast %cst_55 : f32 to vector<1x256xf32>
    %128 = arith.maximumf %126, %127 : vector<1x256xf32>
    %cst_56 = arith.constant 0.000000e+00 : f32
    %129 = vector.broadcast %cst_56 : f32 to vector<1x256xf32>
    %130 = arith.subf %129, %128 : vector<1x256xf32>
    %cst_57 = arith.constant 2.500000e-01 : f32
    %131 = vector.broadcast %cst_57 : f32 to vector<1x256xf32>
    %132 = arith.mulf %130, %131 : vector<1x256xf32>
    %133 = math.exp %132 : vector<1x256xf32>
    %cst_58 = arith.constant 1.000000e+00 : f32
    %134 = vector.broadcast %cst_58 : f32 to vector<1x256xf32>
    %135 = arith.subf %134, %133 : vector<1x256xf32>
    %136 = arith.mulf %110, %135 : vector<1x256xf32>
    %137 = vector.broadcast %136 : vector<1x256xf32> to vector<3x256xf32>
    %138 = arith.mulf %137, %125 : vector<3x256xf32>
    %139 = arith.addf %107, %138 : vector<3x256xf32>
    %cst_59 = arith.constant 1.000000e+00 : f32
    %140 = vector.broadcast %cst_59 : f32 to vector<1x256xf32>
    %141 = arith.subf %140, %135 : vector<1x256xf32>
    %142 = arith.mulf %110, %141 : vector<1x256xf32>
    %cst_60 = arith.constant 3.125000e+00 : f32
    %143 = vector.broadcast %cst_60 : f32 to vector<32x256xf32>
    %144 = arith.mulf %143, %5 : vector<32x256xf32>
    %145 = arith.addf %8, %144 : vector<32x256xf32>
    %cst_61 = arith.constant 0.000000e+00 : f32
    %146 = vector.broadcast %cst_61 : f32 to vector<32x256xf32>
    %147 = arith.maximumf %145, %146 : vector<32x256xf32>
    %cst_62 = arith.constant dense<0.000000e+00> : vector<4x256xf32>
    %148 = tpu.matmul %9, %147, %cst_62 {dimension_numbers = #tpu.dot_dimension_numbers<[1], [0], [0], [1], [0, 0, 1, 1], [], []>} : vector<4x32xf32>, vector<32x256xf32>, vector<4x256xf32> -> vector<4x256xf32>
    %149 = arith.addf %148, %12 : vector<4x256xf32>
    %150 = vector.extract_strided_slice %149 {offsets = [0, 0], sizes = [3, 256], strides = [1, 1]} : vector<4x256xf32> to vector<3x256xf32>
    %cst_63 = arith.constant 0.000000e+00 : f32
    %151 = vector.broadcast %cst_63 : f32 to vector<3x256xf32>
    %152 = arith.subf %151, %150 : vector<3x256xf32>
    %153 = math.exp %152 : vector<3x256xf32>
    %cst_64 = arith.constant 1.000000e+00 : f32
    %154 = vector.broadcast %cst_64 : f32 to vector<3x256xf32>
    %155 = arith.addf %154, %153 : vector<3x256xf32>
    %cst_65 = arith.constant 1.000000e+00 : f32
    %156 = vector.broadcast %cst_65 : f32 to vector<3x256xf32>
    %157 = arith.divf %156, %155 : vector<3x256xf32>
    %158 = vector.extract_strided_slice %149 {offsets = [3, 0], sizes = [1, 256], strides = [1, 1]} : vector<4x256xf32> to vector<1x256xf32>
    %cst_66 = arith.constant 0.000000e+00 : f32
    %159 = vector.broadcast %cst_66 : f32 to vector<1x256xf32>
    %160 = arith.maximumf %158, %159 : vector<1x256xf32>
    %cst_67 = arith.constant 0.000000e+00 : f32
    %161 = vector.broadcast %cst_67 : f32 to vector<1x256xf32>
    %162 = arith.subf %161, %160 : vector<1x256xf32>
    %cst_68 = arith.constant 2.500000e-01 : f32
    %163 = vector.broadcast %cst_68 : f32 to vector<1x256xf32>
    %164 = arith.mulf %162, %163 : vector<1x256xf32>
    %165 = math.exp %164 : vector<1x256xf32>
    %cst_69 = arith.constant 1.000000e+00 : f32
    %166 = vector.broadcast %cst_69 : f32 to vector<1x256xf32>
    %167 = arith.subf %166, %165 : vector<1x256xf32>
    %168 = arith.mulf %142, %167 : vector<1x256xf32>
    %169 = vector.broadcast %168 : vector<1x256xf32> to vector<3x256xf32>
    %170 = arith.mulf %169, %157 : vector<3x256xf32>
    %171 = arith.addf %139, %170 : vector<3x256xf32>
    %cst_70 = arith.constant 1.000000e+00 : f32
    %172 = vector.broadcast %cst_70 : f32 to vector<1x256xf32>
    %173 = arith.subf %172, %167 : vector<1x256xf32>
    %174 = arith.mulf %142, %173 : vector<1x256xf32>
    %cst_71 = arith.constant 3.500000e+00 : f32
    %175 = vector.broadcast %cst_71 : f32 to vector<32x256xf32>
    %176 = arith.mulf %175, %5 : vector<32x256xf32>
    %177 = arith.addf %8, %176 : vector<32x256xf32>
    %cst_72 = arith.constant 0.000000e+00 : f32
    %178 = vector.broadcast %cst_72 : f32 to vector<32x256xf32>
    %179 = arith.maximumf %177, %178 : vector<32x256xf32>
    %cst_73 = arith.constant dense<0.000000e+00> : vector<4x256xf32>
    %180 = tpu.matmul %9, %179, %cst_73 {dimension_numbers = #tpu.dot_dimension_numbers<[1], [0], [0], [1], [0, 0, 1, 1], [], []>} : vector<4x32xf32>, vector<32x256xf32>, vector<4x256xf32> -> vector<4x256xf32>
    %181 = arith.addf %180, %12 : vector<4x256xf32>
    %182 = vector.extract_strided_slice %181 {offsets = [0, 0], sizes = [3, 256], strides = [1, 1]} : vector<4x256xf32> to vector<3x256xf32>
    %cst_74 = arith.constant 0.000000e+00 : f32
    %183 = vector.broadcast %cst_74 : f32 to vector<3x256xf32>
    %184 = arith.subf %183, %182 : vector<3x256xf32>
    %185 = math.exp %184 : vector<3x256xf32>
    %cst_75 = arith.constant 1.000000e+00 : f32
    %186 = vector.broadcast %cst_75 : f32 to vector<3x256xf32>
    %187 = arith.addf %186, %185 : vector<3x256xf32>
    %cst_76 = arith.constant 1.000000e+00 : f32
    %188 = vector.broadcast %cst_76 : f32 to vector<3x256xf32>
    %189 = arith.divf %188, %187 : vector<3x256xf32>
    %190 = vector.extract_strided_slice %181 {offsets = [3, 0], sizes = [1, 256], strides = [1, 1]} : vector<4x256xf32> to vector<1x256xf32>
    %cst_77 = arith.constant 0.000000e+00 : f32
    %191 = vector.broadcast %cst_77 : f32 to vector<1x256xf32>
    %192 = arith.maximumf %190, %191 : vector<1x256xf32>
    %cst_78 = arith.constant 0.000000e+00 : f32
    %193 = vector.broadcast %cst_78 : f32 to vector<1x256xf32>
    %194 = arith.subf %193, %192 : vector<1x256xf32>
    %cst_79 = arith.constant 2.500000e-01 : f32
    %195 = vector.broadcast %cst_79 : f32 to vector<1x256xf32>
    %196 = arith.mulf %194, %195 : vector<1x256xf32>
    %197 = math.exp %196 : vector<1x256xf32>
    %cst_80 = arith.constant 1.000000e+00 : f32
    %198 = vector.broadcast %cst_80 : f32 to vector<1x256xf32>
    %199 = arith.subf %198, %197 : vector<1x256xf32>
    %200 = arith.mulf %174, %199 : vector<1x256xf32>
    %201 = vector.broadcast %200 : vector<1x256xf32> to vector<3x256xf32>
    %202 = arith.mulf %201, %189 : vector<3x256xf32>
    %203 = arith.addf %171, %202 : vector<3x256xf32>
    %cst_81 = arith.constant 1.000000e+00 : f32
    %204 = vector.broadcast %cst_81 : f32 to vector<1x256xf32>
    %205 = arith.subf %204, %199 : vector<1x256xf32>
    %206 = arith.mulf %174, %205 : vector<1x256xf32>
    %cst_82 = arith.constant 3.875000e+00 : f32
    %207 = vector.broadcast %cst_82 : f32 to vector<32x256xf32>
    %208 = arith.mulf %207, %5 : vector<32x256xf32>
    %209 = arith.addf %8, %208 : vector<32x256xf32>
    %cst_83 = arith.constant 0.000000e+00 : f32
    %210 = vector.broadcast %cst_83 : f32 to vector<32x256xf32>
    %211 = arith.maximumf %209, %210 : vector<32x256xf32>
    %cst_84 = arith.constant dense<0.000000e+00> : vector<4x256xf32>
    %212 = tpu.matmul %9, %211, %cst_84 {dimension_numbers = #tpu.dot_dimension_numbers<[1], [0], [0], [1], [0, 0, 1, 1], [], []>} : vector<4x32xf32>, vector<32x256xf32>, vector<4x256xf32> -> vector<4x256xf32>
    %213 = arith.addf %212, %12 : vector<4x256xf32>
    %214 = vector.extract_strided_slice %213 {offsets = [0, 0], sizes = [3, 256], strides = [1, 1]} : vector<4x256xf32> to vector<3x256xf32>
    %cst_85 = arith.constant 0.000000e+00 : f32
    %215 = vector.broadcast %cst_85 : f32 to vector<3x256xf32>
    %216 = arith.subf %215, %214 : vector<3x256xf32>
    %217 = math.exp %216 : vector<3x256xf32>
    %cst_86 = arith.constant 1.000000e+00 : f32
    %218 = vector.broadcast %cst_86 : f32 to vector<3x256xf32>
    %219 = arith.addf %218, %217 : vector<3x256xf32>
    %cst_87 = arith.constant 1.000000e+00 : f32
    %220 = vector.broadcast %cst_87 : f32 to vector<3x256xf32>
    %221 = arith.divf %220, %219 : vector<3x256xf32>
    %222 = vector.extract_strided_slice %213 {offsets = [3, 0], sizes = [1, 256], strides = [1, 1]} : vector<4x256xf32> to vector<1x256xf32>
    %cst_88 = arith.constant 0.000000e+00 : f32
    %223 = vector.broadcast %cst_88 : f32 to vector<1x256xf32>
    %224 = arith.maximumf %222, %223 : vector<1x256xf32>
    %cst_89 = arith.constant 0.000000e+00 : f32
    %225 = vector.broadcast %cst_89 : f32 to vector<1x256xf32>
    %226 = arith.subf %225, %224 : vector<1x256xf32>
    %cst_90 = arith.constant 2.500000e-01 : f32
    %227 = vector.broadcast %cst_90 : f32 to vector<1x256xf32>
    %228 = arith.mulf %226, %227 : vector<1x256xf32>
    %229 = math.exp %228 : vector<1x256xf32>
    %cst_91 = arith.constant 1.000000e+00 : f32
    %230 = vector.broadcast %cst_91 : f32 to vector<1x256xf32>
    %231 = arith.subf %230, %229 : vector<1x256xf32>
    %232 = arith.mulf %206, %231 : vector<1x256xf32>
    %233 = vector.broadcast %232 : vector<1x256xf32> to vector<3x256xf32>
    %234 = arith.mulf %233, %221 : vector<3x256xf32>
    %235 = arith.addf %203, %234 : vector<3x256xf32>
    %cst_92 = arith.constant 1.000000e+00 : f32
    %236 = vector.broadcast %cst_92 : f32 to vector<1x256xf32>
    %237 = arith.subf %236, %231 : vector<1x256xf32>
    %238 = arith.mulf %206, %237 : vector<1x256xf32>
    %cst_93 = arith.constant 4.250000e+00 : f32
    %239 = vector.broadcast %cst_93 : f32 to vector<32x256xf32>
    %240 = arith.mulf %239, %5 : vector<32x256xf32>
    %241 = arith.addf %8, %240 : vector<32x256xf32>
    %cst_94 = arith.constant 0.000000e+00 : f32
    %242 = vector.broadcast %cst_94 : f32 to vector<32x256xf32>
    %243 = arith.maximumf %241, %242 : vector<32x256xf32>
    %cst_95 = arith.constant dense<0.000000e+00> : vector<4x256xf32>
    %244 = tpu.matmul %9, %243, %cst_95 {dimension_numbers = #tpu.dot_dimension_numbers<[1], [0], [0], [1], [0, 0, 1, 1], [], []>} : vector<4x32xf32>, vector<32x256xf32>, vector<4x256xf32> -> vector<4x256xf32>
    %245 = arith.addf %244, %12 : vector<4x256xf32>
    %246 = vector.extract_strided_slice %245 {offsets = [0, 0], sizes = [3, 256], strides = [1, 1]} : vector<4x256xf32> to vector<3x256xf32>
    %cst_96 = arith.constant 0.000000e+00 : f32
    %247 = vector.broadcast %cst_96 : f32 to vector<3x256xf32>
    %248 = arith.subf %247, %246 : vector<3x256xf32>
    %249 = math.exp %248 : vector<3x256xf32>
    %cst_97 = arith.constant 1.000000e+00 : f32
    %250 = vector.broadcast %cst_97 : f32 to vector<3x256xf32>
    %251 = arith.addf %250, %249 : vector<3x256xf32>
    %cst_98 = arith.constant 1.000000e+00 : f32
    %252 = vector.broadcast %cst_98 : f32 to vector<3x256xf32>
    %253 = arith.divf %252, %251 : vector<3x256xf32>
    %254 = vector.extract_strided_slice %245 {offsets = [3, 0], sizes = [1, 256], strides = [1, 1]} : vector<4x256xf32> to vector<1x256xf32>
    %cst_99 = arith.constant 0.000000e+00 : f32
    %255 = vector.broadcast %cst_99 : f32 to vector<1x256xf32>
    %256 = arith.maximumf %254, %255 : vector<1x256xf32>
    %cst_100 = arith.constant 0.000000e+00 : f32
    %257 = vector.broadcast %cst_100 : f32 to vector<1x256xf32>
    %258 = arith.subf %257, %256 : vector<1x256xf32>
    %cst_101 = arith.constant 2.500000e-01 : f32
    %259 = vector.broadcast %cst_101 : f32 to vector<1x256xf32>
    %260 = arith.mulf %258, %259 : vector<1x256xf32>
    %261 = math.exp %260 : vector<1x256xf32>
    %cst_102 = arith.constant 1.000000e+00 : f32
    %262 = vector.broadcast %cst_102 : f32 to vector<1x256xf32>
    %263 = arith.subf %262, %261 : vector<1x256xf32>
    %264 = arith.mulf %238, %263 : vector<1x256xf32>
    %265 = vector.broadcast %264 : vector<1x256xf32> to vector<3x256xf32>
    %266 = arith.mulf %265, %253 : vector<3x256xf32>
    %267 = arith.addf %235, %266 : vector<3x256xf32>
    %cst_103 = arith.constant 1.000000e+00 : f32
    %268 = vector.broadcast %cst_103 : f32 to vector<1x256xf32>
    %269 = arith.subf %268, %263 : vector<1x256xf32>
    %270 = arith.mulf %238, %269 : vector<1x256xf32>
    %cst_104 = arith.constant 4.625000e+00 : f32
    %271 = vector.broadcast %cst_104 : f32 to vector<32x256xf32>
    %272 = arith.mulf %271, %5 : vector<32x256xf32>
    %273 = arith.addf %8, %272 : vector<32x256xf32>
    %cst_105 = arith.constant 0.000000e+00 : f32
    %274 = vector.broadcast %cst_105 : f32 to vector<32x256xf32>
    %275 = arith.maximumf %273, %274 : vector<32x256xf32>
    %cst_106 = arith.constant dense<0.000000e+00> : vector<4x256xf32>
    %276 = tpu.matmul %9, %275, %cst_106 {dimension_numbers = #tpu.dot_dimension_numbers<[1], [0], [0], [1], [0, 0, 1, 1], [], []>} : vector<4x32xf32>, vector<32x256xf32>, vector<4x256xf32> -> vector<4x256xf32>
    %277 = arith.addf %276, %12 : vector<4x256xf32>
    %278 = vector.extract_strided_slice %277 {offsets = [0, 0], sizes = [3, 256], strides = [1, 1]} : vector<4x256xf32> to vector<3x256xf32>
    %cst_107 = arith.constant 0.000000e+00 : f32
    %279 = vector.broadcast %cst_107 : f32 to vector<3x256xf32>
    %280 = arith.subf %279, %278 : vector<3x256xf32>
    %281 = math.exp %280 : vector<3x256xf32>
    %cst_108 = arith.constant 1.000000e+00 : f32
    %282 = vector.broadcast %cst_108 : f32 to vector<3x256xf32>
    %283 = arith.addf %282, %281 : vector<3x256xf32>
    %cst_109 = arith.constant 1.000000e+00 : f32
    %284 = vector.broadcast %cst_109 : f32 to vector<3x256xf32>
    %285 = arith.divf %284, %283 : vector<3x256xf32>
    %286 = vector.extract_strided_slice %277 {offsets = [3, 0], sizes = [1, 256], strides = [1, 1]} : vector<4x256xf32> to vector<1x256xf32>
    %cst_110 = arith.constant 0.000000e+00 : f32
    %287 = vector.broadcast %cst_110 : f32 to vector<1x256xf32>
    %288 = arith.maximumf %286, %287 : vector<1x256xf32>
    %cst_111 = arith.constant 0.000000e+00 : f32
    %289 = vector.broadcast %cst_111 : f32 to vector<1x256xf32>
    %290 = arith.subf %289, %288 : vector<1x256xf32>
    %cst_112 = arith.constant 2.500000e-01 : f32
    %291 = vector.broadcast %cst_112 : f32 to vector<1x256xf32>
    %292 = arith.mulf %290, %291 : vector<1x256xf32>
    %293 = math.exp %292 : vector<1x256xf32>
    %cst_113 = arith.constant 1.000000e+00 : f32
    %294 = vector.broadcast %cst_113 : f32 to vector<1x256xf32>
    %295 = arith.subf %294, %293 : vector<1x256xf32>
    %296 = arith.mulf %270, %295 : vector<1x256xf32>
    %297 = vector.broadcast %296 : vector<1x256xf32> to vector<3x256xf32>
    %298 = arith.mulf %297, %285 : vector<3x256xf32>
    %299 = arith.addf %267, %298 : vector<3x256xf32>
    %cst_114 = arith.constant 1.000000e+00 : f32
    %300 = vector.broadcast %cst_114 : f32 to vector<1x256xf32>
    %301 = arith.subf %300, %295 : vector<1x256xf32>
    %302 = arith.mulf %270, %301 : vector<1x256xf32>
    %cst_115 = arith.constant 5.000000e+00 : f32
    %303 = vector.broadcast %cst_115 : f32 to vector<32x256xf32>
    %304 = arith.mulf %303, %5 : vector<32x256xf32>
    %305 = arith.addf %8, %304 : vector<32x256xf32>
    %cst_116 = arith.constant 0.000000e+00 : f32
    %306 = vector.broadcast %cst_116 : f32 to vector<32x256xf32>
    %307 = arith.maximumf %305, %306 : vector<32x256xf32>
    %cst_117 = arith.constant dense<0.000000e+00> : vector<4x256xf32>
    %308 = tpu.matmul %9, %307, %cst_117 {dimension_numbers = #tpu.dot_dimension_numbers<[1], [0], [0], [1], [0, 0, 1, 1], [], []>} : vector<4x32xf32>, vector<32x256xf32>, vector<4x256xf32> -> vector<4x256xf32>
    %309 = arith.addf %308, %12 : vector<4x256xf32>
    %310 = vector.extract_strided_slice %309 {offsets = [0, 0], sizes = [3, 256], strides = [1, 1]} : vector<4x256xf32> to vector<3x256xf32>
    %cst_118 = arith.constant 0.000000e+00 : f32
    %311 = vector.broadcast %cst_118 : f32 to vector<3x256xf32>
    %312 = arith.subf %311, %310 : vector<3x256xf32>
    %313 = math.exp %312 : vector<3x256xf32>
    %cst_119 = arith.constant 1.000000e+00 : f32
    %314 = vector.broadcast %cst_119 : f32 to vector<3x256xf32>
    %315 = arith.addf %314, %313 : vector<3x256xf32>
    %cst_120 = arith.constant 1.000000e+00 : f32
    %316 = vector.broadcast %cst_120 : f32 to vector<3x256xf32>
    %317 = arith.divf %316, %315 : vector<3x256xf32>
    %318 = vector.extract_strided_slice %309 {offsets = [3, 0], sizes = [1, 256], strides = [1, 1]} : vector<4x256xf32> to vector<1x256xf32>
    %cst_121 = arith.constant 0.000000e+00 : f32
    %319 = vector.broadcast %cst_121 : f32 to vector<1x256xf32>
    %320 = arith.maximumf %318, %319 : vector<1x256xf32>
    %cst_122 = arith.constant 0.000000e+00 : f32
    %321 = vector.broadcast %cst_122 : f32 to vector<1x256xf32>
    %322 = arith.subf %321, %320 : vector<1x256xf32>
    %cst_123 = arith.constant 2.500000e-01 : f32
    %323 = vector.broadcast %cst_123 : f32 to vector<1x256xf32>
    %324 = arith.mulf %322, %323 : vector<1x256xf32>
    %325 = math.exp %324 : vector<1x256xf32>
    %cst_124 = arith.constant 1.000000e+00 : f32
    %326 = vector.broadcast %cst_124 : f32 to vector<1x256xf32>
    %327 = arith.subf %326, %325 : vector<1x256xf32>
    %328 = arith.mulf %302, %327 : vector<1x256xf32>
    %329 = vector.broadcast %328 : vector<1x256xf32> to vector<3x256xf32>
    %330 = arith.mulf %329, %317 : vector<3x256xf32>
    %331 = arith.addf %299, %330 : vector<3x256xf32>
    %cst_125 = arith.constant 1.000000e+00 : f32
    %332 = vector.broadcast %cst_125 : f32 to vector<1x256xf32>
    %333 = arith.subf %332, %327 : vector<1x256xf32>
    %334 = arith.mulf %302, %333 : vector<1x256xf32>
    %cst_126 = arith.constant 5.375000e+00 : f32
    %335 = vector.broadcast %cst_126 : f32 to vector<32x256xf32>
    %336 = arith.mulf %335, %5 : vector<32x256xf32>
    %337 = arith.addf %8, %336 : vector<32x256xf32>
    %cst_127 = arith.constant 0.000000e+00 : f32
    %338 = vector.broadcast %cst_127 : f32 to vector<32x256xf32>
    %339 = arith.maximumf %337, %338 : vector<32x256xf32>
    %cst_128 = arith.constant dense<0.000000e+00> : vector<4x256xf32>
    %340 = tpu.matmul %9, %339, %cst_128 {dimension_numbers = #tpu.dot_dimension_numbers<[1], [0], [0], [1], [0, 0, 1, 1], [], []>} : vector<4x32xf32>, vector<32x256xf32>, vector<4x256xf32> -> vector<4x256xf32>
    %341 = arith.addf %340, %12 : vector<4x256xf32>
    %342 = vector.extract_strided_slice %341 {offsets = [0, 0], sizes = [3, 256], strides = [1, 1]} : vector<4x256xf32> to vector<3x256xf32>
    %cst_129 = arith.constant 0.000000e+00 : f32
    %343 = vector.broadcast %cst_129 : f32 to vector<3x256xf32>
    %344 = arith.subf %343, %342 : vector<3x256xf32>
    %345 = math.exp %344 : vector<3x256xf32>
    %cst_130 = arith.constant 1.000000e+00 : f32
    %346 = vector.broadcast %cst_130 : f32 to vector<3x256xf32>
    %347 = arith.addf %346, %345 : vector<3x256xf32>
    %cst_131 = arith.constant 1.000000e+00 : f32
    %348 = vector.broadcast %cst_131 : f32 to vector<3x256xf32>
    %349 = arith.divf %348, %347 : vector<3x256xf32>
    %350 = vector.extract_strided_slice %341 {offsets = [3, 0], sizes = [1, 256], strides = [1, 1]} : vector<4x256xf32> to vector<1x256xf32>
    %cst_132 = arith.constant 0.000000e+00 : f32
    %351 = vector.broadcast %cst_132 : f32 to vector<1x256xf32>
    %352 = arith.maximumf %350, %351 : vector<1x256xf32>
    %cst_133 = arith.constant 0.000000e+00 : f32
    %353 = vector.broadcast %cst_133 : f32 to vector<1x256xf32>
    %354 = arith.subf %353, %352 : vector<1x256xf32>
    %cst_134 = arith.constant 2.500000e-01 : f32
    %355 = vector.broadcast %cst_134 : f32 to vector<1x256xf32>
    %356 = arith.mulf %354, %355 : vector<1x256xf32>
    %357 = math.exp %356 : vector<1x256xf32>
    %cst_135 = arith.constant 1.000000e+00 : f32
    %358 = vector.broadcast %cst_135 : f32 to vector<1x256xf32>
    %359 = arith.subf %358, %357 : vector<1x256xf32>
    %360 = arith.mulf %334, %359 : vector<1x256xf32>
    %361 = vector.broadcast %360 : vector<1x256xf32> to vector<3x256xf32>
    %362 = arith.mulf %361, %349 : vector<3x256xf32>
    %363 = arith.addf %331, %362 : vector<3x256xf32>
    %cst_136 = arith.constant 1.000000e+00 : f32
    %364 = vector.broadcast %cst_136 : f32 to vector<1x256xf32>
    %365 = arith.subf %364, %359 : vector<1x256xf32>
    %366 = arith.mulf %334, %365 : vector<1x256xf32>
    %cst_137 = arith.constant 5.750000e+00 : f32
    %367 = vector.broadcast %cst_137 : f32 to vector<32x256xf32>
    %368 = arith.mulf %367, %5 : vector<32x256xf32>
    %369 = arith.addf %8, %368 : vector<32x256xf32>
    %cst_138 = arith.constant 0.000000e+00 : f32
    %370 = vector.broadcast %cst_138 : f32 to vector<32x256xf32>
    %371 = arith.maximumf %369, %370 : vector<32x256xf32>
    %cst_139 = arith.constant dense<0.000000e+00> : vector<4x256xf32>
    %372 = tpu.matmul %9, %371, %cst_139 {dimension_numbers = #tpu.dot_dimension_numbers<[1], [0], [0], [1], [0, 0, 1, 1], [], []>} : vector<4x32xf32>, vector<32x256xf32>, vector<4x256xf32> -> vector<4x256xf32>
    %373 = arith.addf %372, %12 : vector<4x256xf32>
    %374 = vector.extract_strided_slice %373 {offsets = [0, 0], sizes = [3, 256], strides = [1, 1]} : vector<4x256xf32> to vector<3x256xf32>
    %cst_140 = arith.constant 0.000000e+00 : f32
    %375 = vector.broadcast %cst_140 : f32 to vector<3x256xf32>
    %376 = arith.subf %375, %374 : vector<3x256xf32>
    %377 = math.exp %376 : vector<3x256xf32>
    %cst_141 = arith.constant 1.000000e+00 : f32
    %378 = vector.broadcast %cst_141 : f32 to vector<3x256xf32>
    %379 = arith.addf %378, %377 : vector<3x256xf32>
    %cst_142 = arith.constant 1.000000e+00 : f32
    %380 = vector.broadcast %cst_142 : f32 to vector<3x256xf32>
    %381 = arith.divf %380, %379 : vector<3x256xf32>
    %382 = vector.extract_strided_slice %373 {offsets = [3, 0], sizes = [1, 256], strides = [1, 1]} : vector<4x256xf32> to vector<1x256xf32>
    %cst_143 = arith.constant 0.000000e+00 : f32
    %383 = vector.broadcast %cst_143 : f32 to vector<1x256xf32>
    %384 = arith.maximumf %382, %383 : vector<1x256xf32>
    %cst_144 = arith.constant 0.000000e+00 : f32
    %385 = vector.broadcast %cst_144 : f32 to vector<1x256xf32>
    %386 = arith.subf %385, %384 : vector<1x256xf32>
    %cst_145 = arith.constant 2.500000e-01 : f32
    %387 = vector.broadcast %cst_145 : f32 to vector<1x256xf32>
    %388 = arith.mulf %386, %387 : vector<1x256xf32>
    %389 = math.exp %388 : vector<1x256xf32>
    %cst_146 = arith.constant 1.000000e+00 : f32
    %390 = vector.broadcast %cst_146 : f32 to vector<1x256xf32>
    %391 = arith.subf %390, %389 : vector<1x256xf32>
    %392 = arith.mulf %366, %391 : vector<1x256xf32>
    %393 = vector.broadcast %392 : vector<1x256xf32> to vector<3x256xf32>
    %394 = arith.mulf %393, %381 : vector<3x256xf32>
    %395 = arith.addf %363, %394 : vector<3x256xf32>
    %cst_147 = arith.constant 1.000000e+00 : f32
    %396 = vector.broadcast %cst_147 : f32 to vector<1x256xf32>
    %397 = arith.subf %396, %391 : vector<1x256xf32>
    %398 = arith.mulf %366, %397 : vector<1x256xf32>
    %cst_148 = arith.constant 6.125000e+00 : f32
    %399 = vector.broadcast %cst_148 : f32 to vector<32x256xf32>
    %400 = arith.mulf %399, %5 : vector<32x256xf32>
    %401 = arith.addf %8, %400 : vector<32x256xf32>
    %cst_149 = arith.constant 0.000000e+00 : f32
    %402 = vector.broadcast %cst_149 : f32 to vector<32x256xf32>
    %403 = arith.maximumf %401, %402 : vector<32x256xf32>
    %cst_150 = arith.constant dense<0.000000e+00> : vector<4x256xf32>
    %404 = tpu.matmul %9, %403, %cst_150 {dimension_numbers = #tpu.dot_dimension_numbers<[1], [0], [0], [1], [0, 0, 1, 1], [], []>} : vector<4x32xf32>, vector<32x256xf32>, vector<4x256xf32> -> vector<4x256xf32>
    %405 = arith.addf %404, %12 : vector<4x256xf32>
    %406 = vector.extract_strided_slice %405 {offsets = [0, 0], sizes = [3, 256], strides = [1, 1]} : vector<4x256xf32> to vector<3x256xf32>
    %cst_151 = arith.constant 0.000000e+00 : f32
    %407 = vector.broadcast %cst_151 : f32 to vector<3x256xf32>
    %408 = arith.subf %407, %406 : vector<3x256xf32>
    %409 = math.exp %408 : vector<3x256xf32>
    %cst_152 = arith.constant 1.000000e+00 : f32
    %410 = vector.broadcast %cst_152 : f32 to vector<3x256xf32>
    %411 = arith.addf %410, %409 : vector<3x256xf32>
    %cst_153 = arith.constant 1.000000e+00 : f32
    %412 = vector.broadcast %cst_153 : f32 to vector<3x256xf32>
    %413 = arith.divf %412, %411 : vector<3x256xf32>
    %414 = vector.extract_strided_slice %405 {offsets = [3, 0], sizes = [1, 256], strides = [1, 1]} : vector<4x256xf32> to vector<1x256xf32>
    %cst_154 = arith.constant 0.000000e+00 : f32
    %415 = vector.broadcast %cst_154 : f32 to vector<1x256xf32>
    %416 = arith.maximumf %414, %415 : vector<1x256xf32>
    %cst_155 = arith.constant 0.000000e+00 : f32
    %417 = vector.broadcast %cst_155 : f32 to vector<1x256xf32>
    %418 = arith.subf %417, %416 : vector<1x256xf32>
    %cst_156 = arith.constant 2.500000e-01 : f32
    %419 = vector.broadcast %cst_156 : f32 to vector<1x256xf32>
    %420 = arith.mulf %418, %419 : vector<1x256xf32>
    %421 = math.exp %420 : vector<1x256xf32>
    %cst_157 = arith.constant 1.000000e+00 : f32
    %422 = vector.broadcast %cst_157 : f32 to vector<1x256xf32>
    %423 = arith.subf %422, %421 : vector<1x256xf32>
    %424 = arith.mulf %398, %423 : vector<1x256xf32>
    %425 = vector.broadcast %424 : vector<1x256xf32> to vector<3x256xf32>
    %426 = arith.mulf %425, %413 : vector<3x256xf32>
    %427 = arith.addf %395, %426 : vector<3x256xf32>
    %cst_158 = arith.constant 1.000000e+00 : f32
    %428 = vector.broadcast %cst_158 : f32 to vector<1x256xf32>
    %429 = arith.subf %428, %423 : vector<1x256xf32>
    %430 = arith.mulf %398, %429 : vector<1x256xf32>
    %cst_159 = arith.constant 6.500000e+00 : f32
    %431 = vector.broadcast %cst_159 : f32 to vector<32x256xf32>
    %432 = arith.mulf %431, %5 : vector<32x256xf32>
    %433 = arith.addf %8, %432 : vector<32x256xf32>
    %cst_160 = arith.constant 0.000000e+00 : f32
    %434 = vector.broadcast %cst_160 : f32 to vector<32x256xf32>
    %435 = arith.maximumf %433, %434 : vector<32x256xf32>
    %cst_161 = arith.constant dense<0.000000e+00> : vector<4x256xf32>
    %436 = tpu.matmul %9, %435, %cst_161 {dimension_numbers = #tpu.dot_dimension_numbers<[1], [0], [0], [1], [0, 0, 1, 1], [], []>} : vector<4x32xf32>, vector<32x256xf32>, vector<4x256xf32> -> vector<4x256xf32>
    %437 = arith.addf %436, %12 : vector<4x256xf32>
    %438 = vector.extract_strided_slice %437 {offsets = [0, 0], sizes = [3, 256], strides = [1, 1]} : vector<4x256xf32> to vector<3x256xf32>
    %cst_162 = arith.constant 0.000000e+00 : f32
    %439 = vector.broadcast %cst_162 : f32 to vector<3x256xf32>
    %440 = arith.subf %439, %438 : vector<3x256xf32>
    %441 = math.exp %440 : vector<3x256xf32>
    %cst_163 = arith.constant 1.000000e+00 : f32
    %442 = vector.broadcast %cst_163 : f32 to vector<3x256xf32>
    %443 = arith.addf %442, %441 : vector<3x256xf32>
    %cst_164 = arith.constant 1.000000e+00 : f32
    %444 = vector.broadcast %cst_164 : f32 to vector<3x256xf32>
    %445 = arith.divf %444, %443 : vector<3x256xf32>
    %446 = vector.extract_strided_slice %437 {offsets = [3, 0], sizes = [1, 256], strides = [1, 1]} : vector<4x256xf32> to vector<1x256xf32>
    %cst_165 = arith.constant 0.000000e+00 : f32
    %447 = vector.broadcast %cst_165 : f32 to vector<1x256xf32>
    %448 = arith.maximumf %446, %447 : vector<1x256xf32>
    %cst_166 = arith.constant 0.000000e+00 : f32
    %449 = vector.broadcast %cst_166 : f32 to vector<1x256xf32>
    %450 = arith.subf %449, %448 : vector<1x256xf32>
    %cst_167 = arith.constant 2.500000e-01 : f32
    %451 = vector.broadcast %cst_167 : f32 to vector<1x256xf32>
    %452 = arith.mulf %450, %451 : vector<1x256xf32>
    %453 = math.exp %452 : vector<1x256xf32>
    %cst_168 = arith.constant 1.000000e+00 : f32
    %454 = vector.broadcast %cst_168 : f32 to vector<1x256xf32>
    %455 = arith.subf %454, %453 : vector<1x256xf32>
    %456 = arith.mulf %430, %455 : vector<1x256xf32>
    %457 = vector.broadcast %456 : vector<1x256xf32> to vector<3x256xf32>
    %458 = arith.mulf %457, %445 : vector<3x256xf32>
    %459 = arith.addf %427, %458 : vector<3x256xf32>
    %cst_169 = arith.constant 1.000000e+00 : f32
    %460 = vector.broadcast %cst_169 : f32 to vector<1x256xf32>
    %461 = arith.subf %460, %455 : vector<1x256xf32>
    %462 = arith.mulf %430, %461 : vector<1x256xf32>
    %cst_170 = arith.constant 6.875000e+00 : f32
    %463 = vector.broadcast %cst_170 : f32 to vector<32x256xf32>
    %464 = arith.mulf %463, %5 : vector<32x256xf32>
    %465 = arith.addf %8, %464 : vector<32x256xf32>
    %cst_171 = arith.constant 0.000000e+00 : f32
    %466 = vector.broadcast %cst_171 : f32 to vector<32x256xf32>
    %467 = arith.maximumf %465, %466 : vector<32x256xf32>
    %cst_172 = arith.constant dense<0.000000e+00> : vector<4x256xf32>
    %468 = tpu.matmul %9, %467, %cst_172 {dimension_numbers = #tpu.dot_dimension_numbers<[1], [0], [0], [1], [0, 0, 1, 1], [], []>} : vector<4x32xf32>, vector<32x256xf32>, vector<4x256xf32> -> vector<4x256xf32>
    %469 = arith.addf %468, %12 : vector<4x256xf32>
    %470 = vector.extract_strided_slice %469 {offsets = [0, 0], sizes = [3, 256], strides = [1, 1]} : vector<4x256xf32> to vector<3x256xf32>
    %cst_173 = arith.constant 0.000000e+00 : f32
    %471 = vector.broadcast %cst_173 : f32 to vector<3x256xf32>
    %472 = arith.subf %471, %470 : vector<3x256xf32>
    %473 = math.exp %472 : vector<3x256xf32>
    %cst_174 = arith.constant 1.000000e+00 : f32
    %474 = vector.broadcast %cst_174 : f32 to vector<3x256xf32>
    %475 = arith.addf %474, %473 : vector<3x256xf32>
    %cst_175 = arith.constant 1.000000e+00 : f32
    %476 = vector.broadcast %cst_175 : f32 to vector<3x256xf32>
    %477 = arith.divf %476, %475 : vector<3x256xf32>
    %478 = vector.extract_strided_slice %469 {offsets = [3, 0], sizes = [1, 256], strides = [1, 1]} : vector<4x256xf32> to vector<1x256xf32>
    %cst_176 = arith.constant 0.000000e+00 : f32
    %479 = vector.broadcast %cst_176 : f32 to vector<1x256xf32>
    %480 = arith.maximumf %478, %479 : vector<1x256xf32>
    %cst_177 = arith.constant 0.000000e+00 : f32
    %481 = vector.broadcast %cst_177 : f32 to vector<1x256xf32>
    %482 = arith.subf %481, %480 : vector<1x256xf32>
    %cst_178 = arith.constant 2.500000e-01 : f32
    %483 = vector.broadcast %cst_178 : f32 to vector<1x256xf32>
    %484 = arith.mulf %482, %483 : vector<1x256xf32>
    %485 = math.exp %484 : vector<1x256xf32>
    %cst_179 = arith.constant 1.000000e+00 : f32
    %486 = vector.broadcast %cst_179 : f32 to vector<1x256xf32>
    %487 = arith.subf %486, %485 : vector<1x256xf32>
    %488 = arith.mulf %462, %487 : vector<1x256xf32>
    %489 = vector.broadcast %488 : vector<1x256xf32> to vector<3x256xf32>
    %490 = arith.mulf %489, %477 : vector<3x256xf32>
    %491 = arith.addf %459, %490 : vector<3x256xf32>
    %cst_180 = arith.constant 1.000000e+00 : f32
    %492 = vector.broadcast %cst_180 : f32 to vector<1x256xf32>
    %493 = arith.subf %492, %487 : vector<1x256xf32>
    %494 = arith.mulf %462, %493 : vector<1x256xf32>
    %cst_181 = arith.constant 7.250000e+00 : f32
    %495 = vector.broadcast %cst_181 : f32 to vector<32x256xf32>
    %496 = arith.mulf %495, %5 : vector<32x256xf32>
    %497 = arith.addf %8, %496 : vector<32x256xf32>
    %cst_182 = arith.constant 0.000000e+00 : f32
    %498 = vector.broadcast %cst_182 : f32 to vector<32x256xf32>
    %499 = arith.maximumf %497, %498 : vector<32x256xf32>
    %cst_183 = arith.constant dense<0.000000e+00> : vector<4x256xf32>
    %500 = tpu.matmul %9, %499, %cst_183 {dimension_numbers = #tpu.dot_dimension_numbers<[1], [0], [0], [1], [0, 0, 1, 1], [], []>} : vector<4x32xf32>, vector<32x256xf32>, vector<4x256xf32> -> vector<4x256xf32>
    %501 = arith.addf %500, %12 : vector<4x256xf32>
    %502 = vector.extract_strided_slice %501 {offsets = [0, 0], sizes = [3, 256], strides = [1, 1]} : vector<4x256xf32> to vector<3x256xf32>
    %cst_184 = arith.constant 0.000000e+00 : f32
    %503 = vector.broadcast %cst_184 : f32 to vector<3x256xf32>
    %504 = arith.subf %503, %502 : vector<3x256xf32>
    %505 = math.exp %504 : vector<3x256xf32>
    %cst_185 = arith.constant 1.000000e+00 : f32
    %506 = vector.broadcast %cst_185 : f32 to vector<3x256xf32>
    %507 = arith.addf %506, %505 : vector<3x256xf32>
    %cst_186 = arith.constant 1.000000e+00 : f32
    %508 = vector.broadcast %cst_186 : f32 to vector<3x256xf32>
    %509 = arith.divf %508, %507 : vector<3x256xf32>
    %510 = vector.extract_strided_slice %501 {offsets = [3, 0], sizes = [1, 256], strides = [1, 1]} : vector<4x256xf32> to vector<1x256xf32>
    %cst_187 = arith.constant 0.000000e+00 : f32
    %511 = vector.broadcast %cst_187 : f32 to vector<1x256xf32>
    %512 = arith.maximumf %510, %511 : vector<1x256xf32>
    %cst_188 = arith.constant 0.000000e+00 : f32
    %513 = vector.broadcast %cst_188 : f32 to vector<1x256xf32>
    %514 = arith.subf %513, %512 : vector<1x256xf32>
    %cst_189 = arith.constant 2.500000e-01 : f32
    %515 = vector.broadcast %cst_189 : f32 to vector<1x256xf32>
    %516 = arith.mulf %514, %515 : vector<1x256xf32>
    %517 = math.exp %516 : vector<1x256xf32>
    %cst_190 = arith.constant 1.000000e+00 : f32
    %518 = vector.broadcast %cst_190 : f32 to vector<1x256xf32>
    %519 = arith.subf %518, %517 : vector<1x256xf32>
    %520 = arith.mulf %494, %519 : vector<1x256xf32>
    %521 = vector.broadcast %520 : vector<1x256xf32> to vector<3x256xf32>
    %522 = arith.mulf %521, %509 : vector<3x256xf32>
    %523 = arith.addf %491, %522 : vector<3x256xf32>
    %c0_191 = arith.constant 0 : index
    %c0_192 = arith.constant 0 : index
    %524 = vector.load %arg7[%c0_191, %c0_192] : memref<3x256xf32, #tpu.memory_space<vmem>>, vector<3x256xf32>
    tpu.vector_store %arg7[%c0_191, %c0_192], %523 {strides = array<i32>} : memref<3x256xf32, #tpu.memory_space<vmem>>, vector<3x256xf32>,
    return
  }
  func.func @transform_0(%arg0: i32) -> (i32, i32) {
    %c0_i32 = arith.constant 0 : i32
    %c0_i32_0 = arith.constant 0 : i32
    return %c0_i32, %arg0 : i32, i32
  }
  func.func @transform_1(%arg0: i32) -> (i32, i32) {
    %c0_i32 = arith.constant 0 : i32
    %c0_i32_0 = arith.constant 0 : i32
    return %c0_i32, %arg0 : i32, i32
  }
  func.func @transform_2(%arg0: i32) -> (i32, i32) {
    %c0_i32 = arith.constant 0 : i32
    %c0_i32_0 = arith.constant 0 : i32
    %c0_i32_1 = arith.constant 0 : i32
    return %c0_i32, %c0_i32_0 : i32, i32
  }
  func.func @transform_3(%arg0: i32) -> (i32, i32) {
    %c0_i32 = arith.constant 0 : i32
    %c0_i32_0 = arith.constant 0 : i32
    %c0_i32_1 = arith.constant 0 : i32
    return %c0_i32, %c0_i32_0 : i32, i32
  }
  func.func @transform_4(%arg0: i32) -> (i32, i32) {
    %c0_i32 = arith.constant 0 : i32
    %c0_i32_0 = arith.constant 0 : i32
    %c0_i32_1 = arith.constant 0 : i32
    return %c0_i32, %c0_i32_0 : i32, i32
  }
  func.func @transform_5(%arg0: i32) -> (i32, i32) {
    %c0_i32 = arith.constant 0 : i32
    %c0_i32_0 = arith.constant 0 : i32
    %c0_i32_1 = arith.constant 0 : i32
    return %c0_i32, %c0_i32_0 : i32, i32
  }
  func.func @transform_6(%arg0: i32) -> (i32, i32) {
    %c0_i32 = arith.constant 0 : i32
    %c0_i32_0 = arith.constant 0 : i32
    return %c0_i32, %arg0 : i32, i32
  }
}

</mosaic_0001>

<llo_original>
// kernel: tpu_custom_call.1
$region0: #{tpu_custom_call.1}
  #allocation0 [shape = 'u32[]', space=smem, size = 0x4, offset = 0x4, fixed_abs, tag = 'smem constant byte address 0x4 - core index']
  #allocation1 [shape = 'u32[144,128]{1,0:T(1,128)}', space=vmem, size = 0x12000, scoped, tag = 'internal scratch']
  %s0 = inlined_call_operand.vmem [shape: f32[3,512], index: 0, kind: input, shape index: {}]
  %s1 = inlined_call_operand.vmem [shape: f32[3,512], index: 1, kind: input, shape index: {}]
  %s2 = inlined_call_operand.vmem [shape: f32[32,3], index: 2, kind: input, shape index: {}]
  %s3 = inlined_call_operand.vmem [shape: f32[32,1], index: 3, kind: input, shape index: {}]
  %s4 = inlined_call_operand.vmem [shape: f32[4,32], index: 4, kind: input, shape index: {}]
  %s5 = inlined_call_operand.vmem [shape: f32[4,1], index: 5, kind: input, shape index: {}]
  %s6 = inlined_call_operand.hbm [shape: f32[3,512], index: 6, kind: output, shape index: {}]
  %s7 = sld [smem:[#allocation0]]
  $region57: #{tpu_custom_call.1} parent=0
    _
  %s9 = ssub.s32 1, %s7
  %s10 = scalar_select 0, %s9, %s7
  $region1: #{tpu_custom_call.1} parent=0
    #allocation2 [shape = 'u8[8192]{0}', space=vmem, size = 0x2000, scoped, tag = 'output window, operand 0']
    #allocation3 [shape = 's32[2]{0}', space=sflag, size = 0x8, scoped, tag = 'scoped memory for tpu_custom_call.1']
    %11 = vsyncpa [#allocation3], 0
    %s12 = scalar_lea.sflag [#allocation3], 1
    %13 = vsyncpa %s12, 0
    loop: start=0, step=1, limit=4
    $region2: #{tpu_custom_call.1} parent=1 // loop_pre_header
      _
    $region3: #{tpu_custom_call.1} parent=1 // loop_header
      %s15 = sphi 0, %s19
      %p16 = scmp.ge.s32.totalorder %s15, 4
      %s25 = sphi 0, %s27
      %s28 = sphi 0, %s25
      %s29 = sphi 0, %s28
      %s45 = sphi 0, %s29
      %s51 = sphi 0, %s53
      %s54 = sphi 0, %s51
      %s55 = sphi 0, %s54
      %s71 = sphi 0, %s55
      %s75 = sphi 0, %s75
      %s77 = sphi 0, %s75
      %s78 = sphi 0, %s77
      %s92 = sphi 0, %s78
      %s96 = sphi 0, %s96
      %s98 = sphi 0, %s96
      %s99 = sphi 0, %s98
      %s113 = sphi 0, %s99
      %s117 = sphi 0, %s117
      %s119 = sphi 0, %s117
      %s120 = sphi 0, %s119
      %s134 = sphi 0, %s120
      %s138 = sphi 0, %s138
      %s140 = sphi 0, %s138
      %s141 = sphi 0, %s140
      %s155 = sphi 0, %s141
      %s161 = sphi 0, %s163
      %s164 = sphi 0, %s161
      %s165 = sphi 0, %s164
      %s181 = sphi 0, %s165
    $region4: #{tpu_custom_call.1} parent=1 // loop_header_branch
      %18 = sbr.rel (%p16) target = $region8
    $region5: #{tpu_custom_call.1} parent=1 // loop_body
      %s20 = ssub.s32 %s15, 1
      %s21 = ssub.s32 %s15, 2
      %s22 = sadd.s32 %s15, 1
      %s23 = ssub.s32 %s15, %s22
      %p24 = scmp.eq.s32.totalorder %s23, 0
      %s26 = sadd.s32 %s25, 1
      %s27 = scalar_select %p24, %s25, %s26
      %p30 = pneg %p24
      %p31 = scmp.eq.s32.totalorder %s15, 1
      %p32 = por %p30, %p31
      %p33 = scmp.ne.s32.totalorder %s25, %s28
      %p34 = scmp.eq.s32.totalorder %s15, 0
      %p35 = por %p33, %p34
      %p36 = scmp.ne.s32.totalorder %s25, %s28
      %p37 = scmp.eq.s32.totalorder %s20, 1
      %p38 = por %p36, %p37
      %p39 = scmp.ne.s32.totalorder %s28, %s29
      %p40 = scmp.eq.s32.totalorder %s20, 0
      %p41 = por %p39, %p40
      %p42 = scmp.ne.s32.totalorder %s28, %s29
      %p43 = scmp.eq.s32.totalorder %s21, 1
      %p44 = por %p42, %p43
      %p46 = scmp.ne.s32.totalorder %s29, %s45
      %p47 = scmp.eq.s32.totalorder %s21, 0
      %p48 = por %p46, %p47
      %s49 = ssub.s32 %s15, %s22
      %p50 = scmp.eq.s32.totalorder %s49, 0
      %s52 = sadd.s32 %s51, 1
      %s53 = scalar_select %p50, %s51, %s52
      %p56 = pneg %p50
      %p57 = scmp.eq.s32.totalorder %s15, 1
      %p58 = por %p56, %p57
      %p59 = scmp.ne.s32.totalorder %s51, %s54
      %p60 = scmp.eq.s32.totalorder %s15, 0
      %p61 = por %p59, %p60
      %p62 = scmp.ne.s32.totalorder %s51, %s54
      %p63 = scmp.eq.s32.totalorder %s20, 1
      %p64 = por %p62, %p63
      %p65 = scmp.ne.s32.totalorder %s54, %s55
      %p66 = scmp.eq.s32.totalorder %s20, 0
      %p67 = por %p65, %p66
      %p68 = scmp.ne.s32.totalorder %s54, %s55
      %p69 = scmp.eq.s32.totalorder %s21, 1
      %p70 = por %p68, %p69
      %p72 = scmp.ne.s32.totalorder %s55, %s71
      %p73 = scmp.eq.s32.totalorder %s21, 0
      %p74 = por %p72, %p73
      %s76 = sadd.s32 %s75, 1
      %p79 = scmp.eq.s32.totalorder %s15, 1
      %p80 = scmp.ne.s32.totalorder %s75, %s77
      %p81 = scmp.eq.s32.totalorder %s15, 0
      %p82 = por %p80, %p81
      %p83 = scmp.ne.s32.totalorder %s75, %s77
      %p84 = scmp.eq.s32.totalorder %s20, 1
      %p85 = por %p83, %p84
      %p86 = scmp.ne.s32.totalorder %s77, %s78
      %p87 = scmp.eq.s32.totalorder %s20, 0
      %p88 = por %p86, %p87
      %p89 = scmp.ne.s32.totalorder %s77, %s78
      %p90 = scmp.eq.s32.totalorder %s21, 1
      %p91 = por %p89, %p90
      %p93 = scmp.ne.s32.totalorder %s78, %s92
      %p94 = scmp.eq.s32.totalorder %s21, 0
      %p95 = por %p93, %p94
      %s97 = sadd.s32 %s96, 1
      %p100 = scmp.eq.s32.totalorder %s15, 1
      %p101 = scmp.ne.s32.totalorder %s96, %s98
      %p102 = scmp.eq.s32.totalorder %s15, 0
      %p103 = por %p101, %p102
      %p104 = scmp.ne.s32.totalorder %s96, %s98
      %p105 = scmp.eq.s32.totalorder %s20, 1
      %p106 = por %p104, %p105
      %p107 = scmp.ne.s32.totalorder %s98, %s99
      %p108 = scmp.eq.s32.totalorder %s20, 0
      %p109 = por %p107, %p108
      %p110 = scmp.ne.s32.totalorder %s98, %s99
      %p111 = scmp.eq.s32.totalorder %s21, 1
      %p112 = por %p110, %p111
      %p114 = scmp.ne.s32.totalorder %s99, %s113
      %p115 = scmp.eq.s32.totalorder %s21, 0
      %p116 = por %p114, %p115
      %s118 = sadd.s32 %s117, 1
      %p121 = scmp.eq.s32.totalorder %s15, 1
      %p122 = scmp.ne.s32.totalorder %s117, %s119
      %p123 = scmp.eq.s32.totalorder %s15, 0
      %p124 = por %p122, %p123
      %p125 = scmp.ne.s32.totalorder %s117, %s119
      %p126 = scmp.eq.s32.totalorder %s20, 1
      %p127 = por %p125, %p126
      %p128 = scmp.ne.s32.totalorder %s119, %s120
      %p129 = scmp.eq.s32.totalorder %s20, 0
      %p130 = por %p128, %p129
      %p131 = scmp.ne.s32.totalorder %s119, %s120
      %p132 = scmp.eq.s32.totalorder %s21, 1
      %p133 = por %p131, %p132
      %p135 = scmp.ne.s32.totalorder %s120, %s134
      %p136 = scmp.eq.s32.totalorder %s21, 0
      %p137 = por %p135, %p136
      %s139 = sadd.s32 %s138, 1
      %p142 = scmp.eq.s32.totalorder %s15, 1
      %p143 = scmp.ne.s32.totalorder %s138, %s140
      %p144 = scmp.eq.s32.totalorder %s15, 0
      %p145 = por %p143, %p144
      %p146 = scmp.ne.s32.totalorder %s138, %s140
      %p147 = scmp.eq.s32.totalorder %s20, 1
      %p148 = por %p146, %p147
      %p149 = scmp.ne.s32.totalorder %s140, %s141
      %p150 = scmp.eq.s32.totalorder %s20, 0
      %p151 = por %p149, %p150
      %p152 = scmp.ne.s32.totalorder %s140, %s141
      %p153 = scmp.eq.s32.totalorder %s21, 1
      %p154 = por %p152, %p153
      %p156 = scmp.ne.s32.totalorder %s141, %s155
      %p157 = scmp.eq.s32.totalorder %s21, 0
      %p158 = por %p156, %p157
      %s159 = ssub.s32 %s15, %s22
      %p160 = scmp.eq.s32.totalorder %s159, 0
      %s162 = sadd.s32 %s161, 1
      %s163 = scalar_select %p160, %s161, %s162
      %p166 = pneg %p160
      %p167 = scmp.eq.s32.totalorder %s15, 1
      %p168 = por %p166, %p167
      %p169 = scmp.ne.s32.totalorder %s161, %s164
      %p170 = scmp.eq.s32.totalorder %s15, 0
      %p171 = por %p169, %p170
      %p172 = scmp.ne.s32.totalorder %s161, %s164
      %p173 = scmp.eq.s32.totalorder %s20, 1
      %p174 = por %p172, %p173
      %p175 = scmp.ne.s32.totalorder %s164, %s165
      %p176 = scmp.eq.s32.totalorder %s20, 0
      %p177 = por %p175, %p176
      %p178 = scmp.ne.s32.totalorder %s164, %s165
      %p179 = scmp.eq.s32.totalorder %s21, 1
      %p180 = por %p178, %p179
      %p182 = scmp.ne.s32.totalorder %s165, %s181
      %p183 = scmp.eq.s32.totalorder %s21, 0
      %p184 = por %p182, %p183
      %p185 = scmp.le.s32.totalorder 1, %s15
      %p186 = scmp.lt.s32.totalorder %s15, 3
      %p187 = pnand %p185, %p186
      %p188 = pneg %p187
      // Predicated region
      $region9: #{tpu_custom_call.1} parent=5 // pred_check
        _
      $region10: #{tpu_custom_call.1} parent=5 // pred_check_branch
        %190 = sbr.rel (%p187) target = $region12
      $region11: #{tpu_custom_call.1} parent=5 // pred_region
        %s191 = ssub.s32 %s15, 1
        // Predicated region
        $region13: #{tpu_custom_call.1} parent=11 // pred_check
          %p192 = pneg %p88
        $region14: #{tpu_custom_call.1} parent=11 // pred_check_branch
          %194 = sbr.rel (%p192) target = $region16
        $region15: #{tpu_custom_call.1} parent=11 // pred_region
          _
        $region16: #{tpu_custom_call.1} parent=11 // pred_fallthru
          _
        // Predicated region
        $region17: #{tpu_custom_call.1} parent=11 // pred_check
          %p195 = pneg %p109
        $region18: #{tpu_custom_call.1} parent=11 // pred_check_branch
          %197 = sbr.rel (%p195) target = $region20
        $region19: #{tpu_custom_call.1} parent=11 // pred_region
          _
        $region20: #{tpu_custom_call.1} parent=11 // pred_fallthru
          _
        // Predicated region
        $region21: #{tpu_custom_call.1} parent=11 // pred_check
          %p198 = pneg %p130
        $region22: #{tpu_custom_call.1} parent=11 // pred_check_branch
          %200 = sbr.rel (%p198) target = $region24
        $region23: #{tpu_custom_call.1} parent=11 // pred_region
          _
        $region24: #{tpu_custom_call.1} parent=11 // pred_fallthru
          _
        // Predicated region
        $region25: #{tpu_custom_call.1} parent=11 // pred_check
          %p201 = pneg %p151
        $region26: #{tpu_custom_call.1} parent=11 // pred_check_branch
          %203 = sbr.rel (%p201) target = $region28
        $region27: #{tpu_custom_call.1} parent=11 // pred_region
          _
        $region28: #{tpu_custom_call.1} parent=11 // pred_fallthru
          _
      $region12: #{tpu_custom_call.1} parent=5 // pred_fallthru
        _
      %p204 = scmp.lt.s32.totalorder %s15, 2
      // Predicated region
      $region29: #{tpu_custom_call.1} parent=5 // pred_check
        %p205 = pneg %p204
      $region30: #{tpu_custom_call.1} parent=5 // pred_check_branch
        %207 = sbr.rel (%p205) target = $region32
      $region31: #{tpu_custom_call.1} parent=5 // pred_region
        // Predicated region
        $region33: #{tpu_custom_call.1} parent=31 // pred_check
          %p208 = pneg %p35
        $region34: #{tpu_custom_call.1} parent=31 // pred_check_branch
          %210 = sbr.rel (%p208) target = $region36
        $region35: #{tpu_custom_call.1} parent=31 // pred_region
          %s211 = smul.u32 2, %s15
          %p212 = scmp.lt.s32.totalorder %s211, 3
          %s213 = scalar_select %p212, %s211, 3
          %s214 = smul.addr %s213, 4
          %s215 = scalar_lea.vmem %s0, %s214
          %s216 = smul.u32 2, %s15
        $region36: #{tpu_custom_call.1} parent=31 // pred_fallthru
          _
        // Predicated region
        $region37: #{tpu_custom_call.1} parent=31 // pred_check
          %p217 = pneg %p61
        $region38: #{tpu_custom_call.1} parent=31 // pred_check_branch
          %219 = sbr.rel (%p217) target = $region40
        $region39: #{tpu_custom_call.1} parent=31 // pred_region
          %s220 = smul.u32 2, %s15
          %p221 = scmp.lt.s32.totalorder %s220, 3
          %s222 = scalar_select %p221, %s220, 3
          %s223 = smul.addr %s222, 4
          %s224 = scalar_lea.vmem %s1, %s223
          %s225 = smul.u32 2, %s15
        $region40: #{tpu_custom_call.1} parent=31 // pred_fallthru
          _
      $region32: #{tpu_custom_call.1} parent=5 // pred_fallthru
        _
      %p226 = scmp.le.s32.totalorder 1, %s15
      %p227 = scmp.lt.s32.totalorder %s15, 3
      %p228 = pnand %p226, %p227
      %p229 = pneg %p228
      // Predicated region
      $region41: #{tpu_custom_call.1} parent=5 // pred_check
        _
      $region42: #{tpu_custom_call.1} parent=5 // pred_check_branch
        %231 = sbr.rel (%p228) target = $region44
      $region43: #{tpu_custom_call.1} parent=5 // pred_region
        %s232 = ssub.s32 %s15, 1
        %s233 = smul.u32 2, %s20
        %p234 = scmp.lt.s32.totalorder %s233, 3
        %s235 = scalar_select %p234, %s233, 3
        %s236 = smul.addr %s235, 4
        %s237 = scalar_lea.vmem %s0, %s236
        %p238 = pneg %p41
        %p239 = pneg %p38
        %s240 = smul.u32 2, %s20
        %p241 = scmp.lt.s32.totalorder %s240, 3
        %s242 = scalar_select %p241, %s240, 3
        %s243 = smul.addr %s242, 4
        %s244 = scalar_lea.vmem %s1, %s243
        %p245 = pneg %p67
        %p246 = pneg %p64
        %p247 = pneg %p88
        %p248 = pneg %p85
        %p249 = pneg %p109
        %p250 = pneg %p106
        %p251 = pneg %p130
        %p252 = pneg %p127
        %p253 = pneg %p151
        %p254 = pneg %p148
        %p255 = pneg %p177
        %p256 = pneg %p174
        %s257 = sand.u32 %s164, 1
        %s258 = scalar_lea.sflag [#allocation3], %s257
        %s259 = sand.u32 %s164, 1
        %s260 = smul.addr %s259, 8
        %s261 = scalar_lea.vmem [#allocation2], %s260
        %s262 = smul.u32 2, %s20
        %p263 = scmp.lt.s32.totalorder %s262, 3
        %s264 = scalar_select %p263, %s262, 3
        %s265 = smul.addr %s264, 4
        %s266 = scalar_lea.vmem %s0, %s265
        %s267 = smul.u32 2, %s20
        %s268 = smul.u32 2, %s20
        %p269 = scmp.lt.s32.totalorder %s268, 3
        %s270 = scalar_select %p269, %s268, 3
        %s271 = smul.addr %s270, 4
        %s272 = scalar_lea.vmem %s1, %s271
        %s273 = smul.u32 2, %s20
        %s274 = smul.u32 2, %s20
        %v275 = vld [vmem:[%s2] sm:$0xff]
        %v276 = vld [vmem:[%s2 + $0x8] sm:$0xff]
        %v277 = vld [vmem:[%s2 + $0x10] sm:$0xff]
        %v278 = vld [vmem:[%s2 + $0x18] sm:$0xff]
        %v279 = vld [vmem:[%s266] sm:$0x77]
        %v280 = vld [vmem:[%s272] sm:$0x77]
        %v282 = vcombine.high %v280, %v280
        %vm283 = vcmask 23552
        %v285 = vsel %vm283, %v275, 0
        %v288 = vsel %vm283, %v276, 0
        %v291 = vsel %vm283, %v277, 0
        %v294 = vsel %vm283, %v278, 0
        %vm296 = vcmask 1042432
        %v297 = vsel %vm296, %v280, 0
        %v299 = vsel %vm296, %v282, 0
        %301 = vmatprep.subr.mxu0 %v299
        %302 = vmatpush1.msra.mxu0 %v297
        %303 = vmatprep.subr.mxu0 0.0
        %304 = vmatpush1.msra.mxu0 0.0
        %305 = vmatprep.subr.mxu0 0.0
        %306 = vmatpush1.msra.mxu0 0.0
        %307 = vmatprep.subr.mxu0 0.0
        %308 = vmatpush1.msra.mxu0 0.0
        %309 = vmatprep.subr.mxu0 0.0
        %310 = vmatpush1.msra.mxu0 0.0
        %311 = vmatprep.subr.mxu0 0.0
        %312 = vmatpush1.msra.mxu0 0.0
        %313 = vmatprep.subr.mxu0 0.0
        %314 = vmatpush1.msra.mxu0 0.0
        %315 = vmatprep.subr.mxu0 0.0
        %316 = vmatpush1.msra.mxu0 0.0
        %317 = vmatprep.subr.mxu0 0.0
        %318 = vmatpush1.msra.mxu0 0.0
        %319 = vmatprep.subr.mxu0 0.0
        %320 = vmatpush1.msra.mxu0 0.0
        %321 = vmatprep.subr.mxu0 0.0
        %322 = vmatpush1.msra.mxu0 0.0
        %323 = vmatprep.subr.mxu0 0.0
        %324 = vmatpush1.msra.mxu0 0.0
        %325 = vmatprep.subr.mxu0 0.0
        %326 = vmatpush1.msra.mxu0 0.0
        %327 = vmatprep.subr.mxu0 0.0
        %328 = vmatpush1.msra.mxu0 0.0
        %329 = vmatprep.subr.mxu0 0.0
        %330 = vmatpush1.msra.mxu0 0.0
        %331 = vmatprep.subr.mxu0 0.0
        %332 = vmatpush1.msra.mxu0 0.0
        %333 = vmatprep.subr.mxu0 0.0
        %334 = vmatpush1.msra.mxu0 0.0
        %335 = vmatprep.subr.mxu0 0.0
        %336 = vmatpush1.msra.mxu0 0.0
        %337 = vmatprep.subr.mxu0 0.0
        %338 = vmatpush1.msra.mxu0 0.0
        %339 = vmatprep.subr.mxu0 0.0
        %340 = vmatpush1.msra.mxu0 0.0
        %341 = vmatprep.subr.mxu0 0.0
        %342 = vmatpush1.msra.mxu0 0.0
        %343 = vmatprep.subr.mxu0 0.0
        %344 = vmatpush1.msra.mxu0 0.0
        %345 = vmatprep.subr.mxu0 0.0
        %346 = vmatpush1.msra.mxu0 0.0
        %347 = vmatprep.subr.mxu0 0.0
        %348 = vmatpush1.msra.mxu0 0.0
        %349 = vmatprep.subr.mxu0 0.0
        %350 = vmatpush1.msra.mxu0 0.0
        %351 = vmatprep.subr.mxu0 0.0
        %352 = vmatpush1.msra.mxu0 0.0
        %353 = vmatprep.subr.mxu0 0.0
        %354 = vmatpush1.msra.mxu0 0.0
        %355 = vmatprep.subr.mxu0 0.0
        %356 = vmatpush1.msra.mxu0 0.0
        %357 = vmatprep.subr.mxu0 0.0
        %358 = vmatpush1.msra.mxu0 0.0
        %359 = vmatprep.subr.mxu0 0.0
        %360 = vmatpush1.msra.mxu0 0.0
        %361 = vmatprep.subr.mxu0 0.0
        %362 = vmatpush1.msra.mxu0 0.0
        %363 = vmatprep.subr.mxu0 0.0
        %364 = vmatpush1.msra.mxu0 0.0
        %365 = vmatprep.mubr.f32.mxu0 0.0
        %366 = vmatmul.mubr.f32.gmra.mrb[0].mxu0 %v285
        %v367 = vpop.f32.mrb[0].mxu0
        %v368 = vadd.f32 0.0, %v367
        %v369 = vpop.f32.mrb[0].mxu0
        %v370 = vadd.f32 0.0, %v369
        %371 = vmatprep.mubr.f32.mxu0 0.0
        %372 = vmatmul.mubr.f32.gmra.mrb[0].mxu0 %v288
        %v373 = vpop.f32.mrb[0].mxu0
        %v374 = vadd.f32 0.0, %v373
        %v375 = vpop.f32.mrb[0].mxu0
        %v376 = vadd.f32 0.0, %v375
        %377 = vmatprep.mubr.f32.mxu0 0.0
        %378 = vmatmul.mubr.f32.gmra.mrb[0].mxu0 %v291
        %v379 = vpop.f32.mrb[0].mxu0
        %v380 = vadd.f32 0.0, %v379
        %v381 = vpop.f32.mrb[0].mxu0
        %v382 = vadd.f32 0.0, %v381
        %383 = vmatprep.mubr.f32.mxu0 0.0
        %384 = vmatmul.mubr.f32.gmra.mrb[0].mxu0 %v294
        %v385 = vpop.f32.mrb[0].mxu0
        %v386 = vadd.f32 0.0, %v385
        %v387 = vpop.f32.mrb[0].mxu0
        %v388 = vadd.f32 0.0, %v387
        %389 = vdwg.mxu0
        %v390 = vld [vmem:[%s3] sm:$0xff]
        %v391 = vld [vmem:[%s3 + $0x8] sm:$0xff]
        %v392 = vld [vmem:[%s3 + $0x10] sm:$0xff]
        %v393 = vld [vmem:[%s3 + $0x18] sm:$0xff]
        %395 = vset.pattern.permute.xlu0 0
        %396 = vperm.xlu0 %395, %v390
        %v397 = vpop.permute.xlu0 %396
        %400 = vset.pattern.permute.xlu0 0
        %401 = vperm.xlu0 %400, %v391
        %v402 = vpop.permute.xlu0 %401
        %405 = vset.pattern.permute.xlu0 0
        %406 = vperm.xlu0 %405, %v392
        %v407 = vpop.permute.xlu0 %406
        %410 = vset.pattern.permute.xlu0 0
        %411 = vperm.xlu0 %410, %v393
        %v412 = vpop.permute.xlu0 %411
        %v415 = vcombine.high %v279, %v279
        %v416 = vsel %vm296, %v279, 0
        %v418 = vsel %vm296, %v415, 0
        %420 = vmatprep.subr.mxu0 %v418
        %421 = vmatpush1.msra.mxu0 %v416
        %422 = vmatprep.subr.mxu0 0.0
        %423 = vmatpush1.msra.mxu0 0.0
        %424 = vmatprep.subr.mxu0 0.0
        %425 = vmatpush1.msra.mxu0 0.0
        %426 = vmatprep.subr.mxu0 0.0
        %427 = vmatpush1.msra.mxu0 0.0
        %428 = vmatprep.subr.mxu0 0.0
        %429 = vmatpush1.msra.mxu0 0.0
        %430 = vmatprep.subr.mxu0 0.0
        %431 = vmatpush1.msra.mxu0 0.0
        %432 = vmatprep.subr.mxu0 0.0
        %433 = vmatpush1.msra.mxu0 0.0
        %434 = vmatprep.subr.mxu0 0.0
        %435 = vmatpush1.msra.mxu0 0.0
        %436 = vmatprep.subr.mxu0 0.0
        %437 = vmatpush1.msra.mxu0 0.0
        %438 = vmatprep.subr.mxu0 0.0
        %439 = vmatpush1.msra.mxu0 0.0
        %440 = vmatprep.subr.mxu0 0.0
        %441 = vmatpush1.msra.mxu0 0.0
        %442 = vmatprep.subr.mxu0 0.0
        %443 = vmatpush1.msra.mxu0 0.0
        %444 = vmatprep.subr.mxu0 0.0
        %445 = vmatpush1.msra.mxu0 0.0
        %446 = vmatprep.subr.mxu0 0.0
        %447 = vmatpush1.msra.mxu0 0.0
        %448 = vmatprep.subr.mxu0 0.0
        %449 = vmatpush1.msra.mxu0 0.0
        %450 = vmatprep.subr.mxu0 0.0
        %451 = vmatpush1.msra.mxu0 0.0
        %452 = vmatprep.subr.mxu0 0.0
        %453 = vmatpush1.msra.mxu0 0.0
        %454 = vmatprep.subr.mxu0 0.0
        %455 = vmatpush1.msra.mxu0 0.0
        %456 = vmatprep.subr.mxu0 0.0
        %457 = vmatpush1.msra.mxu0 0.0
        %458 = vmatprep.subr.mxu0 0.0
        %459 = vmatpush1.msra.mxu0 0.0
        %460 = vmatprep.subr.mxu0 0.0
        %461 = vmatpush1.msra.mxu0 0.0
        %462 = vmatprep.subr.mxu0 0.0
        %463 = vmatpush1.msra.mxu0 0.0
        %464 = vmatprep.subr.mxu0 0.0
        %465 = vmatpush1.msra.mxu0 0.0
        %466 = vmatprep.subr.mxu0 0.0
        %467 = vmatpush1.msra.mxu0 0.0
        %468 = vmatprep.subr.mxu0 0.0
        %469 = vmatpush1.msra.mxu0 0.0
        %470 = vmatprep.subr.mxu0 0.0
        %471 = vmatpush1.msra.mxu0 0.0
        %472 = vmatprep.subr.mxu0 0.0
        %473 = vmatpush1.msra.mxu0 0.0
        %474 = vmatprep.subr.mxu0 0.0
        %475 = vmatpush1.msra.mxu0 0.0
        %476 = vmatprep.subr.mxu0 0.0
        %477 = vmatpush1.msra.mxu0 0.0
        %478 = vmatprep.subr.mxu0 0.0
        %479 = vmatpush1.msra.mxu0 0.0
        %480 = vmatprep.subr.mxu0 0.0
        %481 = vmatpush1.msra.mxu0 0.0
        %482 = vmatprep.subr.mxu0 0.0
        %483 = vmatpush1.msra.mxu0 0.0
        %484 = vmatprep.mubr.f32.mxu0 0.0
        %485 = vmatmul.mubr.f32.gmra.mrb[0].mxu0 %v285
        %v486 = vpop.f32.mrb[0].mxu0
        %v487 = vadd.f32 %v397, %v486
        %v488 = vpop.f32.mrb[0].mxu0
        %v489 = vadd.f32 %v397, %v488
        %490 = vmatprep.mubr.f32.mxu0 0.0
        %491 = vmatmul.mubr.f32.gmra.mrb[0].mxu0 %v288
        %v492 = vpop.f32.mrb[0].mxu0
        %v493 = vadd.f32 %v402, %v492
        %v494 = vpop.f32.mrb[0].mxu0
        %v495 = vadd.f32 %v402, %v494
        %496 = vmatprep.mubr.f32.mxu0 0.0
        %497 = vmatmul.mubr.f32.gmra.mrb[0].mxu0 %v291
        %v498 = vpop.f32.mrb[0].mxu0
        %v499 = vadd.f32 %v407, %v498
        %v500 = vpop.f32.mrb[0].mxu0
        %v501 = vadd.f32 %v407, %v500
        %502 = vmatprep.mubr.f32.mxu0 0.0
        %503 = vmatmul.mubr.f32.gmra.mrb[0].mxu0 %v294
        %v504 = vpop.f32.mrb[0].mxu0
        %v505 = vadd.f32 %v412, %v504
        %v506 = vpop.f32.mrb[0].mxu0
        %v507 = vadd.f32 %v412, %v506
        %508 = vdwg.mxu0
        %v509 = vld [vmem:[%s4] sm:$0xf]
        %v510 = vld [vmem:[%s5] sm:$0xf]
        %512 = vset.pattern.permute.xlu0 0
        %513 = vperm.xlu0 %512, %v510
        %v514 = vpop.permute.xlu0 %513
        %v516 = vmul.f32 %v368, 1.625
        %v517 = vmul.f32 %v370, 1.625
        %v518 = vmul.f32 %v374, 1.625
        %v519 = vmul.f32 %v376, 1.625
        %v520 = vmul.f32 %v380, 1.625
        %v521 = vmul.f32 %v382, 1.625
        %v522 = vmul.f32 %v386, 1.625
        %v523 = vmul.f32 %v388, 1.625
        %v524 = vadd.f32 %v487, %v516
        %v525 = vadd.f32 %v489, %v517
        %v526 = vadd.f32 %v493, %v518
        %v527 = vadd.f32 %v495, %v519
        %v528 = vadd.f32 %v499, %v520
        %v529 = vadd.f32 %v501, %v521
        %v530 = vadd.f32 %v505, %v522
        %v531 = vadd.f32 %v507, %v523
        %v532 = vmax.f32 %v524, 0.0
        %v533 = vmax.f32 %v525, 0.0
        %v534 = vmax.f32 %v526, 0.0
        %v535 = vmax.f32 %v527, 0.0
        %v536 = vmax.f32 %v528, 0.0
        %v537 = vmax.f32 %v529, 0.0
        %v538 = vmax.f32 %v530, 0.0
        %v539 = vmax.f32 %v531, 0.0
        %vm540 = vcmask 261120
        %v542 = vsel %vm540, %v509, 0
        %544 = vmatprep.subr.mxu0 %v533
        %545 = vmatpush1.msra.mxu0 %v532
        %546 = vmatprep.subr.mxu0 %v535
        %547 = vmatpush1.msra.mxu0 %v534
        %548 = vmatprep.subr.mxu0 %v537
        %549 = vmatpush1.msra.mxu0 %v536
        %550 = vmatprep.subr.mxu0 %v539
        %551 = vmatpush1.msra.mxu0 %v538
        %552 = vmatprep.subr.mxu0 0.0
        %553 = vmatpush1.msra.mxu0 0.0
        %554 = vmatprep.subr.mxu0 0.0
        %555 = vmatpush1.msra.mxu0 0.0
        %556 = vmatprep.subr.mxu0 0.0
        %557 = vmatpush1.msra.mxu0 0.0
        %558 = vmatprep.subr.mxu0 0.0
        %559 = vmatpush1.msra.mxu0 0.0
        %560 = vmatprep.subr.mxu0 0.0
        %561 = vmatpush1.msra.mxu0 0.0
        %562 = vmatprep.subr.mxu0 0.0
        %563 = vmatpush1.msra.mxu0 0.0
        %564 = vmatprep.subr.mxu0 0.0
        %565 = vmatpush1.msra.mxu0 0.0
        %566 = vmatprep.subr.mxu0 0.0
        %567 = vmatpush1.msra.mxu0 0.0
        %568 = vmatprep.subr.mxu0 0.0
        %569 = vmatpush1.msra.mxu0 0.0
        %570 = vmatprep.subr.mxu0 0.0
        %571 = vmatpush1.msra.mxu0 0.0
        %572 = vmatprep.subr.mxu0 0.0
        %573 = vmatpush1.msra.mxu0 0.0
        %574 = vmatprep.subr.mxu0 0.0
        %575 = vmatpush1.msra.mxu0 0.0
        %576 = vmatprep.subr.mxu0 0.0
        %577 = vmatpush1.msra.mxu0 0.0
        %578 = vmatprep.subr.mxu0 0.0
        %579 = vmatpush1.msra.mxu0 0.0
        %580 = vmatprep.subr.mxu0 0.0
        %581 = vmatpush1.msra.mxu0 0.0
        %582 = vmatprep.subr.mxu0 0.0
        %583 = vmatpush1.msra.mxu0 0.0
        %584 = vmatprep.subr.mxu0 0.0
        %585 = vmatpush1.msra.mxu0 0.0
        %586 = vmatprep.subr.mxu0 0.0
        %587 = vmatpush1.msra.mxu0 0.0
        %588 = vmatprep.subr.mxu0 0.0
        %589 = vmatpush1.msra.mxu0 0.0
        %590 = vmatprep.subr.mxu0 0.0
        %591 = vmatpush1.msra.mxu0 0.0
        %592 = vmatprep.subr.mxu0 0.0
        %593 = vmatpush1.msra.mxu0 0.0
        %594 = vmatprep.subr.mxu0 0.0
        %595 = vmatpush1.msra.mxu0 0.0
        %596 = vmatprep.subr.mxu0 0.0
        %597 = vmatpush1.msra.mxu0 0.0
        %598 = vmatprep.subr.mxu0 0.0
        %599 = vmatpush1.msra.mxu0 0.0
        %600 = vmatprep.subr.mxu0 0.0
        %601 = vmatpush1.msra.mxu0 0.0
        %602 = vmatprep.subr.mxu0 0.0
        %603 = vmatpush1.msra.mxu0 0.0
        %604 = vmatprep.subr.mxu0 0.0
        %605 = vmatpush1.msra.mxu0 0.0
        %606 = vmatprep.subr.mxu0 0.0
        %607 = vmatpush1.msra.mxu0 0.0
        %608 = vmatprep.mubr.f32.mxu0 0.0
        %609 = vmatmul.mubr.f32.gmra.mrb[0].mxu0 %v542
        %v610 = vpop.f32.mrb[0].mxu0
        %v611 = vadd.f32 %v514, %v610
        %v612 = vpop.f32.mrb[0].mxu0
        %v613 = vadd.f32 %v514, %v612
        %614 = vdwg.mxu0
        %v615 = vsub.f32 0.0, %v611
        %v616 = vsub.f32 0.0, %v613
        %v617 = vmul.f32 %v615, 1.442695
        %v618 = vpow.pop %v617
        %v619 = vmul.f32 %v616, 1.442695
        %v620 = vpow.pop %v619
        %v621 = vadd.f32 %v618, 1.0
        %v622 = vadd.f32 %v620, 1.0
        %v623 = vrcp.pop %v621
        %v624 = vmul.f32 1.0, %v623
        %v625 = vrcp.pop %v622
        %v626 = vmul.f32 1.0, %v625
        %v627 = vmax.f32 %v611, 0.0
        %v628 = vmax.f32 %v613, 0.0
        %v629 = vsub.f32 0.0, %v627
        %v630 = vsub.f32 0.0, %v628
        %v631 = vmul.f32 %v629, 0.25
        %v632 = vmul.f32 %v630, 0.25
        %v633 = vmul.f32 %v631, 1.442695
        %v634 = vpow.pop %v633
        %v635 = vmul.f32 %v632, 1.442695
        %v636 = vpow.pop %v635
        %v637 = vsub.f32 1.0, %v634
        %v638 = vsub.f32 1.0, %v636
        %v639 = vlaneseq
        %v640 = vshrl.u32 %v639, 7
        %v641 = vsub.s32 3, %v640
        %v642 = vrot.slane %v637, %v641
        %v643 = vlaneseq
        %v644 = vshrl.u32 %v643, 7
        %v645 = vsub.s32 3, %v644
        %v646 = vrot.slane %v638, %v645
        %v647 = vmul.f32 %v642, %v624
        %v648 = vmul.f32 %v646, %v626
        %v649 = vadd.f32 %v647, 0.0
        %v650 = vadd.f32 %v648, 0.0
        %v651 = vsub.f32 1.0, %v637
        %v652 = vsub.f32 1.0, %v638
        %v653 = vmul.f32 %v368, 2.0
        %v654 = vmul.f32 %v370, 2.0
        %v655 = vmul.f32 %v374, 2.0
        %v656 = vmul.f32 %v376, 2.0
        %v657 = vmul.f32 %v380, 2.0
        %v658 = vmul.f32 %v382, 2.0
        %v659 = vmul.f32 %v386, 2.0
        %v660 = vmul.f32 %v388, 2.0
        %v661 = vadd.f32 %v487, %v653
        %v662 = vadd.f32 %v489, %v654
        %v663 = vadd.f32 %v493, %v655
        %v664 = vadd.f32 %v495, %v656
        %v665 = vadd.f32 %v499, %v657
        %v666 = vadd.f32 %v501, %v658
        %v667 = vadd.f32 %v505, %v659
        %v668 = vadd.f32 %v507, %v660
        %v669 = vmax.f32 %v661, 0.0
        %v670 = vmax.f32 %v662, 0.0
        %v671 = vmax.f32 %v663, 0.0
        %v672 = vmax.f32 %v664, 0.0
        %v673 = vmax.f32 %v665, 0.0
        %v674 = vmax.f32 %v666, 0.0
        %v675 = vmax.f32 %v667, 0.0
        %v676 = vmax.f32 %v668, 0.0
        %677 = vmatprep.subr.mxu0 %v670
        %678 = vmatpush1.msra.mxu0 %v669
        %679 = vmatprep.subr.mxu0 %v672
        %680 = vmatpush1.msra.mxu0 %v671
        %681 = vmatprep.subr.mxu0 %v674
        %682 = vmatpush1.msra.mxu0 %v673
        %683 = vmatprep.subr.mxu0 %v676
        %684 = vmatpush1.msra.mxu0 %v675
        %685 = vmatprep.subr.mxu0 0.0
        %686 = vmatpush1.msra.mxu0 0.0
        %687 = vmatprep.subr.mxu0 0.0
        %688 = vmatpush1.msra.mxu0 0.0
        %689 = vmatprep.subr.mxu0 0.0
        %690 = vmatpush1.msra.mxu0 0.0
        %691 = vmatprep.subr.mxu0 0.0
        %692 = vmatpush1.msra.mxu0 0.0
        %693 = vmatprep.subr.mxu0 0.0
        %694 = vmatpush1.msra.mxu0 0.0
        %695 = vmatprep.subr.mxu0 0.0
        %696 = vmatpush1.msra.mxu0 0.0
        %697 = vmatprep.subr.mxu0 0.0
        %698 = vmatpush1.msra.mxu0 0.0
        %699 = vmatprep.subr.mxu0 0.0
        %700 = vmatpush1.msra.mxu0 0.0
        %701 = vmatprep.subr.mxu0 0.0
        %702 = vmatpush1.msra.mxu0 0.0
        %703 = vmatprep.subr.mxu0 0.0
        %704 = vmatpush1.msra.mxu0 0.0
        %705 = vmatprep.subr.mxu0 0.0
        %706 = vmatpush1.msra.mxu0 0.0
        %707 = vmatprep.subr.mxu0 0.0
        %708 = vmatpush1.msra.mxu0 0.0
        %709 = vmatprep.subr.mxu0 0.0
        %710 = vmatpush1.msra.mxu0 0.0
        %711 = vmatprep.subr.mxu0 0.0
        %712 = vmatpush1.msra.mxu0 0.0
        %713 = vmatprep.subr.mxu0 0.0
        %714 = vmatpush1.msra.mxu0 0.0
        %715 = vmatprep.subr.mxu0 0.0
        %716 = vmatpush1.msra.mxu0 0.0
        %717 = vmatprep.subr.mxu0 0.0
        %718 = vmatpush1.msra.mxu0 0.0
        %719 = vmatprep.subr.mxu0 0.0
        %720 = vmatpush1.msra.mxu0 0.0
        %721 = vmatprep.subr.mxu0 0.0
        %722 = vmatpush1.msra.mxu0 0.0
        %723 = vmatprep.subr.mxu0 0.0
        %724 = vmatpush1.msra.mxu0 0.0
        %725 = vmatprep.subr.mxu0 0.0
        %726 = vmatpush1.msra.mxu0 0.0
        %727 = vmatprep.subr.mxu0 0.0
        %728 = vmatpush1.msra.mxu0 0.0
        %729 = vmatprep.subr.mxu0 0.0
        %730 = vmatpush1.msra.mxu0 0.0
        %731 = vmatprep.subr.mxu0 0.0
        %732 = vmatpush1.msra.mxu0 0.0
        %733 = vmatprep.subr.mxu0 0.0
        %734 = vmatpush1.msra.mxu0 0.0
        %735 = vmatprep.subr.mxu0 0.0
        %736 = vmatpush1.msra.mxu0 0.0
        %737 = vmatprep.subr.mxu0 0.0
        %738 = vmatpush1.msra.mxu0 0.0
        %739 = vmatprep.subr.mxu0 0.0
        %740 = vmatpush1.msra.mxu0 0.0
        %741 = vmatprep.mubr.f32.mxu0 0.0
        %742 = vmatmul.mubr.f32.gmra.mrb[0].mxu0 %v542
        %v743 = vpop.f32.mrb[0].mxu0
        %v744 = vadd.f32 %v514, %v743
        %v745 = vpop.f32.mrb[0].mxu0
        %v746 = vadd.f32 %v514, %v745
        %747 = vdwg.mxu0
        %v748 = vsub.f32 0.0, %v744
        %v749 = vsub.f32 0.0, %v746
        %v750 = vmul.f32 %v748, 1.442695
        %v751 = vpow.pop %v750
        %v752 = vmul.f32 %v749, 1.442695
        %v753 = vpow.pop %v752
        %v754 = vadd.f32 %v751, 1.0
        %v755 = vadd.f32 %v753, 1.0
        %v756 = vrcp.pop %v754
        %v757 = vmul.f32 1.0, %v756
        %v758 = vrcp.pop %v755
        %v759 = vmul.f32 1.0, %v758
        %v760 = vmax.f32 %v744, 0.0
        %v761 = vmax.f32 %v746, 0.0
        %v762 = vsub.f32 0.0, %v760
        %v763 = vsub.f32 0.0, %v761
        %v764 = vmul.f32 %v762, 0.25
        %v765 = vmul.f32 %v763, 0.25
        %v766 = vmul.f32 %v764, 1.442695
        %v767 = vpow.pop %v766
        %v768 = vmul.f32 %v765, 1.442695
        %v769 = vpow.pop %v768
        %v770 = vsub.f32 1.0, %v767
        %v771 = vsub.f32 1.0, %v769
        %v772 = vmul.f32 %v651, %v770
        %v773 = vmul.f32 %v652, %v771
        %v774 = vlaneseq
        %v775 = vshrl.u32 %v774, 7
        %v776 = vsub.s32 3, %v775
        %v777 = vrot.slane %v772, %v776
        %v778 = vlaneseq
        %v779 = vshrl.u32 %v778, 7
        %v780 = vsub.s32 3, %v779
        %v781 = vrot.slane %v773, %v780
        %v782 = vmul.f32 %v777, %v757
        %v783 = vmul.f32 %v781, %v759
        %v784 = vadd.f32 %v649, %v782
        %v785 = vadd.f32 %v650, %v783
        %v786 = vsub.f32 1.0, %v770
        %v787 = vsub.f32 1.0, %v771
        %v788 = vmul.f32 %v651, %v786
        %v789 = vmul.f32 %v652, %v787
        %v790 = vmul.f32 %v368, 2.375
        %v791 = vmul.f32 %v370, 2.375
        %v792 = vmul.f32 %v374, 2.375
        %v793 = vmul.f32 %v376, 2.375
        %v794 = vmul.f32 %v380, 2.375
        %v795 = vmul.f32 %v382, 2.375
        %v796 = vmul.f32 %v386, 2.375
        %v797 = vmul.f32 %v388, 2.375
        %v798 = vadd.f32 %v487, %v790
        %v799 = vadd.f32 %v489, %v791
        %v800 = vadd.f32 %v493, %v792
        %v801 = vadd.f32 %v495, %v793
        %v802 = vadd.f32 %v499, %v794
        %v803 = vadd.f32 %v501, %v795
        %v804 = vadd.f32 %v505, %v796
        %v805 = vadd.f32 %v507, %v797
        %v806 = vmax.f32 %v798, 0.0
        %v807 = vmax.f32 %v799, 0.0
        %v808 = vmax.f32 %v800, 0.0
        %v809 = vmax.f32 %v801, 0.0
        %v810 = vmax.f32 %v802, 0.0
        %v811 = vmax.f32 %v803, 0.0
        %v812 = vmax.f32 %v804, 0.0
        %v813 = vmax.f32 %v805, 0.0
        %814 = vmatprep.subr.mxu0 %v807
        %815 = vmatpush1.msra.mxu0 %v806
        %816 = vmatprep.subr.mxu0 %v809
        %817 = vmatpush1.msra.mxu0 %v808
        %818 = vmatprep.subr.mxu0 %v811
        %819 = vmatpush1.msra.mxu0 %v810
        %820 = vmatprep.subr.mxu0 %v813
        %821 = vmatpush1.msra.mxu0 %v812
        %822 = vmatprep.subr.mxu0 0.0
        %823 = vmatpush1.msra.mxu0 0.0
        %824 = vmatprep.subr.mxu0 0.0
        %825 = vmatpush1.msra.mxu0 0.0
        %826 = vmatprep.subr.mxu0 0.0
        %827 = vmatpush1.msra.mxu0 0.0
        %828 = vmatprep.subr.mxu0 0.0
        %829 = vmatpush1.msra.mxu0 0.0
        %830 = vmatprep.subr.mxu0 0.0
        %831 = vmatpush1.msra.mxu0 0.0
        %832 = vmatprep.subr.mxu0 0.0
        %833 = vmatpush1.msra.mxu0 0.0
        %834 = vmatprep.subr.mxu0 0.0
        %835 = vmatpush1.msra.mxu0 0.0
        %836 = vmatprep.subr.mxu0 0.0
        %837 = vmatpush1.msra.mxu0 0.0
        %838 = vmatprep.subr.mxu0 0.0
        %839 = vmatpush1.msra.mxu0 0.0
        %840 = vmatprep.subr.mxu0 0.0
        %841 = vmatpush1.msra.mxu0 0.0
        %842 = vmatprep.subr.mxu0 0.0
        %843 = vmatpush1.msra.mxu0 0.0
        %844 = vmatprep.subr.mxu0 0.0
        %845 = vmatpush1.msra.mxu0 0.0
        %846 = vmatprep.subr.mxu0 0.0
        %847 = vmatpush1.msra.mxu0 0.0
        %848 = vmatprep.subr.mxu0 0.0
        %849 = vmatpush1.msra.mxu0 0.0
        %850 = vmatprep.subr.mxu0 0.0
        %851 = vmatpush1.msra.mxu0 0.0
        %852 = vmatprep.subr.mxu0 0.0
        %853 = vmatpush1.msra.mxu0 0.0
        %854 = vmatprep.subr.mxu0 0.0
        %855 = vmatpush1.msra.mxu0 0.0
        %856 = vmatprep.subr.mxu0 0.0
        %857 = vmatpush1.msra.mxu0 0.0
        %858 = vmatprep.subr.mxu0 0.0
        %859 = vmatpush1.msra.mxu0 0.0
        %860 = vmatprep.subr.mxu0 0.0
        %861 = vmatpush1.msra.mxu0 0.0
        %862 = vmatprep.subr.mxu0 0.0
        %863 = vmatpush1.msra.mxu0 0.0
        %864 = vmatprep.subr.mxu0 0.0
        %865 = vmatpush1.msra.mxu0 0.0
        %866 = vmatprep.subr.mxu0 0.0
        %867 = vmatpush1.msra.mxu0 0.0
        %868 = vmatprep.subr.mxu0 0.0
        %869 = vmatpush1.msra.mxu0 0.0
        %870 = vmatprep.subr.mxu0 0.0
        %871 = vmatpush1.msra.mxu0 0.0
        %872 = vmatprep.subr.mxu0 0.0
        %873 = vmatpush1.msra.mxu0 0.0
        %874 = vmatprep.subr.mxu0 0.0
        %875 = vmatpush1.msra.mxu0 0.0
        %876 = vmatprep.subr.mxu0 0.0
        %877 = vmatpush1.msra.mxu0 0.0
        %878 = vmatprep.mubr.f32.mxu0 0.0
        %879 = vmatmul.mubr.f32.gmra.mrb[0].mxu0 %v542
        %v880 = vpop.f32.mrb[0].mxu0
        %v881 = vadd.f32 %v514, %v880
        %v882 = vpop.f32.mrb[0].mxu0
        %v883 = vadd.f32 %v514, %v882
        %884 = vdwg.mxu0
        %v885 = vsub.f32 0.0, %v881
        %v886 = vsub.f32 0.0, %v883
        %v887 = vmul.f32 %v885, 1.442695
        %v888 = vpow.pop %v887
        %v889 = vmul.f32 %v886, 1.442695
        %v890 = vpow.pop %v889
        %v891 = vadd.f32 %v888, 1.0
        %v892 = vadd.f32 %v890, 1.0
        %v893 = vrcp.pop %v891
        %v894 = vmul.f32 1.0, %v893
        %v895 = vrcp.pop %v892
        %v896 = vmul.f32 1.0, %v895
        %v897 = vmax.f32 %v881, 0.0
        %v898 = vmax.f32 %v883, 0.0
        %v899 = vsub.f32 0.0, %v897
        %v900 = vsub.f32 0.0, %v898
        %v901 = vmul.f32 %v899, 0.25
        %v902 = vmul.f32 %v900, 0.25
        %v903 = vmul.f32 %v901, 1.442695
        %v904 = vpow.pop %v903
        %v905 = vmul.f32 %v902, 1.442695
        %v906 = vpow.pop %v905
        %v907 = vsub.f32 1.0, %v904
        %v908 = vsub.f32 1.0, %v906
        %v909 = vmul.f32 %v788, %v907
        %v910 = vmul.f32 %v789, %v908
        %v911 = vlaneseq
        %v912 = vshrl.u32 %v911, 7
        %v913 = vsub.s32 3, %v912
        %v914 = vrot.slane %v909, %v913
        %v915 = vlaneseq
        %v916 = vshrl.u32 %v915, 7
        %v917 = vsub.s32 3, %v916
        %v918 = vrot.slane %v910, %v917
        %v919 = vmul.f32 %v914, %v894
        %v920 = vmul.f32 %v918, %v896
        %v921 = vadd.f32 %v784, %v919
        %v922 = vadd.f32 %v785, %v920
        %v923 = vsub.f32 1.0, %v907
        %v924 = vsub.f32 1.0, %v908
        %v925 = vmul.f32 %v788, %v923
        %v926 = vmul.f32 %v789, %v924
        %v927 = vmul.f32 %v368, 2.75
        %v928 = vmul.f32 %v370, 2.75
        %v929 = vmul.f32 %v374, 2.75
        %v930 = vmul.f32 %v376, 2.75
        %v931 = vmul.f32 %v380, 2.75
        %v932 = vmul.f32 %v382, 2.75
        %v933 = vmul.f32 %v386, 2.75
        %v934 = vmul.f32 %v388, 2.75
        %v935 = vadd.f32 %v487, %v927
        %v936 = vadd.f32 %v489, %v928
        %v937 = vadd.f32 %v493, %v929
        %v938 = vadd.f32 %v495, %v930
        %v939 = vadd.f32 %v499, %v931
        %v940 = vadd.f32 %v501, %v932
        %v941 = vadd.f32 %v505, %v933
        %v942 = vadd.f32 %v507, %v934
        %v943 = vmax.f32 %v935, 0.0
        %v944 = vmax.f32 %v936, 0.0
        %v945 = vmax.f32 %v937, 0.0
        %v946 = vmax.f32 %v938, 0.0
        %v947 = vmax.f32 %v939, 0.0
        %v948 = vmax.f32 %v940, 0.0
        %v949 = vmax.f32 %v941, 0.0
        %v950 = vmax.f32 %v942, 0.0
        %951 = vmatprep.subr.mxu0 %v944
        %952 = vmatpush1.msra.mxu0 %v943
        %953 = vmatprep.subr.mxu0 %v946
        %954 = vmatpush1.msra.mxu0 %v945
        %955 = vmatprep.subr.mxu0 %v948
        %956 = vmatpush1.msra.mxu0 %v947
        %957 = vmatprep.subr.mxu0 %v950
        %958 = vmatpush1.msra.mxu0 %v949
        %959 = vmatprep.subr.mxu0 0.0
        %960 = vmatpush1.msra.mxu0 0.0
        %961 = vmatprep.subr.mxu0 0.0
        %962 = vmatpush1.msra.mxu0 0.0
        %963 = vmatprep.subr.mxu0 0.0
        %964 = vmatpush1.msra.mxu0 0.0
        %965 = vmatprep.subr.mxu0 0.0
        %966 = vmatpush1.msra.mxu0 0.0
        %967 = vmatprep.subr.mxu0 0.0
        %968 = vmatpush1.msra.mxu0 0.0
        %969 = vmatprep.subr.mxu0 0.0
        %970 = vmatpush1.msra.mxu0 0.0
        %971 = vmatprep.subr.mxu0 0.0
        %972 = vmatpush1.msra.mxu0 0.0
        %973 = vmatprep.subr.mxu0 0.0
        %974 = vmatpush1.msra.mxu0 0.0
        %975 = vmatprep.subr.mxu0 0.0
        %976 = vmatpush1.msra.mxu0 0.0
        %977 = vmatprep.subr.mxu0 0.0
        %978 = vmatpush1.msra.mxu0 0.0
        %979 = vmatprep.subr.mxu0 0.0
        %980 = vmatpush1.msra.mxu0 0.0
        %981 = vmatprep.subr.mxu0 0.0
        %982 = vmatpush1.msra.mxu0 0.0
        %983 = vmatprep.subr.mxu0 0.0
        %984 = vmatpush1.msra.mxu0 0.0
        %985 = vmatprep.subr.mxu0 0.0
        %986 = vmatpush1.msra.mxu0 0.0
        %987 = vmatprep.subr.mxu0 0.0
        %988 = vmatpush1.msra.mxu0 0.0
        %989 = vmatprep.subr.mxu0 0.0
        %990 = vmatpush1.msra.mxu0 0.0
        %991 = vmatprep.subr.mxu0 0.0
        %992 = vmatpush1.msra.mxu0 0.0
        %993 = vmatprep.subr.mxu0 0.0
        %994 = vmatpush1.msra.mxu0 0.0
        %995 = vmatprep.subr.mxu0 0.0
        %996 = vmatpush1.msra.mxu0 0.0
        %997 = vmatprep.subr.mxu0 0.0
        %998 = vmatpush1.msra.mxu0 0.0
        %999 = vmatprep.subr.mxu0 0.0
        %1000 = vmatpush1.msra.mxu0 0.0
        %1001 = vmatprep.subr.mxu0 0.0
        %1002 = vmatpush1.msra.mxu0 0.0
        %1003 = vmatprep.subr.mxu0 0.0
        %1004 = vmatpush1.msra.mxu0 0.0
        %1005 = vmatprep.subr.mxu0 0.0
        %1006 = vmatpush1.msra.mxu0 0.0
        %1007 = vmatprep.subr.mxu0 0.0
        %1008 = vmatpush1.msra.mxu0 0.0
        %1009 = vmatprep.subr.mxu0 0.0
        %1010 = vmatpush1.msra.mxu0 0.0
        %1011 = vmatprep.subr.mxu0 0.0
        %1012 = vmatpush1.msra.mxu0 0.0
        %1013 = vmatprep.subr.mxu0 0.0
        %1014 = vmatpush1.msra.mxu0 0.0
        %1015 = vmatprep.mubr.f32.mxu0 0.0
        %1016 = vmatmul.mubr.f32.gmra.mrb[0].mxu0 %v542
        %v1017 = vpop.f32.mrb[0].mxu0
        %v1018 = vadd.f32 %v514, %v1017
        %v1019 = vpop.f32.mrb[0].mxu0
        %v1020 = vadd.f32 %v514, %v1019
        %1021 = vdwg.mxu0
        %v1022 = vsub.f32 0.0, %v1018
        %v1023 = vsub.f32 0.0, %v1020
        %v1024 = vmul.f32 %v1022, 1.442695
        %v1025 = vpow.pop %v1024
        %v1026 = vmul.f32 %v1023, 1.442695
        %v1027 = vpow.pop %v1026
        %v1028 = vadd.f32 %v1025, 1.0
        %v1029 = vadd.f32 %v1027, 1.0
        %v1030 = vrcp.pop %v1028
        %v1031 = vmul.f32 1.0, %v1030
        %v1032 = vrcp.pop %v1029
        %v1033 = vmul.f32 1.0, %v1032
        %v1034 = vmax.f32 %v1018, 0.0
        %v1035 = vmax.f32 %v1020, 0.0
        %v1036 = vsub.f32 0.0, %v1034
        %v1037 = vsub.f32 0.0, %v1035
        %v1038 = vmul.f32 %v1036, 0.25
        %v1039 = vmul.f32 %v1037, 0.25
        %v1040 = vmul.f32 %v1038, 1.442695
        %v1041 = vpow.pop %v1040
        %v1042 = vmul.f32 %v1039, 1.442695
        %v1043 = vpow.pop %v1042
        %v1044 = vsub.f32 1.0, %v1041
        %v1045 = vsub.f32 1.0, %v1043
        %v1046 = vmul.f32 %v925, %v1044
        %v1047 = vmul.f32 %v926, %v1045
        %v1048 = vlaneseq
        %v1049 = vshrl.u32 %v1048, 7
        %v1050 = vsub.s32 3, %v1049
        %v1051 = vrot.slane %v1046, %v1050
        %v1052 = vlaneseq
        %v1053 = vshrl.u32 %v1052, 7
        %v1054 = vsub.s32 3, %v1053
        %v1055 = vrot.slane %v1047, %v1054
        %v1056 = vmul.f32 %v1051, %v1031
        %v1057 = vmul.f32 %v1055, %v1033
        %v1058 = vadd.f32 %v921, %v1056
        %v1059 = vadd.f32 %v922, %v1057
        %v1060 = vsub.f32 1.0, %v1044
        %v1061 = vsub.f32 1.0, %v1045
        %v1062 = vmul.f32 %v925, %v1060
        %v1063 = vmul.f32 %v926, %v1061
        %v1064 = vmul.f32 %v368, 3.125
        %v1065 = vmul.f32 %v370, 3.125
        %v1066 = vmul.f32 %v374, 3.125
        %v1067 = vmul.f32 %v376, 3.125
        %v1068 = vmul.f32 %v380, 3.125
        %v1069 = vmul.f32 %v382, 3.125
        %v1070 = vmul.f32 %v386, 3.125
        %v1071 = vmul.f32 %v388, 3.125
        %v1072 = vadd.f32 %v487, %v1064
        %v1073 = vadd.f32 %v489, %v1065
        %v1074 = vadd.f32 %v493, %v1066
        %v1075 = vadd.f32 %v495, %v1067
        %v1076 = vadd.f32 %v499, %v1068
        %v1077 = vadd.f32 %v501, %v1069
        %v1078 = vadd.f32 %v505, %v1070
        %v1079 = vadd.f32 %v507, %v1071
        %v1080 = vmax.f32 %v1072, 0.0
        %v1081 = vmax.f32 %v1073, 0.0
        %v1082 = vmax.f32 %v1074, 0.0
        %v1083 = vmax.f32 %v1075, 0.0
        %v1084 = vmax.f32 %v1076, 0.0
        %v1085 = vmax.f32 %v1077, 0.0
        %v1086 = vmax.f32 %v1078, 0.0
        %v1087 = vmax.f32 %v1079, 0.0
        %1088 = vmatprep.subr.mxu0 %v1081
        %1089 = vmatpush1.msra.mxu0 %v1080
        %1090 = vmatprep.subr.mxu0 %v1083
        %1091 = vmatpush1.msra.mxu0 %v1082
        %1092 = vmatprep.subr.mxu0 %v1085
        %1093 = vmatpush1.msra.mxu0 %v1084
        %1094 = vmatprep.subr.mxu0 %v1087
        %1095 = vmatpush1.msra.mxu0 %v1086
        %1096 = vmatprep.subr.mxu0 0.0
        %1097 = vmatpush1.msra.mxu0 0.0
        %1098 = vmatprep.subr.mxu0 0.0
        %1099 = vmatpush1.msra.mxu0 0.0
        %1100 = vmatprep.subr.mxu0 0.0
        %1101 = vmatpush1.msra.mxu0 0.0
        %1102 = vmatprep.subr.mxu0 0.0
        %1103 = vmatpush1.msra.mxu0 0.0
        %1104 = vmatprep.subr.mxu0 0.0
        %1105 = vmatpush1.msra.mxu0 0.0
        %1106 = vmatprep.subr.mxu0 0.0
        %1107 = vmatpush1.msra.mxu0 0.0
        %1108 = vmatprep.subr.mxu0 0.0
        %1109 = vmatpush1.msra.mxu0 0.0
        %1110 = vmatprep.subr.mxu0 0.0
        %1111 = vmatpush1.msra.mxu0 0.0
        %1112 = vmatprep.subr.mxu0 0.0
        %1113 = vmatpush1.msra.mxu0 0.0
        %1114 = vmatprep.subr.mxu0 0.0
        %1115 = vmatpush1.msra.mxu0 0.0
        %1116 = vmatprep.subr.mxu0 0.0
        %1117 = vmatpush1.msra.mxu0 0.0
        %1118 = vmatprep.subr.mxu0 0.0
        %1119 = vmatpush1.msra.mxu0 0.0
        %1120 = vmatprep.subr.mxu0 0.0
        %1121 = vmatpush1.msra.mxu0 0.0
        %1122 = vmatprep.subr.mxu0 0.0
        %1123 = vmatpush1.msra.mxu0 0.0
        %1124 = vmatprep.subr.mxu0 0.0
        %1125 = vmatpush1.msra.mxu0 0.0
        %1126 = vmatprep.subr.mxu0 0.0
        %1127 = vmatpush1.msra.mxu0 0.0
        %1128 = vmatprep.subr.mxu0 0.0
        %1129 = vmatpush1.msra.mxu0 0.0
        %1130 = vmatprep.subr.mxu0 0.0
        %1131 = vmatpush1.msra.mxu0 0.0
        %1132 = vmatprep.subr.mxu0 0.0
        %1133 = vmatpush1.msra.mxu0 0.0
        %1134 = vmatprep.subr.mxu0 0.0
        %1135 = vmatpush1.msra.mxu0 0.0
        %1136 = vmatprep.subr.mxu0 0.0
        %1137 = vmatpush1.msra.mxu0 0.0
        %1138 = vmatprep.subr.mxu0 0.0
        %1139 = vmatpush1.msra.mxu0 0.0
        %1140 = vmatprep.subr.mxu0 0.0
        %1141 = vmatpush1.msra.mxu0 0.0
        %1142 = vmatprep.subr.mxu0 0.0
        %1143 = vmatpush1.msra.mxu0 0.0
        %1144 = vmatprep.subr.mxu0 0.0
        %1145 = vmatpush1.msra.mxu0 0.0
        %1146 = vmatprep.subr.mxu0 0.0
        %1147 = vmatpush1.msra.mxu0 0.0
        %1148 = vmatprep.subr.mxu0 0.0
        %1149 = vmatpush1.msra.mxu0 0.0
        %1150 = vmatprep.subr.mxu0 0.0
        %1151 = vmatpush1.msra.mxu0 0.0
        %1152 = vmatprep.mubr.f32.mxu0 0.0
        %1153 = vmatmul.mubr.f32.gmra.mrb[0].mxu0 %v542
        %v1154 = vpop.f32.mrb[0].mxu0
        %v1155 = vadd.f32 %v514, %v1154
        %v1156 = vpop.f32.mrb[0].mxu0
        %v1157 = vadd.f32 %v514, %v1156
        %1158 = vdwg.mxu0
        %v1159 = vsub.f32 0.0, %v1155
        %v1160 = vsub.f32 0.0, %v1157
        %v1161 = vmul.f32 %v1159, 1.442695
        %v1162 = vpow.pop %v1161
        %v1163 = vmul.f32 %v1160, 1.442695
        %v1164 = vpow.pop %v1163
        %v1165 = vadd.f32 %v1162, 1.0
        %v1166 = vadd.f32 %v1164, 1.0
        %v1167 = vrcp.pop %v1165
        %v1168 = vmul.f32 1.0, %v1167
        %v1169 = vrcp.pop %v1166
        %v1170 = vmul.f32 1.0, %v1169
        %v1171 = vmax.f32 %v1155, 0.0
        %v1172 = vmax.f32 %v1157, 0.0
        %v1173 = vsub.f32 0.0, %v1171
        %v1174 = vsub.f32 0.0, %v1172
        %v1175 = vmul.f32 %v1173, 0.25
        %v1176 = vmul.f32 %v1174, 0.25
        %v1177 = vmul.f32 %v1175, 1.442695
        %v1178 = vpow.pop %v1177
        %v1179 = vmul.f32 %v1176, 1.442695
        %v1180 = vpow.pop %v1179
        %v1181 = vsub.f32 1.0, %v1178
        %v1182 = vsub.f32 1.0, %v1180
        %v1183 = vmul.f32 %v1062, %v1181
        %v1184 = vmul.f32 %v1063, %v1182
        %v1185 = vlaneseq
        %v1186 = vshrl.u32 %v1185, 7
        %v1187 = vsub.s32 3, %v1186
        %v1188 = vrot.slane %v1183, %v1187
        %v1189 = vlaneseq
        %v1190 = vshrl.u32 %v1189, 7
        %v1191 = vsub.s32 3, %v1190
        %v1192 = vrot.slane %v1184, %v1191
        %v1193 = vmul.f32 %v1188, %v1168
        %v1194 = vmul.f32 %v1192, %v1170
        %v1195 = vadd.f32 %v1058, %v1193
        %v1196 = vadd.f32 %v1059, %v1194
        %v1197 = vsub.f32 1.0, %v1181
        %v1198 = vsub.f32 1.0, %v1182
        %v1199 = vmul.f32 %v1062, %v1197
        %v1200 = vmul.f32 %v1063, %v1198
        %v1201 = vmul.f32 %v368, 3.5
        %v1202 = vmul.f32 %v370, 3.5
        %v1203 = vmul.f32 %v374, 3.5
        %v1204 = vmul.f32 %v376, 3.5
        %v1205 = vmul.f32 %v380, 3.5
        %v1206 = vmul.f32 %v382, 3.5
        %v1207 = vmul.f32 %v386, 3.5
        %v1208 = vmul.f32 %v388, 3.5
        %v1209 = vadd.f32 %v487, %v1201
        %v1210 = vadd.f32 %v489, %v1202
        %v1211 = vadd.f32 %v493, %v1203
        %v1212 = vadd.f32 %v495, %v1204
        %v1213 = vadd.f32 %v499, %v1205
        %v1214 = vadd.f32 %v501, %v1206
        %v1215 = vadd.f32 %v505, %v1207
        %v1216 = vadd.f32 %v507, %v1208
        %v1217 = vmax.f32 %v1209, 0.0
        %v1218 = vmax.f32 %v1210, 0.0
        %v1219 = vmax.f32 %v1211, 0.0
        %v1220 = vmax.f32 %v1212, 0.0
        %v1221 = vmax.f32 %v1213, 0.0
        %v1222 = vmax.f32 %v1214, 0.0
        %v1223 = vmax.f32 %v1215, 0.0
        %v1224 = vmax.f32 %v1216, 0.0
        %1225 = vmatprep.subr.mxu0 %v1218
        %1226 = vmatpush1.msra.mxu0 %v1217
        %1227 = vmatprep.subr.mxu0 %v1220
        %1228 = vmatpush1.msra.mxu0 %v1219
        %1229 = vmatprep.subr.mxu0 %v1222
        %1230 = vmatpush1.msra.mxu0 %v1221
        %1231 = vmatprep.subr.mxu0 %v1224
        %1232 = vmatpush1.msra.mxu0 %v1223
        %1233 = vmatprep.subr.mxu0 0.0
        %1234 = vmatpush1.msra.mxu0 0.0
        %1235 = vmatprep.subr.mxu0 0.0
        %1236 = vmatpush1.msra.mxu0 0.0
        %1237 = vmatprep.subr.mxu0 0.0
        %1238 = vmatpush1.msra.mxu0 0.0
        %1239 = vmatprep.subr.mxu0 0.0
        %1240 = vmatpush1.msra.mxu0 0.0
        %1241 = vmatprep.subr.mxu0 0.0
        %1242 = vmatpush1.msra.mxu0 0.0
        %1243 = vmatprep.subr.mxu0 0.0
        %1244 = vmatpush1.msra.mxu0 0.0
        %1245 = vmatprep.subr.mxu0 0.0
        %1246 = vmatpush1.msra.mxu0 0.0
        %1247 = vmatprep.subr.mxu0 0.0
        %1248 = vmatpush1.msra.mxu0 0.0
        %1249 = vmatprep.subr.mxu0 0.0
        %1250 = vmatpush1.msra.mxu0 0.0
        %1251 = vmatprep.subr.mxu0 0.0
        %1252 = vmatpush1.msra.mxu0 0.0
        %1253 = vmatprep.subr.mxu0 0.0
        %1254 = vmatpush1.msra.mxu0 0.0
        %1255 = vmatprep.subr.mxu0 0.0
        %1256 = vmatpush1.msra.mxu0 0.0
        %1257 = vmatprep.subr.mxu0 0.0
        %1258 = vmatpush1.msra.mxu0 0.0
        %1259 = vmatprep.subr.mxu0 0.0
        %1260 = vmatpush1.msra.mxu0 0.0
        %1261 = vmatprep.subr.mxu0 0.0
        %1262 = vmatpush1.msra.mxu0 0.0
        %1263 = vmatprep.subr.mxu0 0.0
        %1264 = vmatpush1.msra.mxu0 0.0
        %1265 = vmatprep.subr.mxu0 0.0
        %1266 = vmatpush1.msra.mxu0 0.0
        %1267 = vmatprep.subr.mxu0 0.0
        %1268 = vmatpush1.msra.mxu0 0.0
        %1269 = vmatprep.subr.mxu0 0.0
        %1270 = vmatpush1.msra.mxu0 0.0
        %1271 = vmatprep.subr.mxu0 0.0
        %1272 = vmatpush1.msra.mxu0 0.0
        %1273 = vmatprep.subr.mxu0 0.0
        %1274 = vmatpush1.msra.mxu0 0.0
        %1275 = vmatprep.subr.mxu0 0.0
        %1276 = vmatpush1.msra.mxu0 0.0
        %1277 = vmatprep.subr.mxu0 0.0
        %1278 = vmatpush1.msra.mxu0 0.0
        %1279 = vmatprep.subr.mxu0 0.0
        %1280 = vmatpush1.msra.mxu0 0.0
        %1281 = vmatprep.subr.mxu0 0.0
        %1282 = vmatpush1.msra.mxu0 0.0
        %1283 = vmatprep.subr.mxu0 0.0
        %1284 = vmatpush1.msra.mxu0 0.0
        %1285 = vmatprep.subr.mxu0 0.0
        %1286 = vmatpush1.msra.mxu0 0.0
        %1287 = vmatprep.subr.mxu0 0.0
        %1288 = vmatpush1.msra.mxu0 0.0
        %1289 = vmatprep.mubr.f32.mxu0 0.0
        %1290 = vmatmul.mubr.f32.gmra.mrb[0].mxu0 %v542
        %v1291 = vpop.f32.mrb[0].mxu0
        %v1292 = vadd.f32 %v514, %v1291
        %v1293 = vpop.f32.mrb[0].mxu0
        %v1294 = vadd.f32 %v514, %v1293
        %1295 = vdwg.mxu0
        %v1296 = vsub.f32 0.0, %v1292
        %v1297 = vsub.f32 0.0, %v1294
        %v1298 = vmul.f32 %v1296, 1.442695
        %v1299 = vpow.pop %v1298
        %v1300 = vmul.f32 %v1297, 1.442695
        %v1301 = vpow.pop %v1300
        %v1302 = vadd.f32 %v1299, 1.0
        %v1303 = vadd.f32 %v1301, 1.0
        %v1304 = vrcp.pop %v1302
        %v1305 = vmul.f32 1.0, %v1304
        %v1306 = vrcp.pop %v1303
        %v1307 = vmul.f32 1.0, %v1306
        %v1308 = vmax.f32 %v1292, 0.0
        %v1309 = vmax.f32 %v1294, 0.0
        %v1310 = vsub.f32 0.0, %v1308
        %v1311 = vsub.f32 0.0, %v1309
        %v1312 = vmul.f32 %v1310, 0.25
        %v1313 = vmul.f32 %v1311, 0.25
        %v1314 = vmul.f32 %v1312, 1.442695
        %v1315 = vpow.pop %v1314
        %v1316 = vmul.f32 %v1313, 1.442695
        %v1317 = vpow.pop %v1316
        %v1318 = vsub.f32 1.0, %v1315
        %v1319 = vsub.f32 1.0, %v1317
        %v1320 = vmul.f32 %v1199, %v1318
        %v1321 = vmul.f32 %v1200, %v1319
        %v1322 = vlaneseq
        %v1323 = vshrl.u32 %v1322, 7
        %v1324 = vsub.s32 3, %v1323
        %v1325 = vrot.slane %v1320, %v1324
        %v1326 = vlaneseq
        %v1327 = vshrl.u32 %v1326, 7
        %v1328 = vsub.s32 3, %v1327
        %v1329 = vrot.slane %v1321, %v1328
        %v1330 = vmul.f32 %v1325, %v1305
        %v1331 = vmul.f32 %v1329, %v1307
        %v1332 = vadd.f32 %v1195, %v1330
        %v1333 = vadd.f32 %v1196, %v1331
        %v1334 = vsub.f32 1.0, %v1318
        %v1335 = vsub.f32 1.0, %v1319
        %v1336 = vmul.f32 %v1199, %v1334
        %v1337 = vmul.f32 %v1200, %v1335
        %v1338 = vmul.f32 %v368, 3.875
        %v1339 = vmul.f32 %v370, 3.875
        %v1340 = vmul.f32 %v374, 3.875
        %v1341 = vmul.f32 %v376, 3.875
        %v1342 = vmul.f32 %v380, 3.875
        %v1343 = vmul.f32 %v382, 3.875
        %v1344 = vmul.f32 %v386, 3.875
        %v1345 = vmul.f32 %v388, 3.875
        %v1346 = vadd.f32 %v487, %v1338
        %v1347 = vadd.f32 %v489, %v1339
        %v1348 = vadd.f32 %v493, %v1340
        %v1349 = vadd.f32 %v495, %v1341
        %v1350 = vadd.f32 %v499, %v1342
        %v1351 = vadd.f32 %v501, %v1343
        %v1352 = vadd.f32 %v505, %v1344
        %v1353 = vadd.f32 %v507, %v1345
        %v1354 = vmax.f32 %v1346, 0.0
        %v1355 = vmax.f32 %v1347, 0.0
        %v1356 = vmax.f32 %v1348, 0.0
        %v1357 = vmax.f32 %v1349, 0.0
        %v1358 = vmax.f32 %v1350, 0.0
        %v1359 = vmax.f32 %v1351, 0.0
        %v1360 = vmax.f32 %v1352, 0.0
        %v1361 = vmax.f32 %v1353, 0.0
        %1362 = vmatprep.subr.mxu0 %v1355
        %1363 = vmatpush1.msra.mxu0 %v1354
        %1364 = vmatprep.subr.mxu0 %v1357
        %1365 = vmatpush1.msra.mxu0 %v1356
        %1366 = vmatprep.subr.mxu0 %v1359
        %1367 = vmatpush1.msra.mxu0 %v1358
        %1368 = vmatprep.subr.mxu0 %v1361
        %1369 = vmatpush1.msra.mxu0 %v1360
        %1370 = vmatprep.subr.mxu0 0.0
        %1371 = vmatpush1.msra.mxu0 0.0
        %1372 = vmatprep.subr.mxu0 0.0
        %1373 = vmatpush1.msra.mxu0 0.0
        %1374 = vmatprep.subr.mxu0 0.0
        %1375 = vmatpush1.msra.mxu0 0.0
        %1376 = vmatprep.subr.mxu0 0.0
        %1377 = vmatpush1.msra.mxu0 0.0
        %1378 = vmatprep.subr.mxu0 0.0
        %1379 = vmatpush1.msra.mxu0 0.0
        %1380 = vmatprep.subr.mxu0 0.0
        %1381 = vmatpush1.msra.mxu0 0.0
        %1382 = vmatprep.subr.mxu0 0.0
        %1383 = vmatpush1.msra.mxu0 0.0
        %1384 = vmatprep.subr.mxu0 0.0
        %1385 = vmatpush1.msra.mxu0 0.0
        %1386 = vmatprep.subr.mxu0 0.0
        %1387 = vmatpush1.msra.mxu0 0.0
        %1388 = vmatprep.subr.mxu0 0.0
        %1389 = vmatpush1.msra.mxu0 0.0
        %1390 = vmatprep.subr.mxu0 0.0
        %1391 = vmatpush1.msra.mxu0 0.0
        %1392 = vmatprep.subr.mxu0 0.0
        %1393 = vmatpush1.msra.mxu0 0.0
        %1394 = vmatprep.subr.mxu0 0.0
        %1395 = vmatpush1.msra.mxu0 0.0
        %1396 = vmatprep.subr.mxu0 0.0
        %1397 = vmatpush1.msra.mxu0 0.0
        %1398 = vmatprep.subr.mxu0 0.0
        %1399 = vmatpush1.msra.mxu0 0.0
        %1400 = vmatprep.subr.mxu0 0.0
        %1401 = vmatpush1.msra.mxu0 0.0
        %1402 = vmatprep.subr.mxu0 0.0
        %1403 = vmatpush1.msra.mxu0 0.0
        %1404 = vmatprep.subr.mxu0 0.0
        %1405 = vmatpush1.msra.mxu0 0.0
        %1406 = vmatprep.subr.mxu0 0.0
        %1407 = vmatpush1.msra.mxu0 0.0
        %1408 = vmatprep.subr.mxu0 0.0
        %1409 = vmatpush1.msra.mxu0 0.0
        %1410 = vmatprep.subr.mxu0 0.0
        %1411 = vmatpush1.msra.mxu0 0.0
        %1412 = vmatprep.subr.mxu0 0.0
        %1413 = vmatpush1.msra.mxu0 0.0
        %1414 = vmatprep.subr.mxu0 0.0
        %1415 = vmatpush1.msra.mxu0 0.0
        %1416 = vmatprep.subr.mxu0 0.0
        %1417 = vmatpush1.msra.mxu0 0.0
        %1418 = vmatprep.subr.mxu0 0.0
        %1419 = vmatpush1.msra.mxu0 0.0
        %1420 = vmatprep.subr.mxu0 0.0
        %1421 = vmatpush1.msra.mxu0 0.0
        %1422 = vmatprep.subr.mxu0 0.0
        %1423 = vmatpush1.msra.mxu0 0.0
        %1424 = vmatprep.subr.mxu0 0.0
        %1425 = vmatpush1.msra.mxu0 0.0
        %1426 = vmatprep.mubr.f32.mxu0 0.0
        %1427 = vmatmul.mubr.f32.gmra.mrb[0].mxu0 %v542
        %v1428 = vpop.f32.mrb[0].mxu0
        %v1429 = vadd.f32 %v514, %v1428
        %v1430 = vpop.f32.mrb[0].mxu0
        %v1431 = vadd.f32 %v514, %v1430
        %1432 = vdwg.mxu0
        %v1433 = vsub.f32 0.0, %v1429
        %v1434 = vsub.f32 0.0, %v1431
        %v1435 = vmul.f32 %v1433, 1.442695
        %v1436 = vpow.pop %v1435
        %v1437 = vmul.f32 %v1434, 1.442695
        %v1438 = vpow.pop %v1437
        %v1439 = vadd.f32 %v1436, 1.0
        %v1440 = vadd.f32 %v1438, 1.0
        %v1441 = vrcp.pop %v1439
        %v1442 = vmul.f32 1.0, %v1441
        %v1443 = vrcp.pop %v1440
        %v1444 = vmul.f32 1.0, %v1443
        %v1445 = vmax.f32 %v1429, 0.0
        %v1446 = vmax.f32 %v1431, 0.0
        %v1447 = vsub.f32 0.0, %v1445
        %v1448 = vsub.f32 0.0, %v1446
        %v1449 = vmul.f32 %v1447, 0.25
        %v1450 = vmul.f32 %v1448, 0.25
        %v1451 = vmul.f32 %v1449, 1.442695
        %v1452 = vpow.pop %v1451
        %v1453 = vmul.f32 %v1450, 1.442695
        %v1454 = vpow.pop %v1453
        %v1455 = vsub.f32 1.0, %v1452
        %v1456 = vsub.f32 1.0, %v1454
        %v1457 = vmul.f32 %v1336, %v1455
        %v1458 = vmul.f32 %v1337, %v1456
        %v1459 = vlaneseq
        %v1460 = vshrl.u32 %v1459, 7
        %v1461 = vsub.s32 3, %v1460
        %v1462 = vrot.slane %v1457, %v1461
        %v1463 = vlaneseq
        %v1464 = vshrl.u32 %v1463, 7
        %v1465 = vsub.s32 3, %v1464
        %v1466 = vrot.slane %v1458, %v1465
        %v1467 = vmul.f32 %v1462, %v1442
        %v1468 = vmul.f32 %v1466, %v1444
        %v1469 = vadd.f32 %v1332, %v1467
        %v1470 = vadd.f32 %v1333, %v1468
        %v1471 = vsub.f32 1.0, %v1455
        %v1472 = vsub.f32 1.0, %v1456
        %v1473 = vmul.f32 %v1336, %v1471
        %v1474 = vmul.f32 %v1337, %v1472
        %v1475 = vmul.f32 %v368, 4.25
        %v1476 = vmul.f32 %v370, 4.25
        %v1477 = vmul.f32 %v374, 4.25
        %v1478 = vmul.f32 %v376, 4.25
        %v1479 = vmul.f32 %v380, 4.25
        %v1480 = vmul.f32 %v382, 4.25
        %v1481 = vmul.f32 %v386, 4.25
        %v1482 = vmul.f32 %v388, 4.25
        %v1483 = vadd.f32 %v487, %v1475
        %v1484 = vadd.f32 %v489, %v1476
        %v1485 = vadd.f32 %v493, %v1477
        %v1486 = vadd.f32 %v495, %v1478
        %v1487 = vadd.f32 %v499, %v1479
        %v1488 = vadd.f32 %v501, %v1480
        %v1489 = vadd.f32 %v505, %v1481
        %v1490 = vadd.f32 %v507, %v1482
        %v1491 = vmax.f32 %v1483, 0.0
        %v1492 = vmax.f32 %v1484, 0.0
        %v1493 = vmax.f32 %v1485, 0.0
        %v1494 = vmax.f32 %v1486, 0.0
        %v1495 = vmax.f32 %v1487, 0.0
        %v1496 = vmax.f32 %v1488, 0.0
        %v1497 = vmax.f32 %v1489, 0.0
        %v1498 = vmax.f32 %v1490, 0.0
        %1499 = vmatprep.subr.mxu0 %v1492
        %1500 = vmatpush1.msra.mxu0 %v1491
        %1501 = vmatprep.subr.mxu0 %v1494
        %1502 = vmatpush1.msra.mxu0 %v1493
        %1503 = vmatprep.subr.mxu0 %v1496
        %1504 = vmatpush1.msra.mxu0 %v1495
        %1505 = vmatprep.subr.mxu0 %v1498
        %1506 = vmatpush1.msra.mxu0 %v1497
        %1507 = vmatprep.subr.mxu0 0.0
        %1508 = vmatpush1.msra.mxu0 0.0
        %1509 = vmatprep.subr.mxu0 0.0
        %1510 = vmatpush1.msra.mxu0 0.0
        %1511 = vmatprep.subr.mxu0 0.0
        %1512 = vmatpush1.msra.mxu0 0.0
        %1513 = vmatprep.subr.mxu0 0.0
        %1514 = vmatpush1.msra.mxu0 0.0
        %1515 = vmatprep.subr.mxu0 0.0
        %1516 = vmatpush1.msra.mxu0 0.0
        %1517 = vmatprep.subr.mxu0 0.0
        %1518 = vmatpush1.msra.mxu0 0.0
        %1519 = vmatprep.subr.mxu0 0.0
        %1520 = vmatpush1.msra.mxu0 0.0
        %1521 = vmatprep.subr.mxu0 0.0
        %1522 = vmatpush1.msra.mxu0 0.0
        %1523 = vmatprep.subr.mxu0 0.0
        %1524 = vmatpush1.msra.mxu0 0.0
        %1525 = vmatprep.subr.mxu0 0.0
        %1526 = vmatpush1.msra.mxu0 0.0
        %1527 = vmatprep.subr.mxu0 0.0
        %1528 = vmatpush1.msra.mxu0 0.0
        %1529 = vmatprep.subr.mxu0 0.0
        %1530 = vmatpush1.msra.mxu0 0.0
        %1531 = vmatprep.subr.mxu0 0.0
        %1532 = vmatpush1.msra.mxu0 0.0
        %1533 = vmatprep.subr.mxu0 0.0
        %1534 = vmatpush1.msra.mxu0 0.0
        %1535 = vmatprep.subr.mxu0 0.0
        %1536 = vmatpush1.msra.mxu0 0.0
        %1537 = vmatprep.subr.mxu0 0.0
        %1538 = vmatpush1.msra.mxu0 0.0
        %1539 = vmatprep.subr.mxu0 0.0
        %1540 = vmatpush1.msra.mxu0 0.0
        %1541 = vmatprep.subr.mxu0 0.0
        %1542 = vmatpush1.msra.mxu0 0.0
        %1543 = vmatprep.subr.mxu0 0.0
        %1544 = vmatpush1.msra.mxu0 0.0
        %1545 = vmatprep.subr.mxu0 0.0
        %1546 = vmatpush1.msra.mxu0 0.0
        %1547 = vmatprep.subr.mxu0 0.0
        %1548 = vmatpush1.msra.mxu0 0.0
        %1549 = vmatprep.subr.mxu0 0.0
        %1550 = vmatpush1.msra.mxu0 0.0
        %1551 = vmatprep.subr.mxu0 0.0
        %1552 = vmatpush1.msra.mxu0 0.0
        %1553 = vmatprep.subr.mxu0 0.0
        %1554 = vmatpush1.msra.mxu0 0.0
        %1555 = vmatprep.subr.mxu0 0.0
        %1556 = vmatpush1.msra.mxu0 0.0
        %1557 = vmatprep.subr.mxu0 0.0
        %1558 = vmatpush1.msra.mxu0 0.0
        %1559 = vmatprep.subr.mxu0 0.0
        %1560 = vmatpush1.msra.mxu0 0.0
        %1561 = vmatprep.subr.mxu0 0.0
        %1562 = vmatpush1.msra.mxu0 0.0
        %1563 = vmatprep.mubr.f32.mxu0 0.0
        %1564 = vmatmul.mubr.f32.gmra.mrb[0].mxu0 %v542
        %v1565 = vpop.f32.mrb[0].mxu0
        %v1566 = vadd.f32 %v514, %v1565
        %v1567 = vpop.f32.mrb[0].mxu0
        %v1568 = vadd.f32 %v514, %v1567
        %1569 = vdwg.mxu0
        %v1570 = vsub.f32 0.0, %v1566
        %v1571 = vsub.f32 0.0, %v1568
        %v1572 = vmul.f32 %v1570, 1.442695
        %v1573 = vpow.pop %v1572
        %v1574 = vmul.f32 %v1571, 1.442695
        %v1575 = vpow.pop %v1574
        %v1576 = vadd.f32 %v1573, 1.0
        %v1577 = vadd.f32 %v1575, 1.0
        %v1578 = vrcp.pop %v1576
        %v1579 = vmul.f32 1.0, %v1578
        %v1580 = vrcp.pop %v1577
        %v1581 = vmul.f32 1.0, %v1580
        %v1582 = vmax.f32 %v1566, 0.0
        %v1583 = vmax.f32 %v1568, 0.0
        %v1584 = vsub.f32 0.0, %v1582
        %v1585 = vsub.f32 0.0, %v1583
        %v1586 = vmul.f32 %v1584, 0.25
        %v1587 = vmul.f32 %v1585, 0.25
        %v1588 = vmul.f32 %v1586, 1.442695
        %v1589 = vpow.pop %v1588
        %v1590 = vmul.f32 %v1587, 1.442695
        %v1591 = vpow.pop %v1590
        %v1592 = vsub.f32 1.0, %v1589
        %v1593 = vsub.f32 1.0, %v1591
        %v1594 = vmul.f32 %v1473, %v1592
        %v1595 = vmul.f32 %v1474, %v1593
        %v1596 = vlaneseq
        %v1597 = vshrl.u32 %v1596, 7
        %v1598 = vsub.s32 3, %v1597
        %v1599 = vrot.slane %v1594, %v1598
        %v1600 = vlaneseq
        %v1601 = vshrl.u32 %v1600, 7
        %v1602 = vsub.s32 3, %v1601
        %v1603 = vrot.slane %v1595, %v1602
        %v1604 = vmul.f32 %v1599, %v1579
        %v1605 = vmul.f32 %v1603, %v1581
        %v1606 = vadd.f32 %v1469, %v1604
        %v1607 = vadd.f32 %v1470, %v1605
        %v1608 = vsub.f32 1.0, %v1592
        %v1609 = vsub.f32 1.0, %v1593
        %v1610 = vmul.f32 %v1473, %v1608
        %v1611 = vmul.f32 %v1474, %v1609
        %v1612 = vmul.f32 %v368, 4.625
        %v1613 = vmul.f32 %v370, 4.625
        %v1614 = vmul.f32 %v374, 4.625
        %v1615 = vmul.f32 %v376, 4.625
        %v1616 = vmul.f32 %v380, 4.625
        %v1617 = vmul.f32 %v382, 4.625
        %v1618 = vmul.f32 %v386, 4.625
        %v1619 = vmul.f32 %v388, 4.625
        %v1620 = vadd.f32 %v487, %v1612
        %v1621 = vadd.f32 %v489, %v1613
        %v1622 = vadd.f32 %v493, %v1614
        %v1623 = vadd.f32 %v495, %v1615
        %v1624 = vadd.f32 %v499, %v1616
        %v1625 = vadd.f32 %v501, %v1617
        %v1626 = vadd.f32 %v505, %v1618
        %v1627 = vadd.f32 %v507, %v1619
        %v1628 = vmax.f32 %v1620, 0.0
        %v1629 = vmax.f32 %v1621, 0.0
        %v1630 = vmax.f32 %v1622, 0.0
        %v1631 = vmax.f32 %v1623, 0.0
        %v1632 = vmax.f32 %v1624, 0.0
        %v1633 = vmax.f32 %v1625, 0.0
        %v1634 = vmax.f32 %v1626, 0.0
        %v1635 = vmax.f32 %v1627, 0.0
        %1636 = vmatprep.subr.mxu0 %v1629
        %1637 = vmatpush1.msra.mxu0 %v1628
        %1638 = vmatprep.subr.mxu0 %v1631
        %1639 = vmatpush1.msra.mxu0 %v1630
        %1640 = vmatprep.subr.mxu0 %v1633
        %1641 = vmatpush1.msra.mxu0 %v1632
        %1642 = vmatprep.subr.mxu0 %v1635
        %1643 = vmatpush1.msra.mxu0 %v1634
        %1644 = vmatprep.subr.mxu0 0.0
        %1645 = vmatpush1.msra.mxu0 0.0
        %1646 = vmatprep.subr.mxu0 0.0
        %1647 = vmatpush1.msra.mxu0 0.0
        %1648 = vmatprep.subr.mxu0 0.0
        %1649 = vmatpush1.msra.mxu0 0.0
        %1650 = vmatprep.subr.mxu0 0.0
        %1651 = vmatpush1.msra.mxu0 0.0
        %1652 = vmatprep.subr.mxu0 0.0
        %1653 = vmatpush1.msra.mxu0 0.0
        %1654 = vmatprep.subr.mxu0 0.0
        %1655 = vmatpush1.msra.mxu0 0.0
        %1656 = vmatprep.subr.mxu0 0.0
        %1657 = vmatpush1.msra.mxu0 0.0
        %1658 = vmatprep.subr.mxu0 0.0
        %1659 = vmatpush1.msra.mxu0 0.0
        %1660 = vmatprep.subr.mxu0 0.0
        %1661 = vmatpush1.msra.mxu0 0.0
        %1662 = vmatprep.subr.mxu0 0.0
        %1663 = vmatpush1.msra.mxu0 0.0
        %1664 = vmatprep.subr.mxu0 0.0
        %1665 = vmatpush1.msra.mxu0 0.0
        %1666 = vmatprep.subr.mxu0 0.0
        %1667 = vmatpush1.msra.mxu0 0.0
        %1668 = vmatprep.subr.mxu0 0.0
        %1669 = vmatpush1.msra.mxu0 0.0
        %1670 = vmatprep.subr.mxu0 0.0
        %1671 = vmatpush1.msra.mxu0 0.0
        %1672 = vmatprep.subr.mxu0 0.0
        %1673 = vmatpush1.msra.mxu0 0.0
        %1674 = vmatprep.subr.mxu0 0.0
        %1675 = vmatpush1.msra.mxu0 0.0
        %1676 = vmatprep.subr.mxu0 0.0
        %1677 = vmatpush1.msra.mxu0 0.0
        %1678 = vmatprep.subr.mxu0 0.0
        %1679 = vmatpush1.msra.mxu0 0.0
        %1680 = vmatprep.subr.mxu0 0.0
        %1681 = vmatpush1.msra.mxu0 0.0
        %1682 = vmatprep.subr.mxu0 0.0
        %1683 = vmatpush1.msra.mxu0 0.0
        %1684 = vmatprep.subr.mxu0 0.0
        %1685 = vmatpush1.msra.mxu0 0.0
        %1686 = vmatprep.subr.mxu0 0.0
        %1687 = vmatpush1.msra.mxu0 0.0
        %1688 = vmatprep.subr.mxu0 0.0
        %1689 = vmatpush1.msra.mxu0 0.0
        %1690 = vmatprep.subr.mxu0 0.0
        %1691 = vmatpush1.msra.mxu0 0.0
        %1692 = vmatprep.subr.mxu0 0.0
        %1693 = vmatpush1.msra.mxu0 0.0
        %1694 = vmatprep.subr.mxu0 0.0
        %1695 = vmatpush1.msra.mxu0 0.0
        %1696 = vmatprep.subr.mxu0 0.0
        %1697 = vmatpush1.msra.mxu0 0.0
        %1698 = vmatprep.subr.mxu0 0.0
        %1699 = vmatpush1.msra.mxu0 0.0
        %1700 = vmatprep.mubr.f32.mxu0 0.0
        %1701 = vmatmul.mubr.f32.gmra.mrb[0].mxu0 %v542
        %v1702 = vpop.f32.mrb[0].mxu0
        %v1703 = vadd.f32 %v514, %v1702
        %v1704 = vpop.f32.mrb[0].mxu0
        %v1705 = vadd.f32 %v514, %v1704
        %1706 = vdwg.mxu0
        %v1707 = vsub.f32 0.0, %v1703
        %v1708 = vsub.f32 0.0, %v1705
        %v1709 = vmul.f32 %v1707, 1.442695
        %v1710 = vpow.pop %v1709
        %v1711 = vmul.f32 %v1708, 1.442695
        %v1712 = vpow.pop %v1711
        %v1713 = vadd.f32 %v1710, 1.0
        %v1714 = vadd.f32 %v1712, 1.0
        %v1715 = vrcp.pop %v1713
        %v1716 = vmul.f32 1.0, %v1715
        %v1717 = vrcp.pop %v1714
        %v1718 = vmul.f32 1.0, %v1717
        %v1719 = vmax.f32 %v1703, 0.0
        %v1720 = vmax.f32 %v1705, 0.0
        %v1721 = vsub.f32 0.0, %v1719
        %v1722 = vsub.f32 0.0, %v1720
        %v1723 = vmul.f32 %v1721, 0.25
        %v1724 = vmul.f32 %v1722, 0.25
        %v1725 = vmul.f32 %v1723, 1.442695
        %v1726 = vpow.pop %v1725
        %v1727 = vmul.f32 %v1724, 1.442695
        %v1728 = vpow.pop %v1727
        %v1729 = vsub.f32 1.0, %v1726
        %v1730 = vsub.f32 1.0, %v1728
        %v1731 = vmul.f32 %v1610, %v1729
        %v1732 = vmul.f32 %v1611, %v1730
        %v1733 = vlaneseq
        %v1734 = vshrl.u32 %v1733, 7
        %v1735 = vsub.s32 3, %v1734
        %v1736 = vrot.slane %v1731, %v1735
        %v1737 = vlaneseq
        %v1738 = vshrl.u32 %v1737, 7
        %v1739 = vsub.s32 3, %v1738
        %v1740 = vrot.slane %v1732, %v1739
        %v1741 = vmul.f32 %v1736, %v1716
        %v1742 = vmul.f32 %v1740, %v1718
        %v1743 = vadd.f32 %v1606, %v1741
        %v1744 = vadd.f32 %v1607, %v1742
        %v1745 = vsub.f32 1.0, %v1729
        %v1746 = vsub.f32 1.0, %v1730
        %v1747 = vmul.f32 %v1610, %v1745
        %v1748 = vmul.f32 %v1611, %v1746
        %v1749 = vmul.f32 %v368, 5.0
        %v1750 = vmul.f32 %v370, 5.0
        %v1751 = vmul.f32 %v374, 5.0
        %v1752 = vmul.f32 %v376, 5.0
        %v1753 = vmul.f32 %v380, 5.0
        %v1754 = vmul.f32 %v382, 5.0
        %v1755 = vmul.f32 %v386, 5.0
        %v1756 = vmul.f32 %v388, 5.0
        %v1757 = vadd.f32 %v487, %v1749
        %v1758 = vadd.f32 %v489, %v1750
        %v1759 = vadd.f32 %v493, %v1751
        %v1760 = vadd.f32 %v495, %v1752
        %v1761 = vadd.f32 %v499, %v1753
        %v1762 = vadd.f32 %v501, %v1754
        %v1763 = vadd.f32 %v505, %v1755
        %v1764 = vadd.f32 %v507, %v1756
        %v1765 = vmax.f32 %v1757, 0.0
        %v1766 = vmax.f32 %v1758, 0.0
        %v1767 = vmax.f32 %v1759, 0.0
        %v1768 = vmax.f32 %v1760, 0.0
        %v1769 = vmax.f32 %v1761, 0.0
        %v1770 = vmax.f32 %v1762, 0.0
        %v1771 = vmax.f32 %v1763, 0.0
        %v1772 = vmax.f32 %v1764, 0.0
        %1773 = vmatprep.subr.mxu0 %v1766
        %1774 = vmatpush1.msra.mxu0 %v1765
        %1775 = vmatprep.subr.mxu0 %v1768
        %1776 = vmatpush1.msra.mxu0 %v1767
        %1777 = vmatprep.subr.mxu0 %v1770
        %1778 = vmatpush1.msra.mxu0 %v1769
        %1779 = vmatprep.subr.mxu0 %v1772
        %1780 = vmatpush1.msra.mxu0 %v1771
        %1781 = vmatprep.subr.mxu0 0.0
        %1782 = vmatpush1.msra.mxu0 0.0
        %1783 = vmatprep.subr.mxu0 0.0
        %1784 = vmatpush1.msra.mxu0 0.0
        %1785 = vmatprep.subr.mxu0 0.0
        %1786 = vmatpush1.msra.mxu0 0.0
        %1787 = vmatprep.subr.mxu0 0.0
        %1788 = vmatpush1.msra.mxu0 0.0
        %1789 = vmatprep.subr.mxu0 0.0
        %1790 = vmatpush1.msra.mxu0 0.0
        %1791 = vmatprep.subr.mxu0 0.0
        %1792 = vmatpush1.msra.mxu0 0.0
        %1793 = vmatprep.subr.mxu0 0.0
        %1794 = vmatpush1.msra.mxu0 0.0
        %1795 = vmatprep.subr.mxu0 0.0
        %1796 = vmatpush1.msra.mxu0 0.0
        %1797 = vmatprep.subr.mxu0 0.0
        %1798 = vmatpush1.msra.mxu0 0.0
        %1799 = vmatprep.subr.mxu0 0.0
        %1800 = vmatpush1.msra.mxu0 0.0
        %1801 = vmatprep.subr.mxu0 0.0
        %1802 = vmatpush1.msra.mxu0 0.0
        %1803 = vmatprep.subr.mxu0 0.0
        %1804 = vmatpush1.msra.mxu0 0.0
        %1805 = vmatprep.subr.mxu0 0.0
        %1806 = vmatpush1.msra.mxu0 0.0
        %1807 = vmatprep.subr.mxu0 0.0
        %1808 = vmatpush1.msra.mxu0 0.0
        %1809 = vmatprep.subr.mxu0 0.0
        %1810 = vmatpush1.msra.mxu0 0.0
        %1811 = vmatprep.subr.mxu0 0.0
        %1812 = vmatpush1.msra.mxu0 0.0
        %1813 = vmatprep.subr.mxu0 0.0
        %1814 = vmatpush1.msra.mxu0 0.0
        %1815 = vmatprep.subr.mxu0 0.0
        %1816 = vmatpush1.msra.mxu0 0.0
        %1817 = vmatprep.subr.mxu0 0.0
        %1818 = vmatpush1.msra.mxu0 0.0
        %1819 = vmatprep.subr.mxu0 0.0
        %1820 = vmatpush1.msra.mxu0 0.0
        %1821 = vmatprep.subr.mxu0 0.0
        %1822 = vmatpush1.msra.mxu0 0.0
        %1823 = vmatprep.subr.mxu0 0.0
        %1824 = vmatpush1.msra.mxu0 0.0
        %1825 = vmatprep.subr.mxu0 0.0
        %1826 = vmatpush1.msra.mxu0 0.0
        %1827 = vmatprep.subr.mxu0 0.0
        %1828 = vmatpush1.msra.mxu0 0.0
        %1829 = vmatprep.subr.mxu0 0.0
        %1830 = vmatpush1.msra.mxu0 0.0
        %1831 = vmatprep.subr.mxu0 0.0
        %1832 = vmatpush1.msra.mxu0 0.0
        %1833 = vmatprep.subr.mxu0 0.0
        %1834 = vmatpush1.msra.mxu0 0.0
        %1835 = vmatprep.subr.mxu0 0.0
        %1836 = vmatpush1.msra.mxu0 0.0
        %1837 = vmatprep.mubr.f32.mxu0 0.0
        %1838 = vmatmul.mubr.f32.gmra.mrb[0].mxu0 %v542
        %v1839 = vpop.f32.mrb[0].mxu0
        %v1840 = vadd.f32 %v514, %v1839
        %v1841 = vpop.f32.mrb[0].mxu0
        %v1842 = vadd.f32 %v514, %v1841
        %1843 = vdwg.mxu0
        %v1844 = vsub.f32 0.0, %v1840
        %v1845 = vsub.f32 0.0, %v1842
        %v1846 = vmul.f32 %v1844, 1.442695
        %v1847 = vpow.pop %v1846
        %v1848 = vmul.f32 %v1845, 1.442695
        %v1849 = vpow.pop %v1848
        %v1850 = vadd.f32 %v1847, 1.0
        %v1851 = vadd.f32 %v1849, 1.0
        %v1852 = vrcp.pop %v1850
        %v1853 = vmul.f32 1.0, %v1852
        %v1854 = vrcp.pop %v1851
        %v1855 = vmul.f32 1.0, %v1854
        %v1856 = vmax.f32 %v1840, 0.0
        %v1857 = vmax.f32 %v1842, 0.0
        %v1858 = vsub.f32 0.0, %v1856
        %v1859 = vsub.f32 0.0, %v1857
        %v1860 = vmul.f32 %v1858, 0.25
        %v1861 = vmul.f32 %v1859, 0.25
        %v1862 = vmul.f32 %v1860, 1.442695
        %v1863 = vpow.pop %v1862
        %v1864 = vmul.f32 %v1861, 1.442695
        %v1865 = vpow.pop %v1864
        %v1866 = vsub.f32 1.0, %v1863
        %v1867 = vsub.f32 1.0, %v1865
        %v1868 = vmul.f32 %v1747, %v1866
        %v1869 = vmul.f32 %v1748, %v1867
        %v1870 = vlaneseq
        %v1871 = vshrl.u32 %v1870, 7
        %v1872 = vsub.s32 3, %v1871
        %v1873 = vrot.slane %v1868, %v1872
        %v1874 = vlaneseq
        %v1875 = vshrl.u32 %v1874, 7
        %v1876 = vsub.s32 3, %v1875
        %v1877 = vrot.slane %v1869, %v1876
        %v1878 = vmul.f32 %v1873, %v1853
        %v1879 = vmul.f32 %v1877, %v1855
        %v1880 = vadd.f32 %v1743, %v1878
        %v1881 = vadd.f32 %v1744, %v1879
        %v1882 = vsub.f32 1.0, %v1866
        %v1883 = vsub.f32 1.0, %v1867
        %v1884 = vmul.f32 %v1747, %v1882
        %v1885 = vmul.f32 %v1748, %v1883
        %v1886 = vmul.f32 %v368, 5.375
        %v1887 = vmul.f32 %v370, 5.375
        %v1888 = vmul.f32 %v374, 5.375
        %v1889 = vmul.f32 %v376, 5.375
        %v1890 = vmul.f32 %v380, 5.375
        %v1891 = vmul.f32 %v382, 5.375
        %v1892 = vmul.f32 %v386, 5.375
        %v1893 = vmul.f32 %v388, 5.375
        %v1894 = vadd.f32 %v487, %v1886
        %v1895 = vadd.f32 %v489, %v1887
        %v1896 = vadd.f32 %v493, %v1888
        %v1897 = vadd.f32 %v495, %v1889
        %v1898 = vadd.f32 %v499, %v1890
        %v1899 = vadd.f32 %v501, %v1891
        %v1900 = vadd.f32 %v505, %v1892
        %v1901 = vadd.f32 %v507, %v1893
        %v1902 = vmax.f32 %v1894, 0.0
        %v1903 = vmax.f32 %v1895, 0.0
        %v1904 = vmax.f32 %v1896, 0.0
        %v1905 = vmax.f32 %v1897, 0.0
        %v1906 = vmax.f32 %v1898, 0.0
        %v1907 = vmax.f32 %v1899, 0.0
        %v1908 = vmax.f32 %v1900, 0.0
        %v1909 = vmax.f32 %v1901, 0.0
        %1910 = vmatprep.subr.mxu0 %v1903
        %1911 = vmatpush1.msra.mxu0 %v1902
        %1912 = vmatprep.subr.mxu0 %v1905
        %1913 = vmatpush1.msra.mxu0 %v1904
        %1914 = vmatprep.subr.mxu0 %v1907
        %1915 = vmatpush1.msra.mxu0 %v1906
        %1916 = vmatprep.subr.mxu0 %v1909
        %1917 = vmatpush1.msra.mxu0 %v1908
        %1918 = vmatprep.subr.mxu0 0.0
        %1919 = vmatpush1.msra.mxu0 0.0
        %1920 = vmatprep.subr.mxu0 0.0
        %1921 = vmatpush1.msra.mxu0 0.0
        %1922 = vmatprep.subr.mxu0 0.0
        %1923 = vmatpush1.msra.mxu0 0.0
        %1924 = vmatprep.subr.mxu0 0.0
        %1925 = vmatpush1.msra.mxu0 0.0
        %1926 = vmatprep.subr.mxu0 0.0
        %1927 = vmatpush1.msra.mxu0 0.0
        %1928 = vmatprep.subr.mxu0 0.0
        %1929 = vmatpush1.msra.mxu0 0.0
        %1930 = vmatprep.subr.mxu0 0.0
        %1931 = vmatpush1.msra.mxu0 0.0
        %1932 = vmatprep.subr.mxu0 0.0
        %1933 = vmatpush1.msra.mxu0 0.0
        %1934 = vmatprep.subr.mxu0 0.0
        %1935 = vmatpush1.msra.mxu0 0.0
        %1936 = vmatprep.subr.mxu0 0.0
        %1937 = vmatpush1.msra.mxu0 0.0
        %1938 = vmatprep.subr.mxu0 0.0
        %1939 = vmatpush1.msra.mxu0 0.0
        %1940 = vmatprep.subr.mxu0 0.0
        %1941 = vmatpush1.msra.mxu0 0.0
        %1942 = vmatprep.subr.mxu0 0.0
        %1943 = vmatpush1.msra.mxu0 0.0
        %1944 = vmatprep.subr.mxu0 0.0
        %1945 = vmatpush1.msra.mxu0 0.0
        %1946 = vmatprep.subr.mxu0 0.0
        %1947 = vmatpush1.msra.mxu0 0.0
        %1948 = vmatprep.subr.mxu0 0.0
        %1949 = vmatpush1.msra.mxu0 0.0
        %1950 = vmatprep.subr.mxu0 0.0
        %1951 = vmatpush1.msra.mxu0 0.0
        %1952 = vmatprep.subr.mxu0 0.0
        %1953 = vmatpush1.msra.mxu0 0.0
        %1954 = vmatprep.subr.mxu0 0.0
        %1955 = vmatpush1.msra.mxu0 0.0
        %1956 = vmatprep.subr.mxu0 0.0
        %1957 = vmatpush1.msra.mxu0 0.0
        %1958 = vmatprep.subr.mxu0 0.0
        %1959 = vmatpush1.msra.mxu0 0.0
        %1960 = vmatprep.subr.mxu0 0.0
        %1961 = vmatpush1.msra.mxu0 0.0
        %1962 = vmatprep.subr.mxu0 0.0
        %1963 = vmatpush1.msra.mxu0 0.0
        %1964 = vmatprep.subr.mxu0 0.0
        %1965 = vmatpush1.msra.mxu0 0.0
        %1966 = vmatprep.subr.mxu0 0.0
        %1967 = vmatpush1.msra.mxu0 0.0
        %1968 = vmatprep.subr.mxu0 0.0
        %1969 = vmatpush1.msra.mxu0 0.0
        %1970 = vmatprep.subr.mxu0 0.0
        %1971 = vmatpush1.msra.mxu0 0.0
        %1972 = vmatprep.subr.mxu0 0.0
        %1973 = vmatpush1.msra.mxu0 0.0
        %1974 = vmatprep.mubr.f32.mxu0 0.0
        %1975 = vmatmul.mubr.f32.gmra.mrb[0].mxu0 %v542
        %v1976 = vpop.f32.mrb[0].mxu0
        %v1977 = vadd.f32 %v514, %v1976
        %v1978 = vpop.f32.mrb[0].mxu0
        %v1979 = vadd.f32 %v514, %v1978
        %1980 = vdwg.mxu0
        %v1981 = vsub.f32 0.0, %v1977
        %v1982 = vsub.f32 0.0, %v1979
        %v1983 = vmul.f32 %v1981, 1.442695
        %v1984 = vpow.pop %v1983
        %v1985 = vmul.f32 %v1982, 1.442695
        %v1986 = vpow.pop %v1985
        %v1987 = vadd.f32 %v1984, 1.0
        %v1988 = vadd.f32 %v1986, 1.0
        %v1989 = vrcp.pop %v1987
        %v1990 = vmul.f32 1.0, %v1989
        %v1991 = vrcp.pop %v1988
        %v1992 = vmul.f32 1.0, %v1991
        %v1993 = vmax.f32 %v1977, 0.0
        %v1994 = vmax.f32 %v1979, 0.0
        %v1995 = vsub.f32 0.0, %v1993
        %v1996 = vsub.f32 0.0, %v1994
        %v1997 = vmul.f32 %v1995, 0.25
        %v1998 = vmul.f32 %v1996, 0.25
        %v1999 = vmul.f32 %v1997, 1.442695
        %v2000 = vpow.pop %v1999
        %v2001 = vmul.f32 %v1998, 1.442695
        %v2002 = vpow.pop %v2001
        %v2003 = vsub.f32 1.0, %v2000
        %v2004 = vsub.f32 1.0, %v2002
        %v2005 = vmul.f32 %v1884, %v2003
        %v2006 = vmul.f32 %v1885, %v2004
        %v2007 = vlaneseq
        %v2008 = vshrl.u32 %v2007, 7
        %v2009 = vsub.s32 3, %v2008
        %v2010 = vrot.slane %v2005, %v2009
        %v2011 = vlaneseq
        %v2012 = vshrl.u32 %v2011, 7
        %v2013 = vsub.s32 3, %v2012
        %v2014 = vrot.slane %v2006, %v2013
        %v2015 = vmul.f32 %v2010, %v1990
        %v2016 = vmul.f32 %v2014, %v1992
        %v2017 = vadd.f32 %v1880, %v2015
        %v2018 = vadd.f32 %v1881, %v2016
        %v2019 = vsub.f32 1.0, %v2003
        %v2020 = vsub.f32 1.0, %v2004
        %v2021 = vmul.f32 %v1884, %v2019
        %v2022 = vmul.f32 %v1885, %v2020
        %v2023 = vmul.f32 %v368, 5.75
        %v2024 = vmul.f32 %v370, 5.75
        %v2025 = vmul.f32 %v374, 5.75
        %v2026 = vmul.f32 %v376, 5.75
        %v2027 = vmul.f32 %v380, 5.75
        %v2028 = vmul.f32 %v382, 5.75
        %v2029 = vmul.f32 %v386, 5.75
        %v2030 = vmul.f32 %v388, 5.75
        %v2031 = vadd.f32 %v487, %v2023
        %v2032 = vadd.f32 %v489, %v2024
        %v2033 = vadd.f32 %v493, %v2025
        %v2034 = vadd.f32 %v495, %v2026
        %v2035 = vadd.f32 %v499, %v2027
        %v2036 = vadd.f32 %v501, %v2028
        %v2037 = vadd.f32 %v505, %v2029
        %v2038 = vadd.f32 %v507, %v2030
        %v2039 = vmax.f32 %v2031, 0.0
        %v2040 = vmax.f32 %v2032, 0.0
        %v2041 = vmax.f32 %v2033, 0.0
        %v2042 = vmax.f32 %v2034, 0.0
        %v2043 = vmax.f32 %v2035, 0.0
        %v2044 = vmax.f32 %v2036, 0.0
        %v2045 = vmax.f32 %v2037, 0.0
        %v2046 = vmax.f32 %v2038, 0.0
        %2047 = vmatprep.subr.mxu0 %v2040
        %2048 = vmatpush1.msra.mxu0 %v2039
        %2049 = vmatprep.subr.mxu0 %v2042
        %2050 = vmatpush1.msra.mxu0 %v2041
        %2051 = vmatprep.subr.mxu0 %v2044
        %2052 = vmatpush1.msra.mxu0 %v2043
        %2053 = vmatprep.subr.mxu0 %v2046
        %2054 = vmatpush1.msra.mxu0 %v2045
        %2055 = vmatprep.subr.mxu0 0.0
        %2056 = vmatpush1.msra.mxu0 0.0
        %2057 = vmatprep.subr.mxu0 0.0
        %2058 = vmatpush1.msra.mxu0 0.0
        %2059 = vmatprep.subr.mxu0 0.0
        %2060 = vmatpush1.msra.mxu0 0.0
        %2061 = vmatprep.subr.mxu0 0.0
        %2062 = vmatpush1.msra.mxu0 0.0
        %2063 = vmatprep.subr.mxu0 0.0
        %2064 = vmatpush1.msra.mxu0 0.0
        %2065 = vmatprep.subr.mxu0 0.0
        %2066 = vmatpush1.msra.mxu0 0.0
        %2067 = vmatprep.subr.mxu0 0.0
        %2068 = vmatpush1.msra.mxu0 0.0
        %2069 = vmatprep.subr.mxu0 0.0
        %2070 = vmatpush1.msra.mxu0 0.0
        %2071 = vmatprep.subr.mxu0 0.0
        %2072 = vmatpush1.msra.mxu0 0.0
        %2073 = vmatprep.subr.mxu0 0.0
        %2074 = vmatpush1.msra.mxu0 0.0
        %2075 = vmatprep.subr.mxu0 0.0
        %2076 = vmatpush1.msra.mxu0 0.0
        %2077 = vmatprep.subr.mxu0 0.0
        %2078 = vmatpush1.msra.mxu0 0.0
        %2079 = vmatprep.subr.mxu0 0.0
        %2080 = vmatpush1.msra.mxu0 0.0
        %2081 = vmatprep.subr.mxu0 0.0
        %2082 = vmatpush1.msra.mxu0 0.0
        %2083 = vmatprep.subr.mxu0 0.0
        %2084 = vmatpush1.msra.mxu0 0.0
        %2085 = vmatprep.subr.mxu0 0.0
        %2086 = vmatpush1.msra.mxu0 0.0
        %2087 = vmatprep.subr.mxu0 0.0
        %2088 = vmatpush1.msra.mxu0 0.0
        %2089 = vmatprep.subr.mxu0 0.0
        %2090 = vmatpush1.msra.mxu0 0.0
        %2091 = vmatprep.subr.mxu0 0.0
        %2092 = vmatpush1.msra.mxu0 0.0
        %2093 = vmatprep.subr.mxu0 0.0
        %2094 = vmatpush1.msra.mxu0 0.0
        %2095 = vmatprep.subr.mxu0 0.0
        %2096 = vmatpush1.msra.mxu0 0.0
        %2097 = vmatprep.subr.mxu0 0.0
        %2098 = vmatpush1.msra.mxu0 0.0
        %2099 = vmatprep.subr.mxu0 0.0
        %2100 = vmatpush1.msra.mxu0 0.0
        %2101 = vmatprep.subr.mxu0 0.0
        %2102 = vmatpush1.msra.mxu0 0.0
        %2103 = vmatprep.subr.mxu0 0.0
        %2104 = vmatpush1.msra.mxu0 0.0
        %2105 = vmatprep.subr.mxu0 0.0
        %2106 = vmatpush1.msra.mxu0 0.0
        %2107 = vmatprep.subr.mxu0 0.0
        %2108 = vmatpush1.msra.mxu0 0.0
        %2109 = vmatprep.subr.mxu0 0.0
        %2110 = vmatpush1.msra.mxu0 0.0
        %2111 = vmatprep.mubr.f32.mxu0 0.0
        %2112 = vmatmul.mubr.f32.gmra.mrb[0].mxu0 %v542
        %v2113 = vpop.f32.mrb[0].mxu0
        %v2114 = vadd.f32 %v514, %v2113
        %v2115 = vpop.f32.mrb[0].mxu0
        %v2116 = vadd.f32 %v514, %v2115
        %2117 = vdwg.mxu0
        %v2118 = vsub.f32 0.0, %v2114
        %v2119 = vsub.f32 0.0, %v2116
        %v2120 = vmul.f32 %v2118, 1.442695
        %v2121 = vpow.pop %v2120
        %v2122 = vmul.f32 %v2119, 1.442695
        %v2123 = vpow.pop %v2122
        %v2124 = vadd.f32 %v2121, 1.0
        %v2125 = vadd.f32 %v2123, 1.0
        %v2126 = vrcp.pop %v2124
        %v2127 = vmul.f32 1.0, %v2126
        %v2128 = vrcp.pop %v2125
        %v2129 = vmul.f32 1.0, %v2128
        %v2130 = vmax.f32 %v2114, 0.0
        %v2131 = vmax.f32 %v2116, 0.0
        %v2132 = vsub.f32 0.0, %v2130
        %v2133 = vsub.f32 0.0, %v2131
        %v2134 = vmul.f32 %v2132, 0.25
        %v2135 = vmul.f32 %v2133, 0.25
        %v2136 = vmul.f32 %v2134, 1.442695
        %v2137 = vpow.pop %v2136
        %v2138 = vmul.f32 %v2135, 1.442695
        %v2139 = vpow.pop %v2138
        %v2140 = vsub.f32 1.0, %v2137
        %v2141 = vsub.f32 1.0, %v2139
        %v2142 = vmul.f32 %v2021, %v2140
        %v2143 = vmul.f32 %v2022, %v2141
        %v2144 = vlaneseq
        %v2145 = vshrl.u32 %v2144, 7
        %v2146 = vsub.s32 3, %v2145
        %v2147 = vrot.slane %v2142, %v2146
        %v2148 = vlaneseq
        %v2149 = vshrl.u32 %v2148, 7
        %v2150 = vsub.s32 3, %v2149
        %v2151 = vrot.slane %v2143, %v2150
        %v2152 = vmul.f32 %v2147, %v2127
        %v2153 = vmul.f32 %v2151, %v2129
        %v2154 = vadd.f32 %v2017, %v2152
        %v2155 = vadd.f32 %v2018, %v2153
        %v2156 = vsub.f32 1.0, %v2140
        %v2157 = vsub.f32 1.0, %v2141
        %v2158 = vmul.f32 %v2021, %v2156
        %v2159 = vmul.f32 %v2022, %v2157
        %v2160 = vmul.f32 %v368, 6.125
        %v2161 = vmul.f32 %v370, 6.125
        %v2162 = vmul.f32 %v374, 6.125
        %v2163 = vmul.f32 %v376, 6.125
        %v2164 = vmul.f32 %v380, 6.125
        %v2165 = vmul.f32 %v382, 6.125
        %v2166 = vmul.f32 %v386, 6.125
        %v2167 = vmul.f32 %v388, 6.125
        %v2168 = vadd.f32 %v487, %v2160
        %v2169 = vadd.f32 %v489, %v2161
        %v2170 = vadd.f32 %v493, %v2162
        %v2171 = vadd.f32 %v495, %v2163
        %v2172 = vadd.f32 %v499, %v2164
        %v2173 = vadd.f32 %v501, %v2165
        %v2174 = vadd.f32 %v505, %v2166
        %v2175 = vadd.f32 %v507, %v2167
        %v2176 = vmax.f32 %v2168, 0.0
        %v2177 = vmax.f32 %v2169, 0.0
        %v2178 = vmax.f32 %v2170, 0.0
        %v2179 = vmax.f32 %v2171, 0.0
        %v2180 = vmax.f32 %v2172, 0.0
        %v2181 = vmax.f32 %v2173, 0.0
        %v2182 = vmax.f32 %v2174, 0.0
        %v2183 = vmax.f32 %v2175, 0.0
        %2184 = vmatprep.subr.mxu0 %v2177
        %2185 = vmatpush1.msra.mxu0 %v2176
        %2186 = vmatprep.subr.mxu0 %v2179
        %2187 = vmatpush1.msra.mxu0 %v2178
        %2188 = vmatprep.subr.mxu0 %v2181
        %2189 = vmatpush1.msra.mxu0 %v2180
        %2190 = vmatprep.subr.mxu0 %v2183
        %2191 = vmatpush1.msra.mxu0 %v2182
        %2192 = vmatprep.subr.mxu0 0.0
        %2193 = vmatpush1.msra.mxu0 0.0
        %2194 = vmatprep.subr.mxu0 0.0
        %2195 = vmatpush1.msra.mxu0 0.0
        %2196 = vmatprep.subr.mxu0 0.0
        %2197 = vmatpush1.msra.mxu0 0.0
        %2198 = vmatprep.subr.mxu0 0.0
        %2199 = vmatpush1.msra.mxu0 0.0
        %2200 = vmatprep.subr.mxu0 0.0
        %2201 = vmatpush1.msra.mxu0 0.0
        %2202 = vmatprep.subr.mxu0 0.0
        %2203 = vmatpush1.msra.mxu0 0.0
        %2204 = vmatprep.subr.mxu0 0.0
        %2205 = vmatpush1.msra.mxu0 0.0
        %2206 = vmatprep.subr.mxu0 0.0
        %2207 = vmatpush1.msra.mxu0 0.0
        %2208 = vmatprep.subr.mxu0 0.0
        %2209 = vmatpush1.msra.mxu0 0.0
        %2210 = vmatprep.subr.mxu0 0.0
        %2211 = vmatpush1.msra.mxu0 0.0
        %2212 = vmatprep.subr.mxu0 0.0
        %2213 = vmatpush1.msra.mxu0 0.0
        %2214 = vmatprep.subr.mxu0 0.0
        %2215 = vmatpush1.msra.mxu0 0.0
        %2216 = vmatprep.subr.mxu0 0.0
        %2217 = vmatpush1.msra.mxu0 0.0
        %2218 = vmatprep.subr.mxu0 0.0
        %2219 = vmatpush1.msra.mxu0 0.0
        %2220 = vmatprep.subr.mxu0 0.0
        %2221 = vmatpush1.msra.mxu0 0.0
        %2222 = vmatprep.subr.mxu0 0.0
        %2223 = vmatpush1.msra.mxu0 0.0
        %2224 = vmatprep.subr.mxu0 0.0
        %2225 = vmatpush1.msra.mxu0 0.0
        %2226 = vmatprep.subr.mxu0 0.0
        %2227 = vmatpush1.msra.mxu0 0.0
        %2228 = vmatprep.subr.mxu0 0.0
        %2229 = vmatpush1.msra.mxu0 0.0
        %2230 = vmatprep.subr.mxu0 0.0
        %2231 = vmatpush1.msra.mxu0 0.0
        %2232 = vmatprep.subr.mxu0 0.0
        %2233 = vmatpush1.msra.mxu0 0.0
        %2234 = vmatprep.subr.mxu0 0.0
        %2235 = vmatpush1.msra.mxu0 0.0
        %2236 = vmatprep.subr.mxu0 0.0
        %2237 = vmatpush1.msra.mxu0 0.0
        %2238 = vmatprep.subr.mxu0 0.0
        %2239 = vmatpush1.msra.mxu0 0.0
        %2240 = vmatprep.subr.mxu0 0.0
        %2241 = vmatpush1.msra.mxu0 0.0
        %2242 = vmatprep.subr.mxu0 0.0
        %2243 = vmatpush1.msra.mxu0 0.0
        %2244 = vmatprep.subr.mxu0 0.0
        %2245 = vmatpush1.msra.mxu0 0.0
        %2246 = vmatprep.subr.mxu0 0.0
        %2247 = vmatpush1.msra.mxu0 0.0
        %2248 = vmatprep.mubr.f32.mxu0 0.0
        %2249 = vmatmul.mubr.f32.gmra.mrb[0].mxu0 %v542
        %v2250 = vpop.f32.mrb[0].mxu0
        %v2251 = vadd.f32 %v514, %v2250
        %v2252 = vpop.f32.mrb[0].mxu0
        %v2253 = vadd.f32 %v514, %v2252
        %2254 = vdwg.mxu0
        %v2255 = vsub.f32 0.0, %v2251
        %v2256 = vsub.f32 0.0, %v2253
        %v2257 = vmul.f32 %v2255, 1.442695
        %v2258 = vpow.pop %v2257
        %v2259 = vmul.f32 %v2256, 1.442695
        %v2260 = vpow.pop %v2259
        %v2261 = vadd.f32 %v2258, 1.0
        %v2262 = vadd.f32 %v2260, 1.0
        %v2263 = vrcp.pop %v2261
        %v2264 = vmul.f32 1.0, %v2263
        %v2265 = vrcp.pop %v2262
        %v2266 = vmul.f32 1.0, %v2265
        %v2267 = vmax.f32 %v2251, 0.0
        %v2268 = vmax.f32 %v2253, 0.0
        %v2269 = vsub.f32 0.0, %v2267
        %v2270 = vsub.f32 0.0, %v2268
        %v2271 = vmul.f32 %v2269, 0.25
        %v2272 = vmul.f32 %v2270, 0.25
        %v2273 = vmul.f32 %v2271, 1.442695
        %v2274 = vpow.pop %v2273
        %v2275 = vmul.f32 %v2272, 1.442695
        %v2276 = vpow.pop %v2275
        %v2277 = vsub.f32 1.0, %v2274
        %v2278 = vsub.f32 1.0, %v2276
        %v2279 = vmul.f32 %v2158, %v2277
        %v2280 = vmul.f32 %v2159, %v2278
        %v2281 = vlaneseq
        %v2282 = vshrl.u32 %v2281, 7
        %v2283 = vsub.s32 3, %v2282
        %v2284 = vrot.slane %v2279, %v2283
        %v2285 = vlaneseq
        %v2286 = vshrl.u32 %v2285, 7
        %v2287 = vsub.s32 3, %v2286
        %v2288 = vrot.slane %v2280, %v2287
        %v2289 = vmul.f32 %v2284, %v2264
        %v2290 = vmul.f32 %v2288, %v2266
        %v2291 = vadd.f32 %v2154, %v2289
        %v2292 = vadd.f32 %v2155, %v2290
        %v2293 = vsub.f32 1.0, %v2277
        %v2294 = vsub.f32 1.0, %v2278
        %v2295 = vmul.f32 %v2158, %v2293
        %v2296 = vmul.f32 %v2159, %v2294
        %v2297 = vmul.f32 %v368, 6.5
        %v2298 = vmul.f32 %v370, 6.5
        %v2299 = vmul.f32 %v374, 6.5
        %v2300 = vmul.f32 %v376, 6.5
        %v2301 = vmul.f32 %v380, 6.5
        %v2302 = vmul.f32 %v382, 6.5
        %v2303 = vmul.f32 %v386, 6.5
        %v2304 = vmul.f32 %v388, 6.5
        %v2305 = vadd.f32 %v487, %v2297
        %v2306 = vadd.f32 %v489, %v2298
        %v2307 = vadd.f32 %v493, %v2299
        %v2308 = vadd.f32 %v495, %v2300
        %v2309 = vadd.f32 %v499, %v2301
        %v2310 = vadd.f32 %v501, %v2302
        %v2311 = vadd.f32 %v505, %v2303
        %v2312 = vadd.f32 %v507, %v2304
        %v2313 = vmax.f32 %v2305, 0.0
        %v2314 = vmax.f32 %v2306, 0.0
        %v2315 = vmax.f32 %v2307, 0.0
        %v2316 = vmax.f32 %v2308, 0.0
        %v2317 = vmax.f32 %v2309, 0.0
        %v2318 = vmax.f32 %v2310, 0.0
        %v2319 = vmax.f32 %v2311, 0.0
        %v2320 = vmax.f32 %v2312, 0.0
        %2321 = vmatprep.subr.mxu0 %v2314
        %2322 = vmatpush1.msra.mxu0 %v2313
        %2323 = vmatprep.subr.mxu0 %v2316
        %2324 = vmatpush1.msra.mxu0 %v2315
        %2325 = vmatprep.subr.mxu0 %v2318
        %2326 = vmatpush1.msra.mxu0 %v2317
        %2327 = vmatprep.subr.mxu0 %v2320
        %2328 = vmatpush1.msra.mxu0 %v2319
        %2329 = vmatprep.subr.mxu0 0.0
        %2330 = vmatpush1.msra.mxu0 0.0
        %2331 = vmatprep.subr.mxu0 0.0
        %2332 = vmatpush1.msra.mxu0 0.0
        %2333 = vmatprep.subr.mxu0 0.0
        %2334 = vmatpush1.msra.mxu0 0.0
        %2335 = vmatprep.subr.mxu0 0.0
        %2336 = vmatpush1.msra.mxu0 0.0
        %2337 = vmatprep.subr.mxu0 0.0
        %2338 = vmatpush1.msra.mxu0 0.0
        %2339 = vmatprep.subr.mxu0 0.0
        %2340 = vmatpush1.msra.mxu0 0.0
        %2341 = vmatprep.subr.mxu0 0.0
        %2342 = vmatpush1.msra.mxu0 0.0
        %2343 = vmatprep.subr.mxu0 0.0
        %2344 = vmatpush1.msra.mxu0 0.0
        %2345 = vmatprep.subr.mxu0 0.0
        %2346 = vmatpush1.msra.mxu0 0.0
        %2347 = vmatprep.subr.mxu0 0.0
        %2348 = vmatpush1.msra.mxu0 0.0
        %2349 = vmatprep.subr.mxu0 0.0
        %2350 = vmatpush1.msra.mxu0 0.0
        %2351 = vmatprep.subr.mxu0 0.0
        %2352 = vmatpush1.msra.mxu0 0.0
        %2353 = vmatprep.subr.mxu0 0.0
        %2354 = vmatpush1.msra.mxu0 0.0
        %2355 = vmatprep.subr.mxu0 0.0
        %2356 = vmatpush1.msra.mxu0 0.0
        %2357 = vmatprep.subr.mxu0 0.0
        %2358 = vmatpush1.msra.mxu0 0.0
        %2359 = vmatprep.subr.mxu0 0.0
        %2360 = vmatpush1.msra.mxu0 0.0
        %2361 = vmatprep.subr.mxu0 0.0
        %2362 = vmatpush1.msra.mxu0 0.0
        %2363 = vmatprep.subr.mxu0 0.0
        %2364 = vmatpush1.msra.mxu0 0.0
        %2365 = vmatprep.subr.mxu0 0.0
        %2366 = vmatpush1.msra.mxu0 0.0
        %2367 = vmatprep.subr.mxu0 0.0
        %2368 = vmatpush1.msra.mxu0 0.0
        %2369 = vmatprep.subr.mxu0 0.0
        %2370 = vmatpush1.msra.mxu0 0.0
        %2371 = vmatprep.subr.mxu0 0.0
        %2372 = vmatpush1.msra.mxu0 0.0
        %2373 = vmatprep.subr.mxu0 0.0
        %2374 = vmatpush1.msra.mxu0 0.0
        %2375 = vmatprep.subr.mxu0 0.0
        %2376 = vmatpush1.msra.mxu0 0.0
        %2377 = vmatprep.subr.mxu0 0.0
        %2378 = vmatpush1.msra.mxu0 0.0
        %2379 = vmatprep.subr.mxu0 0.0
        %2380 = vmatpush1.msra.mxu0 0.0
        %2381 = vmatprep.subr.mxu0 0.0
        %2382 = vmatpush1.msra.mxu0 0.0
        %2383 = vmatprep.subr.mxu0 0.0
        %2384 = vmatpush1.msra.mxu0 0.0
        %2385 = vmatprep.mubr.f32.mxu0 0.0
        %2386 = vmatmul.mubr.f32.gmra.mrb[0].mxu0 %v542
        %v2387 = vpop.f32.mrb[0].mxu0
        %v2388 = vadd.f32 %v514, %v2387
        %v2389 = vpop.f32.mrb[0].mxu0
        %v2390 = vadd.f32 %v514, %v2389
        %2391 = vdwg.mxu0
        %v2392 = vsub.f32 0.0, %v2388
        %v2393 = vsub.f32 0.0, %v2390
        %v2394 = vmul.f32 %v2392, 1.442695
        %v2395 = vpow.pop %v2394
        %v2396 = vmul.f32 %v2393, 1.442695
        %v2397 = vpow.pop %v2396
        %v2398 = vadd.f32 %v2395, 1.0
        %v2399 = vadd.f32 %v2397, 1.0
        %v2400 = vrcp.pop %v2398
        %v2401 = vmul.f32 1.0, %v2400
        %v2402 = vrcp.pop %v2399
        %v2403 = vmul.f32 1.0, %v2402
        %v2404 = vmax.f32 %v2388, 0.0
        %v2405 = vmax.f32 %v2390, 0.0
        %v2406 = vsub.f32 0.0, %v2404
        %v2407 = vsub.f32 0.0, %v2405
        %v2408 = vmul.f32 %v2406, 0.25
        %v2409 = vmul.f32 %v2407, 0.25
        %v2410 = vmul.f32 %v2408, 1.442695
        %v2411 = vpow.pop %v2410
        %v2412 = vmul.f32 %v2409, 1.442695
        %v2413 = vpow.pop %v2412
        %v2414 = vsub.f32 1.0, %v2411
        %v2415 = vsub.f32 1.0, %v2413
        %v2416 = vmul.f32 %v2295, %v2414
        %v2417 = vmul.f32 %v2296, %v2415
        %v2418 = vlaneseq
        %v2419 = vshrl.u32 %v2418, 7
        %v2420 = vsub.s32 3, %v2419
        %v2421 = vrot.slane %v2416, %v2420
        %v2422 = vlaneseq
        %v2423 = vshrl.u32 %v2422, 7
        %v2424 = vsub.s32 3, %v2423
        %v2425 = vrot.slane %v2417, %v2424
        %v2426 = vmul.f32 %v2421, %v2401
        %v2427 = vmul.f32 %v2425, %v2403
        %v2428 = vadd.f32 %v2291, %v2426
        %v2429 = vadd.f32 %v2292, %v2427
        %v2430 = vsub.f32 1.0, %v2414
        %v2431 = vsub.f32 1.0, %v2415
        %v2432 = vmul.f32 %v2295, %v2430
        %v2433 = vmul.f32 %v2296, %v2431
        %v2434 = vmul.f32 %v368, 6.875
        %v2435 = vmul.f32 %v370, 6.875
        %v2436 = vmul.f32 %v374, 6.875
        %v2437 = vmul.f32 %v376, 6.875
        %v2438 = vmul.f32 %v380, 6.875
        %v2439 = vmul.f32 %v382, 6.875
        %v2440 = vmul.f32 %v386, 6.875
        %v2441 = vmul.f32 %v388, 6.875
        %v2442 = vadd.f32 %v487, %v2434
        %v2443 = vadd.f32 %v489, %v2435
        %v2444 = vadd.f32 %v493, %v2436
        %v2445 = vadd.f32 %v495, %v2437
        %v2446 = vadd.f32 %v499, %v2438
        %v2447 = vadd.f32 %v501, %v2439
        %v2448 = vadd.f32 %v505, %v2440
        %v2449 = vadd.f32 %v507, %v2441
        %v2450 = vmax.f32 %v2442, 0.0
        %v2451 = vmax.f32 %v2443, 0.0
        %v2452 = vmax.f32 %v2444, 0.0
        %v2453 = vmax.f32 %v2445, 0.0
        %v2454 = vmax.f32 %v2446, 0.0
        %v2455 = vmax.f32 %v2447, 0.0
        %v2456 = vmax.f32 %v2448, 0.0
        %v2457 = vmax.f32 %v2449, 0.0
        %2458 = vmatprep.subr.mxu0 %v2451
        %2459 = vmatpush1.msra.mxu0 %v2450
        %2460 = vmatprep.subr.mxu0 %v2453
        %2461 = vmatpush1.msra.mxu0 %v2452
        %2462 = vmatprep.subr.mxu0 %v2455
        %2463 = vmatpush1.msra.mxu0 %v2454
        %2464 = vmatprep.subr.mxu0 %v2457
        %2465 = vmatpush1.msra.mxu0 %v2456
        %2466 = vmatprep.subr.mxu0 0.0
        %2467 = vmatpush1.msra.mxu0 0.0
        %2468 = vmatprep.subr.mxu0 0.0
        %2469 = vmatpush1.msra.mxu0 0.0
        %2470 = vmatprep.subr.mxu0 0.0
        %2471 = vmatpush1.msra.mxu0 0.0
        %2472 = vmatprep.subr.mxu0 0.0
        %2473 = vmatpush1.msra.mxu0 0.0
        %2474 = vmatprep.subr.mxu0 0.0
        %2475 = vmatpush1.msra.mxu0 0.0
        %2476 = vmatprep.subr.mxu0 0.0
        %2477 = vmatpush1.msra.mxu0 0.0
        %2478 = vmatprep.subr.mxu0 0.0
        %2479 = vmatpush1.msra.mxu0 0.0
        %2480 = vmatprep.subr.mxu0 0.0
        %2481 = vmatpush1.msra.mxu0 0.0
        %2482 = vmatprep.subr.mxu0 0.0
        %2483 = vmatpush1.msra.mxu0 0.0
        %2484 = vmatprep.subr.mxu0 0.0
        %2485 = vmatpush1.msra.mxu0 0.0
        %2486 = vmatprep.subr.mxu0 0.0
        %2487 = vmatpush1.msra.mxu0 0.0
        %2488 = vmatprep.subr.mxu0 0.0
        %2489 = vmatpush1.msra.mxu0 0.0
        %2490 = vmatprep.subr.mxu0 0.0
        %2491 = vmatpush1.msra.mxu0 0.0
        %2492 = vmatprep.subr.mxu0 0.0
        %2493 = vmatpush1.msra.mxu0 0.0
        %2494 = vmatprep.subr.mxu0 0.0
        %2495 = vmatpush1.msra.mxu0 0.0
        %2496 = vmatprep.subr.mxu0 0.0
        %2497 = vmatpush1.msra.mxu0 0.0
        %2498 = vmatprep.subr.mxu0 0.0
        %2499 = vmatpush1.msra.mxu0 0.0
        %2500 = vmatprep.subr.mxu0 0.0
        %2501 = vmatpush1.msra.mxu0 0.0
        %2502 = vmatprep.subr.mxu0 0.0
        %2503 = vmatpush1.msra.mxu0 0.0
        %2504 = vmatprep.subr.mxu0 0.0
        %2505 = vmatpush1.msra.mxu0 0.0
        %2506 = vmatprep.subr.mxu0 0.0
        %2507 = vmatpush1.msra.mxu0 0.0
        %2508 = vmatprep.subr.mxu0 0.0
        %2509 = vmatpush1.msra.mxu0 0.0
        %2510 = vmatprep.subr.mxu0 0.0
        %2511 = vmatpush1.msra.mxu0 0.0
        %2512 = vmatprep.subr.mxu0 0.0
        %2513 = vmatpush1.msra.mxu0 0.0
        %2514 = vmatprep.subr.mxu0 0.0
        %2515 = vmatpush1.msra.mxu0 0.0
        %2516 = vmatprep.subr.mxu0 0.0
        %2517 = vmatpush1.msra.mxu0 0.0
        %2518 = vmatprep.subr.mxu0 0.0
        %2519 = vmatpush1.msra.mxu0 0.0
        %2520 = vmatprep.subr.mxu0 0.0
        %2521 = vmatpush1.msra.mxu0 0.0
        %2522 = vmatprep.mubr.f32.mxu0 0.0
        %2523 = vmatmul.mubr.f32.gmra.mrb[0].mxu0 %v542
        %v2524 = vpop.f32.mrb[0].mxu0
        %v2525 = vadd.f32 %v514, %v2524
        %v2526 = vpop.f32.mrb[0].mxu0
        %v2527 = vadd.f32 %v514, %v2526
        %2528 = vdwg.mxu0
        %v2529 = vsub.f32 0.0, %v2525
        %v2530 = vsub.f32 0.0, %v2527
        %v2531 = vmul.f32 %v2529, 1.442695
        %v2532 = vpow.pop %v2531
        %v2533 = vmul.f32 %v2530, 1.442695
        %v2534 = vpow.pop %v2533
        %v2535 = vadd.f32 %v2532, 1.0
        %v2536 = vadd.f32 %v2534, 1.0
        %v2537 = vrcp.pop %v2535
        %v2538 = vmul.f32 1.0, %v2537
        %v2539 = vrcp.pop %v2536
        %v2540 = vmul.f32 1.0, %v2539
        %v2541 = vmax.f32 %v2525, 0.0
        %v2542 = vmax.f32 %v2527, 0.0
        %v2543 = vsub.f32 0.0, %v2541
        %v2544 = vsub.f32 0.0, %v2542
        %v2545 = vmul.f32 %v2543, 0.25
        %v2546 = vmul.f32 %v2544, 0.25
        %v2547 = vmul.f32 %v2545, 1.442695
        %v2548 = vpow.pop %v2547
        %v2549 = vmul.f32 %v2546, 1.442695
        %v2550 = vpow.pop %v2549
        %v2551 = vsub.f32 1.0, %v2548
        %v2552 = vsub.f32 1.0, %v2550
        %v2553 = vmul.f32 %v2432, %v2551
        %v2554 = vmul.f32 %v2433, %v2552
        %v2555 = vlaneseq
        %v2556 = vshrl.u32 %v2555, 7
        %v2557 = vsub.s32 3, %v2556
        %v2558 = vrot.slane %v2553, %v2557
        %v2559 = vlaneseq
        %v2560 = vshrl.u32 %v2559, 7
        %v2561 = vsub.s32 3, %v2560
        %v2562 = vrot.slane %v2554, %v2561
        %v2563 = vmul.f32 %v2558, %v2538
        %v2564 = vmul.f32 %v2562, %v2540
        %v2565 = vadd.f32 %v2428, %v2563
        %v2566 = vadd.f32 %v2429, %v2564
        %v2567 = vsub.f32 1.0, %v2551
        %v2568 = vsub.f32 1.0, %v2552
        %v2569 = vmul.f32 %v2432, %v2567
        %v2570 = vmul.f32 %v2433, %v2568
        %v2571 = vmul.f32 %v368, 7.25
        %v2572 = vmul.f32 %v370, 7.25
        %v2573 = vmul.f32 %v374, 7.25
        %v2574 = vmul.f32 %v376, 7.25
        %v2575 = vmul.f32 %v380, 7.25
        %v2576 = vmul.f32 %v382, 7.25
        %v2577 = vmul.f32 %v386, 7.25
        %v2578 = vmul.f32 %v388, 7.25
        %v2579 = vadd.f32 %v487, %v2571
        %v2580 = vadd.f32 %v489, %v2572
        %v2581 = vadd.f32 %v493, %v2573
        %v2582 = vadd.f32 %v495, %v2574
        %v2583 = vadd.f32 %v499, %v2575
        %v2584 = vadd.f32 %v501, %v2576
        %v2585 = vadd.f32 %v505, %v2577
        %v2586 = vadd.f32 %v507, %v2578
        %v2587 = vmax.f32 %v2579, 0.0
        %v2588 = vmax.f32 %v2580, 0.0
        %v2589 = vmax.f32 %v2581, 0.0
        %v2590 = vmax.f32 %v2582, 0.0
        %v2591 = vmax.f32 %v2583, 0.0
        %v2592 = vmax.f32 %v2584, 0.0
        %v2593 = vmax.f32 %v2585, 0.0
        %v2594 = vmax.f32 %v2586, 0.0
        %2595 = vmatprep.subr.mxu0 %v2588
        %2596 = vmatpush1.msra.mxu0 %v2587
        %2597 = vmatprep.subr.mxu0 %v2590
        %2598 = vmatpush1.msra.mxu0 %v2589
        %2599 = vmatprep.subr.mxu0 %v2592
        %2600 = vmatpush1.msra.mxu0 %v2591
        %2601 = vmatprep.subr.mxu0 %v2594
        %2602 = vmatpush1.msra.mxu0 %v2593
        %2603 = vmatprep.subr.mxu0 0.0
        %2604 = vmatpush1.msra.mxu0 0.0
        %2605 = vmatprep.subr.mxu0 0.0
        %2606 = vmatpush1.msra.mxu0 0.0
        %2607 = vmatprep.subr.mxu0 0.0
        %2608 = vmatpush1.msra.mxu0 0.0
        %2609 = vmatprep.subr.mxu0 0.0
        %2610 = vmatpush1.msra.mxu0 0.0
        %2611 = vmatprep.subr.mxu0 0.0
        %2612 = vmatpush1.msra.mxu0 0.0
        %2613 = vmatprep.subr.mxu0 0.0
        %2614 = vmatpush1.msra.mxu0 0.0
        %2615 = vmatprep.subr.mxu0 0.0
        %2616 = vmatpush1.msra.mxu0 0.0
        %2617 = vmatprep.subr.mxu0 0.0
        %2618 = vmatpush1.msra.mxu0 0.0
        %2619 = vmatprep.subr.mxu0 0.0
        %2620 = vmatpush1.msra.mxu0 0.0
        %2621 = vmatprep.subr.mxu0 0.0
        %2622 = vmatpush1.msra.mxu0 0.0
        %2623 = vmatprep.subr.mxu0 0.0
        %2624 = vmatpush1.msra.mxu0 0.0
        %2625 = vmatprep.subr.mxu0 0.0
        %2626 = vmatpush1.msra.mxu0 0.0
        %2627 = vmatprep.subr.mxu0 0.0
        %2628 = vmatpush1.msra.mxu0 0.0
        %2629 = vmatprep.subr.mxu0 0.0
        %2630 = vmatpush1.msra.mxu0 0.0
        %2631 = vmatprep.subr.mxu0 0.0
        %2632 = vmatpush1.msra.mxu0 0.0
        %2633 = vmatprep.subr.mxu0 0.0
        %2634 = vmatpush1.msra.mxu0 0.0
        %2635 = vmatprep.subr.mxu0 0.0
        %2636 = vmatpush1.msra.mxu0 0.0
        %2637 = vmatprep.subr.mxu0 0.0
        %2638 = vmatpush1.msra.mxu0 0.0
        %2639 = vmatprep.subr.mxu0 0.0
        %2640 = vmatpush1.msra.mxu0 0.0
        %2641 = vmatprep.subr.mxu0 0.0
        %2642 = vmatpush1.msra.mxu0 0.0
        %2643 = vmatprep.subr.mxu0 0.0
        %2644 = vmatpush1.msra.mxu0 0.0
        %2645 = vmatprep.subr.mxu0 0.0
        %2646 = vmatpush1.msra.mxu0 0.0
        %2647 = vmatprep.subr.mxu0 0.0
        %2648 = vmatpush1.msra.mxu0 0.0
        %2649 = vmatprep.subr.mxu0 0.0
        %2650 = vmatpush1.msra.mxu0 0.0
        %2651 = vmatprep.subr.mxu0 0.0
        %2652 = vmatpush1.msra.mxu0 0.0
        %2653 = vmatprep.subr.mxu0 0.0
        %2654 = vmatpush1.msra.mxu0 0.0
        %2655 = vmatprep.subr.mxu0 0.0
        %2656 = vmatpush1.msra.mxu0 0.0
        %2657 = vmatprep.subr.mxu0 0.0
        %2658 = vmatpush1.msra.mxu0 0.0
        %2659 = vmatprep.mubr.f32.mxu0 0.0
        %2660 = vmatmul.mubr.f32.gmra.mrb[0].mxu0 %v542
        %v2661 = vpop.f32.mrb[0].mxu0
        %v2662 = vadd.f32 %v514, %v2661
        %v2663 = vpop.f32.mrb[0].mxu0
        %v2664 = vadd.f32 %v514, %v2663
        %2665 = vdwg.mxu0
        %v2666 = vsub.f32 0.0, %v2662
        %v2667 = vsub.f32 0.0, %v2664
        %v2668 = vmul.f32 %v2666, 1.442695
        %v2669 = vpow.pop %v2668
        %v2670 = vmul.f32 %v2667, 1.442695
        %v2671 = vpow.pop %v2670
        %v2672 = vadd.f32 %v2669, 1.0
        %v2673 = vadd.f32 %v2671, 1.0
        %v2674 = vrcp.pop %v2672
        %v2675 = vmul.f32 1.0, %v2674
        %v2676 = vrcp.pop %v2673
        %v2677 = vmul.f32 1.0, %v2676
        %v2678 = vmax.f32 %v2662, 0.0
        %v2679 = vmax.f32 %v2664, 0.0
        %v2680 = vsub.f32 0.0, %v2678
        %v2681 = vsub.f32 0.0, %v2679
        %v2682 = vmul.f32 %v2680, 0.25
        %v2683 = vmul.f32 %v2681, 0.25
        %v2684 = vmul.f32 %v2682, 1.442695
        %v2685 = vpow.pop %v2684
        %v2686 = vmul.f32 %v2683, 1.442695
        %v2687 = vpow.pop %v2686
        %v2688 = vsub.f32 1.0, %v2685
        %v2689 = vsub.f32 1.0, %v2687
        %v2690 = vmul.f32 %v2569, %v2688
        %v2691 = vmul.f32 %v2570, %v2689
        %v2692 = vlaneseq
        %v2693 = vshrl.u32 %v2692, 7
        %v2694 = vsub.s32 3, %v2693
        %v2695 = vrot.slane %v2690, %v2694
        %v2696 = vlaneseq
        %v2697 = vshrl.u32 %v2696, 7
        %v2698 = vsub.s32 3, %v2697
        %v2699 = vrot.slane %v2691, %v2698
        %v2700 = vmul.f32 %v2695, %v2675
        %v2701 = vmul.f32 %v2699, %v2677
        %v2702 = vadd.f32 %v2565, %v2700
        %v2703 = vadd.f32 %v2566, %v2701
        %v2706 = vcombine.low %v2702, %v2703
        %2708 = vst [vmem:[%s261] sm:$0x77] %v2706
        %s2709 = sand.u32 %s164, 1
        %s2710 = scalar_lea.sflag [#allocation3], %s2709
        %s2711 = sand.u32 %s164, 1
        %s2712 = smul.addr %s2711, 8
        %s2713 = scalar_lea.vmem [#allocation2], %s2712
        // Predicated region
        $region45: #{tpu_custom_call.1} parent=43 // pred_check
          %p2714 = pneg %p174
        $region46: #{tpu_custom_call.1} parent=43 // pred_check_branch
          %2716 = sbr.rel (%p2714) target = $region48
        $region47: #{tpu_custom_call.1} parent=43 // pred_region
          %s2717 = smul.u32 2, %s20
          %s2719 = ssub.s32 128, 128
          %2720 = vsyncadd %s2710, %s2719
          %s2721 = smul.addr %s2717, 64
          %s2722 = scalar_lea.hbm %s6, %s2721
          %s2724 = sshll.u32 %s2713, 4
          %s2725 = int_to_ptr.vmem [resolvable:$true] %s2724
          %2727 = dma.vmem_to_hbm [thread:$0]  %s2725, 128, %s2722, %s2710
        $region48: #{tpu_custom_call.1} parent=43 // pred_fallthru
          _
      $region44: #{tpu_custom_call.1} parent=5 // pred_fallthru
        _
      %p2728 = scmp.le.s32.totalorder 2, %s15
      // Predicated region
      $region49: #{tpu_custom_call.1} parent=5 // pred_check
        %p2729 = pneg %p2728
      $region50: #{tpu_custom_call.1} parent=5 // pred_check_branch
        %2731 = sbr.rel (%p2729) target = $region52
      $region51: #{tpu_custom_call.1} parent=5 // pred_region
        %s2732 = ssub.s32 %s15, 2
        // Predicated region
        $region53: #{tpu_custom_call.1} parent=51 // pred_check
          %p2733 = pneg %p180
        $region54: #{tpu_custom_call.1} parent=51 // pred_check_branch
          %2735 = sbr.rel (%p2733) target = $region56
        $region55: #{tpu_custom_call.1} parent=51 // pred_region
          %s2736 = sand.u32 %s165, 1
          %s2737 = scalar_lea.sflag [#allocation3], %s2736
          %s2738 = sand.u32 %s165, 1
          %s2739 = smul.addr %s2738, 8
          %s2740 = scalar_lea.vmem [#allocation2], %s2739
          %2741 = dma.done %s2737, 128
        $region56: #{tpu_custom_call.1} parent=51 // pred_fallthru
          _
      $region52: #{tpu_custom_call.1} parent=5 // pred_fallthru
        _
    $region6: #{tpu_custom_call.1} parent=1 // loop_footer
      %s19 = sadd.s32 1, %s15
    $region7: #{tpu_custom_call.1} parent=1 // loop_footer_branch
      %14 = sbr.rel target = $region3
    $region8: #{tpu_custom_call.1} parent=1 // loop_exit
      _
    %2742 = vsyncpa [#allocation3], 1
    %s2743 = scalar_lea.sflag [#allocation3], 1
    %2744 = vsyncpa %s2743, 1

</llo_original>
